<compile_context>
chip_gen: v6e
topology: v6e:2x2x1
jax: 0.10.0
libtpu: 0.0.40
codegen_flags: <defaults>
</compile_context>

<pallas_src>
import functools

import jax
import jax.numpy as jnp
from jax.experimental import pallas as pl
from jax.experimental.pallas import tpu as pltpu


# ----------------------------------------------------------------------------
# In-kernel helpers (traced inside the kernel body)
# ----------------------------------------------------------------------------
def _bmm(a, b):
    """Batched matmul (G,M,K)@(G,K,N) -> (G,M,N) with f32 accumulation."""
    return jax.lax.dot_general(
        a, b, (((2,), (1,)), ((0,), (0,))), preferred_element_type=jnp.float32)


def _mm(a, w):
    """2-D matmul; activation cast to the (bf16) weight dtype, f32 accumulate."""
    return jnp.dot(a.astype(w.dtype), w, preferred_element_type=jnp.float32)


def _temporal_mean(h0, n, t_in, kt):
    """Valid sliding mean over the time axis of a (t_in*n, C) slab."""
    t_out = t_in - kt + 1
    acc = h0[0:t_out * n]
    for i in range(1, kt):                      # static, tile-aligned row slices
        acc = acc + h0[i * n:(i + t_out) * n]
    return acc * (1.0 / kt), t_out


def _propagate(a16, p16, ht2d, n, t_out, c):
    """Per-time-step graph propagation with A and adp (bf16 MXU, f32 acc)."""
    ht3 = ht2d.reshape(t_out, n, c).astype(jnp.bfloat16)
    a_b = jnp.broadcast_to(a16, (t_out, n, n))
    p_b = jnp.broadcast_to(p16, (t_out, n, n))
    ha = jnp.maximum(_bmm(a_b, ht3), 0.0).reshape(t_out * n, c)
    hb = jnp.maximum(_bmm(p_b, ht3), 0.0).reshape(t_out * n, c)
    return ha, hb


# ----------------------------------------------------------------------------
# Single fused kernel: adjacency prologue + 3 ST blocks + skip/end chain.
# Grid = (B,), "parallel"; one batch element per grid step.
# ----------------------------------------------------------------------------
def _cldgcn_kernel(x_ref, h_ref, sup_ref, n1_ref, n2_ref,
                   b1w_ref, b1b_ref, b2w_ref, b2b_ref, b3w_ref, b3b_ref,
                   s1w_ref, s1b_ref, s2w_ref, s2b_ref, s3w_ref, s3b_ref,
                   e1w_ref, e1b_ref, e2w_ref, e2b_ref, o_ref,
                   *, n, t, c, kt1, kt2, kt3):
    # --- adjacency prologue (tiny; recomputed per step -> parallel-safe) -----
    A = h_ref[...] + sup_ref[...]
    A = A / (jnp.sum(A, axis=-1, keepdims=True) + 0.0001)   # exact row-normalise
    logits = jnp.maximum(
        jnp.dot(n1_ref[...], n2_ref[...], preferred_element_type=jnp.float32), 0.0)
    e = jnp.exp(logits - jnp.max(logits, axis=1, keepdims=True))
    adp = e / jnp.sum(e, axis=1, keepdims=True)              # exact softmax
    a16 = A.astype(jnp.bfloat16)
    p16 = adp.astype(jnp.bfloat16)

    # --- ST block 1 (in_dim == 1: 1x1 conv is a VPU broadcast FMA, f32) ------
    x = x_ref[0]                                             # (t*n, 1) f32
    h0 = jnp.maximum(x * b1w_ref[...] + b1b_ref[...], 0.0)   # (t*n, c)
    ht, t1 = _temporal_mean(h0, n, t, kt1)
    x1a, x1b = _propagate(a16, p16, ht, n, t1, c)

    # --- ST block 2 (2c -> c conv as two 2-D dots, T folded into M) ----------
    h0 = jnp.maximum(_mm(x1a, b2w_ref[0:c, :]) + _mm(x1b, b2w_ref[c:, :])
                     + b2b_ref[...], 0.0)
    ht, t2 = _temporal_mean(h0, n, t1, kt2)
    x2a, x2b = _propagate(a16, p16, ht, n, t2, c)

    # --- ST block 3 -----------------------------------------------------------
    h0 = jnp.maximum(_mm(x2a, b3w_ref[0:c, :]) + _mm(x2b, b3w_ref[c:, :])
                     + b3b_ref[...], 0.0)
    ht, t3 = _temporal_mean(h0, n, t2, kt3)
    x3a, x3b = _propagate(a16, p16, ht, n, t3, c)

    # --- skip1/2/3 + end convs (exact refactor of skip[..., -T3:] slicing) ---
    x1a_l, x1b_l = x1a[(t1 - t3) * n:], x1b[(t1 - t3) * n:]
    x2a_l, x2b_l = x2a[(t2 - t3) * n:], x2b[(t2 - t3) * n:]
    skip = (_mm(x1a_l, s1w_ref[0:c, :]) + _mm(x1b_l, s1w_ref[c:, :]) + s1b_ref[...]
            + _mm(x2a_l, s2w_ref[0:c, :]) + _mm(x2b_l, s2w_ref[c:, :]) + s2b_ref[...]
            + _mm(x3a, s3w_ref[0:c, :]) + _mm(x3b, s3w_ref[c:, :]) + s3b_ref[...])
    skip = jnp.maximum(skip, 0.0)                            # (t3*n, 256) in VMEM
    hend = jnp.maximum(_mm(skip, e1w_ref[...]) + e1b_ref[...], 0.0)   # (t3*n, 512)
    out = _mm(hend, e2w_ref[...]) + e2b_ref[...]             # (t3*n, 12)
    o_ref[0] = out.astype(o_ref.dtype)


# ----------------------------------------------------------------------------
# Forward pass (CL=False)
# ----------------------------------------------------------------------------
def cldgcn_forward(params, x, supports):
    """CLDGCN.forward with CL=False (inference; dropout = identity)."""
    B, Cin, Nn, T = x.shape
    assert Cin == 1  # TODO(synk): in_dim > 1 needs a (Cin, C) matmul in block 1
    C = params["b2_w"].shape[1]
    OD = params["end2_w"].shape[1]
    kt1, kt2, kt3 = 5, 5, 4
    T3 = T - (kt1 - 1) - (kt2 - 1) - (kt3 - 1)

    # One XLA transpose at the boundary: NCHW -> (batch, time*node, channel).
    x_k = jnp.transpose(x, (0, 3, 2, 1)).reshape(B, T * Nn, Cin).astype(jnp.float32)

    bf = lambda a: a.astype(jnp.bfloat16)                # MXU weights in bf16
    row = lambda a: a.reshape(1, -1).astype(jnp.float32)  # biases stay f32

    args = (
        x_k,
        params["h"].astype(jnp.float32), supports[0].astype(jnp.float32),
        params["nodevec1"].astype(jnp.float32), params["nodevec2"].astype(jnp.float32),
        row(params["b1_w"]), row(params["b1_b"]),
        bf(params["b2_w"]), row(params["b2_b"]),
        bf(params["b3_w"]), row(params["b3_b"]),
        bf(params["skip1_w"]), row(params["skip1_b"]),
        bf(params["skip2_w"]), row(params["skip2_b"]),
        bf(params["skip3_w"]), row(params["skip3_b"]),
        bf(params["end1_w"]), row(params["end1_b"]),
        bf(params["end2_w"]), row(params["end2_b"]),
    )

    def const2(a):   # constant block index -> DMA'd once, VMEM-resident
        return pl.BlockSpec(a.shape, lambda b: (0, 0))

    in_specs = [pl.BlockSpec((1, T * Nn, Cin), lambda b: (b, 0, 0))]
    in_specs += [const2(a) for a in args[1:]]

    kernel = functools.partial(_cldgcn_kernel,
                               n=Nn, t=T, c=C, kt1=kt1, kt2=kt2, kt3=kt3)

    out_k = pl.pallas_call(
        kernel,
        out_shape=jax.ShapeDtypeStruct((B, T3 * Nn, OD), jnp.float32),
        grid=(B,),
        in_specs=in_specs,
        out_specs=pl.BlockSpec((1, T3 * Nn, OD), lambda b: (b, 0, 0)),
        compiler_params=pltpu.CompilerParams(
            dimension_semantics=("parallel",),
            vmem_limit_bytes=48 * 1024 * 1024),
    )(*args)

    out = jnp.transpose(out_k.reshape(B, T3, Nn, OD), (0, 3, 2, 1))  # (B, 12, N, T3)
    loss1 = jnp.zeros((1,), jnp.float32)
    return out, loss1, loss1


# ----------------------------------------------------------------------------
# Deterministic parameter init (shapes from CLDGCN.__init__ / base_model.__init__)
# ----------------------------------------------------------------------------
def init_params(key, num_nodes, in_dim=1, dilation_channels=32,
                skip_channels=256, end_channels=512, out_dim=12):
    ks = jax.random.split(key, 12)

    def w(k, cin, cout):
        return jax.random.normal(k, (cin, cout), jnp.float32) / jnp.sqrt(
            jnp.float32(cin))

    dc2 = 2 * dilation_channels
    p = {}
    p["h"] = jax.random.uniform(ks[0], (num_nodes, num_nodes), jnp.float32,
                                0.0, 0.0001)
    p["nodevec1"] = jax.random.normal(ks[1], (num_nodes, 10), jnp.float32)
    p["nodevec2"] = jax.random.normal(ks[2], (10, num_nodes), jnp.float32)
    # surrogate ST-block pointwise convs
    p["b1_w"] = w(ks[3], in_dim, dilation_channels)
    p["b1_b"] = jnp.zeros((dilation_channels,), jnp.float32)
    p["b2_w"] = w(ks[4], dc2, dilation_channels)
    p["b2_b"] = jnp.zeros((dilation_channels,), jnp.float32)
    p["b3_w"] = w(ks[5], dc2, dilation_channels)
    p["b3_b"] = jnp.zeros((dilation_channels,), jnp.float32)
    # skip / end 1x1 convs (stored as (Cin, Cout) matrices)
    p["skip1_w"] = w(ks[6], dc2, skip_channels)
    p["skip1_b"] = jnp.zeros((skip_channels,), jnp.float32)
    p["skip2_w"] = w(ks[7], dc2, skip_channels)
    p["skip2_b"] = jnp.zeros((skip_channels,), jnp.float32)
    p["skip3_w"] = w(ks[8], dc2, skip_channels)
    p["skip3_b"] = jnp.zeros((skip_channels,), jnp.float32)
    p["end1_w"] = w(ks[9], skip_channels, end_channels)
    p["end1_b"] = jnp.zeros((end_channels,), jnp.float32)
    p["end2_w"] = w(ks[10], end_channels, out_dim)
    p["end2_b"] = jnp.zeros((out_dim,), jnp.float32)
    return p


if __name__ == "__main__":
    key = jax.random.PRNGKey(0)
    k_in, k_sup, k_p = jax.random.split(key, 3)

    B, in_dim, num_nodes, length = 2, 1, 16, 12
    x = jax.random.normal(k_in, (B, in_dim, num_nodes, length), jnp.float32)
    supports = [jax.random.uniform(k_sup, (num_nodes, num_nodes), jnp.float32)]
    params = init_params(k_p, num_nodes, in_dim=in_dim)

    fwd = jax.jit(cldgcn_forward)
    out, l1, l2 = fwd(params, x, supports)
    out = jax.block_until_ready(out)
    assert out.shape == (B, 12, num_nodes, 1), out.shape
    assert l1.shape == (1,)
    print("KERNEL_OK")
</pallas_src>

<mosaic_0001>
module attributes {stable_mosaic.version = 11 : i64} {
  func.func @_cldgcn_kernel(%arg0: i32, %arg1: memref<1x192x1xf32, #tpu.memory_space<vmem>>, %arg2: memref<16x16xf32, #tpu.memory_space<vmem>>, %arg3: memref<16x16xf32, #tpu.memory_space<vmem>>, %arg4: memref<16x10xf32, #tpu.memory_space<vmem>>, %arg5: memref<10x16xf32, #tpu.memory_space<vmem>>, %arg6: memref<1x32xf32, #tpu.memory_space<vmem>>, %arg7: memref<1x32xf32, #tpu.memory_space<vmem>>, %arg8: memref<64x32xbf16, #tpu.memory_space<vmem>>, %arg9: memref<1x32xf32, #tpu.memory_space<vmem>>, %arg10: memref<64x32xbf16, #tpu.memory_space<vmem>>, %arg11: memref<1x32xf32, #tpu.memory_space<vmem>>, %arg12: memref<64x256xbf16, #tpu.memory_space<vmem>>, %arg13: memref<1x256xf32, #tpu.memory_space<vmem>>, %arg14: memref<64x256xbf16, #tpu.memory_space<vmem>>, %arg15: memref<1x256xf32, #tpu.memory_space<vmem>>, %arg16: memref<64x256xbf16, #tpu.memory_space<vmem>>, %arg17: memref<1x256xf32, #tpu.memory_space<vmem>>, %arg18: memref<256x512xbf16, #tpu.memory_space<vmem>>, %arg19: memref<1x512xf32, #tpu.memory_space<vmem>>, %arg20: memref<512x12xbf16, #tpu.memory_space<vmem>>, %arg21: memref<1x12xf32, #tpu.memory_space<vmem>>, %arg22: memref<1x16x12xf32, #tpu.memory_space<vmem>>) attributes {dimension_semantics = [#tpu.dimension_semantics<parallel>], iteration_bounds = array<i64: 2>, scalar_prefetch = 0 : i64, scratch_operands = 0 : i64, tpu.core_type = #tpu.core_type<tc>, window_params = [{transform_indices = @transform_0, window_bounds = array<i64: 1, 192, 1>}, {pipeline_mode = #tpu.pipeline_mode<synchronous>, transform_indices = @transform_1, window_bounds = array<i64: 16, 16>}, {pipeline_mode = #tpu.pipeline_mode<synchronous>, transform_indices = @transform_2, window_bounds = array<i64: 16, 16>}, {pipeline_mode = #tpu.pipeline_mode<synchronous>, transform_indices = @transform_3, window_bounds = array<i64: 16, 10>}, {pipeline_mode = #tpu.pipeline_mode<synchronous>, transform_indices = @transform_4, window_bounds = array<i64: 10, 16>}, {pipeline_mode = #tpu.pipeline_mode<synchronous>, transform_indices = @transform_5, window_bounds = array<i64: 1, 32>}, {pipeline_mode = #tpu.pipeline_mode<synchronous>, transform_indices = @transform_6, window_bounds = array<i64: 1, 32>}, {pipeline_mode = #tpu.pipeline_mode<synchronous>, transform_indices = @transform_7, window_bounds = array<i64: 64, 32>}, {pipeline_mode = #tpu.pipeline_mode<synchronous>, transform_indices = @transform_8, window_bounds = array<i64: 1, 32>}, {pipeline_mode = #tpu.pipeline_mode<synchronous>, transform_indices = @transform_9, window_bounds = array<i64: 64, 32>}, {pipeline_mode = #tpu.pipeline_mode<synchronous>, transform_indices = @transform_10, window_bounds = array<i64: 1, 32>}, {pipeline_mode = #tpu.pipeline_mode<synchronous>, transform_indices = @transform_11, window_bounds = array<i64: 64, 256>}, {pipeline_mode = #tpu.pipeline_mode<synchronous>, transform_indices = @transform_12, window_bounds = array<i64: 1, 256>}, {pipeline_mode = #tpu.pipeline_mode<synchronous>, transform_indices = @transform_13, window_bounds = array<i64: 64, 256>}, {pipeline_mode = #tpu.pipeline_mode<synchronous>, transform_indices = @transform_14, window_bounds = array<i64: 1, 256>}, {pipeline_mode = #tpu.pipeline_mode<synchronous>, transform_indices = @transform_15, window_bounds = array<i64: 64, 256>}, {pipeline_mode = #tpu.pipeline_mode<synchronous>, transform_indices = @transform_16, window_bounds = array<i64: 1, 256>}, {pipeline_mode = #tpu.pipeline_mode<synchronous>, transform_indices = @transform_17, window_bounds = array<i64: 256, 512>}, {pipeline_mode = #tpu.pipeline_mode<synchronous>, transform_indices = @transform_18, window_bounds = array<i64: 1, 512>}, {pipeline_mode = #tpu.pipeline_mode<synchronous>, transform_indices = @transform_19, window_bounds = array<i64: 512, 12>}, {pipeline_mode = #tpu.pipeline_mode<synchronous>, transform_indices = @transform_20, window_bounds = array<i64: 1, 12>}, {transform_indices = @transform_21, window_bounds = array<i64: 1, 16, 12>}]} {
    %c0 = arith.constant 0 : index
    %c0_0 = arith.constant 0 : index
    %0 = vector.load %arg2[%c0, %c0_0] : memref<16x16xf32, #tpu.memory_space<vmem>>, vector<16x16xf32>
    %c0_1 = arith.constant 0 : index
    %c0_2 = arith.constant 0 : index
    %1 = vector.load %arg3[%c0_1, %c0_2] : memref<16x16xf32, #tpu.memory_space<vmem>>, vector<16x16xf32>
    %2 = arith.addf %0, %1 : vector<16x16xf32>
    %cst = arith.constant dense<0.000000e+00> : vector<16xf32>
    %3 = vector.multi_reduction <add>, %2, %cst [1] : vector<16x16xf32> to vector<16xf32>
    %4 = vector.shape_cast %3 : vector<16xf32> to vector<16x1xf32>
    %cst_3 = arith.constant 9.99999974E-5 : f32
    %5 = vector.broadcast %cst_3 : f32 to vector<16x1xf32>
    %6 = arith.addf %4, %5 : vector<16x1xf32>
    %7 = vector.broadcast %6 : vector<16x1xf32> to vector<16x16xf32>
    %8 = arith.divf %2, %7 : vector<16x16xf32>
    %c0_4 = arith.constant 0 : index
    %c0_5 = arith.constant 0 : index
    %9 = vector.load %arg4[%c0_4, %c0_5] : memref<16x10xf32, #tpu.memory_space<vmem>>, vector<16x10xf32>
    %c0_6 = arith.constant 0 : index
    %c0_7 = arith.constant 0 : index
    %10 = vector.load %arg5[%c0_6, %c0_7] : memref<10x16xf32, #tpu.memory_space<vmem>>, vector<10x16xf32>
    %cst_8 = arith.constant dense<0.000000e+00> : vector<16x16xf32>
    %11 = tpu.matmul %9, %10, %cst_8 {dimension_numbers = #tpu.dot_dimension_numbers<[1], [0], [0], [1], [0, 0, 1, 1], [], []>} : vector<16x10xf32>, vector<10x16xf32>, vector<16x16xf32> -> vector<16x16xf32>
    %cst_9 = arith.constant 0.000000e+00 : f32
    %12 = vector.broadcast %cst_9 : f32 to vector<16x16xf32>
    %13 = arith.maximumf %11, %12 : vector<16x16xf32>
    %cst_10 = arith.constant dense<0xFF800000> : vector<16xf32>
    %14 = vector.multi_reduction <maximumf>, %13, %cst_10 [1] : vector<16x16xf32> to vector<16xf32>
    %15 = vector.shape_cast %14 : vector<16xf32> to vector<16x1xf32>
    %16 = vector.broadcast %15 : vector<16x1xf32> to vector<16x16xf32>
    %17 = arith.subf %13, %16 : vector<16x16xf32>
    %18 = math.exp %17 : vector<16x16xf32>
    %cst_11 = arith.constant dense<0.000000e+00> : vector<16xf32>
    %19 = vector.multi_reduction <add>, %18, %cst_11 [1] : vector<16x16xf32> to vector<16xf32>
    %20 = vector.shape_cast %19 : vector<16xf32> to vector<16x1xf32>
    %21 = vector.broadcast %20 : vector<16x1xf32> to vector<16x16xf32>
    %22 = arith.divf %18, %21 : vector<16x16xf32>
    %23 = arith.truncf %8 : vector<16x16xf32> to vector<16x16xbf16>
    %24 = arith.truncf %22 : vector<16x16xf32> to vector<16x16xbf16>
    %c0_12 = arith.constant 0 : index
    %c0_13 = arith.constant 0 : index
    %c0_14 = arith.constant 0 : index
    %25 = vector.load %arg1[%c0_12, %c0_13, %c0_14] : memref<1x192x1xf32, #tpu.memory_space<vmem>>, vector<1x192x1xf32>
    %26 = vector.shape_cast %25 : vector<1x192x1xf32> to vector<192x1xf32>
    %c0_15 = arith.constant 0 : index
    %c0_16 = arith.constant 0 : index
    %27 = vector.load %arg6[%c0_15, %c0_16] : memref<1x32xf32, #tpu.memory_space<vmem>>, vector<1x32xf32>
    %28 = vector.broadcast %26 : vector<192x1xf32> to vector<192x32xf32>
    %29 = vector.broadcast %27 : vector<1x32xf32> to vector<192x32xf32>
    %30 = arith.mulf %28, %29 : vector<192x32xf32>
    %c0_17 = arith.constant 0 : index
    %c0_18 = arith.constant 0 : index
    %31 = vector.load %arg7[%c0_17, %c0_18] : memref<1x32xf32, #tpu.memory_space<vmem>>, vector<1x32xf32>
    %32 = vector.broadcast %31 : vector<1x32xf32> to vector<192x32xf32>
    %33 = arith.addf %30, %32 : vector<192x32xf32>
    %cst_19 = arith.constant 0.000000e+00 : f32
    %34 = vector.broadcast %cst_19 : f32 to vector<192x32xf32>
    %35 = arith.maximumf %33, %34 : vector<192x32xf32>
    %36 = vector.extract_strided_slice %35 {offsets = [0, 0], sizes = [128, 32], strides = [1, 1]} : vector<192x32xf32> to vector<128x32xf32>
    %37 = vector.extract_strided_slice %35 {offsets = [16, 0], sizes = [128, 32], strides = [1, 1]} : vector<192x32xf32> to vector<128x32xf32>
    %38 = arith.addf %36, %37 : vector<128x32xf32>
    %39 = vector.extract_strided_slice %35 {offsets = [32, 0], sizes = [128, 32], strides = [1, 1]} : vector<192x32xf32> to vector<128x32xf32>
    %40 = arith.addf %38, %39 : vector<128x32xf32>
    %41 = vector.extract_strided_slice %35 {offsets = [48, 0], sizes = [128, 32], strides = [1, 1]} : vector<192x32xf32> to vector<128x32xf32>
    %42 = arith.addf %40, %41 : vector<128x32xf32>
    %43 = vector.extract_strided_slice %35 {offsets = [64, 0], sizes = [128, 32], strides = [1, 1]} : vector<192x32xf32> to vector<128x32xf32>
    %44 = arith.addf %42, %43 : vector<128x32xf32>
    %cst_20 = arith.constant 2.000000e-01 : f32
    %45 = vector.broadcast %cst_20 : f32 to vector<128x32xf32>
    %46 = arith.mulf %44, %45 : vector<128x32xf32>
    %47 = vector.shape_cast %46 : vector<128x32xf32> to vector<8x16x32xf32>
    %48 = arith.truncf %47 : vector<8x16x32xf32> to vector<8x16x32xbf16>
    %49 = vector.shape_cast %23 : vector<16x16xbf16> to vector<1x16x16xbf16>
    %50 = vector.broadcast %49 : vector<1x16x16xbf16> to vector<8x16x16xbf16>
    %51 = vector.shape_cast %24 : vector<16x16xbf16> to vector<1x16x16xbf16>
    %52 = vector.broadcast %51 : vector<1x16x16xbf16> to vector<8x16x16xbf16>
    %cst_21 = arith.constant dense<0.000000e+00> : vector<8x16x32xf32>
    %53 = tpu.matmul %50, %48, %cst_21 {dimension_numbers = #tpu.dot_dimension_numbers<[2], [1], [1], [2], [0, 0, 0, 1, 1, 2], [0], [0]>} : vector<8x16x16xbf16>, vector<8x16x32xbf16>, vector<8x16x32xf32> -> vector<8x16x32xf32>
    %cst_22 = arith.constant 0.000000e+00 : f32
    %54 = vector.broadcast %cst_22 : f32 to vector<8x16x32xf32>
    %55 = arith.maximumf %53, %54 : vector<8x16x32xf32>
    %56 = vector.shape_cast %55 : vector<8x16x32xf32> to vector<128x32xf32>
    %cst_23 = arith.constant dense<0.000000e+00> : vector<8x16x32xf32>
    %57 = tpu.matmul %52, %48, %cst_23 {dimension_numbers = #tpu.dot_dimension_numbers<[2], [1], [1], [2], [0, 0, 0, 1, 1, 2], [0], [0]>} : vector<8x16x16xbf16>, vector<8x16x32xbf16>, vector<8x16x32xf32> -> vector<8x16x32xf32>
    %cst_24 = arith.constant 0.000000e+00 : f32
    %58 = vector.broadcast %cst_24 : f32 to vector<8x16x32xf32>
    %59 = arith.maximumf %57, %58 : vector<8x16x32xf32>
    %60 = vector.shape_cast %59 : vector<8x16x32xf32> to vector<128x32xf32>
    %c0_25 = arith.constant 0 : index
    %c0_26 = arith.constant 0 : index
    %61 = vector.load %arg8[%c0_25, %c0_26] : memref<64x32xbf16, #tpu.memory_space<vmem>>, vector<32x32xbf16>
    %62 = arith.truncf %56 : vector<128x32xf32> to vector<128x32xbf16>
    %cst_27 = arith.constant dense<0.000000e+00> : vector<128x32xf32>
    %63 = tpu.matmul %62, %61, %cst_27 {dimension_numbers = #tpu.dot_dimension_numbers<[1], [0], [0], [1], [0, 0, 1, 1], [], []>} : vector<128x32xbf16>, vector<32x32xbf16>, vector<128x32xf32> -> vector<128x32xf32>
    %c32 = arith.constant 32 : index
    %c0_28 = arith.constant 0 : index
    %64 = vector.load %arg8[%c32, %c0_28] : memref<64x32xbf16, #tpu.memory_space<vmem>>, vector<32x32xbf16>
    %65 = arith.truncf %60 : vector<128x32xf32> to vector<128x32xbf16>
    %cst_29 = arith.constant dense<0.000000e+00> : vector<128x32xf32>
    %66 = tpu.matmul %65, %64, %cst_29 {dimension_numbers = #tpu.dot_dimension_numbers<[1], [0], [0], [1], [0, 0, 1, 1], [], []>} : vector<128x32xbf16>, vector<32x32xbf16>, vector<128x32xf32> -> vector<128x32xf32>
    %67 = arith.addf %63, %66 : vector<128x32xf32>
    %c0_30 = arith.constant 0 : index
    %c0_31 = arith.constant 0 : index
    %68 = vector.load %arg9[%c0_30, %c0_31] : memref<1x32xf32, #tpu.memory_space<vmem>>, vector<1x32xf32>
    %69 = vector.broadcast %68 : vector<1x32xf32> to vector<128x32xf32>
    %70 = arith.addf %67, %69 : vector<128x32xf32>
    %cst_32 = arith.constant 0.000000e+00 : f32
    %71 = vector.broadcast %cst_32 : f32 to vector<128x32xf32>
    %72 = arith.maximumf %70, %71 : vector<128x32xf32>
    %73 = vector.extract_strided_slice %72 {offsets = [0, 0], sizes = [64, 32], strides = [1, 1]} : vector<128x32xf32> to vector<64x32xf32>
    %74 = vector.extract_strided_slice %72 {offsets = [16, 0], sizes = [64, 32], strides = [1, 1]} : vector<128x32xf32> to vector<64x32xf32>
    %75 = arith.addf %73, %74 : vector<64x32xf32>
    %76 = vector.extract_strided_slice %72 {offsets = [32, 0], sizes = [64, 32], strides = [1, 1]} : vector<128x32xf32> to vector<64x32xf32>
    %77 = arith.addf %75, %76 : vector<64x32xf32>
    %78 = vector.extract_strided_slice %72 {offsets = [48, 0], sizes = [64, 32], strides = [1, 1]} : vector<128x32xf32> to vector<64x32xf32>
    %79 = arith.addf %77, %78 : vector<64x32xf32>
    %80 = vector.extract_strided_slice %72 {offsets = [64, 0], sizes = [64, 32], strides = [1, 1]} : vector<128x32xf32> to vector<64x32xf32>
    %81 = arith.addf %79, %80 : vector<64x32xf32>
    %cst_33 = arith.constant 2.000000e-01 : f32
    %82 = vector.broadcast %cst_33 : f32 to vector<64x32xf32>
    %83 = arith.mulf %81, %82 : vector<64x32xf32>
    %84 = vector.shape_cast %83 : vector<64x32xf32> to vector<4x16x32xf32>
    %85 = arith.truncf %84 : vector<4x16x32xf32> to vector<4x16x32xbf16>
    %86 = vector.shape_cast %23 : vector<16x16xbf16> to vector<1x16x16xbf16>
    %87 = vector.broadcast %86 : vector<1x16x16xbf16> to vector<4x16x16xbf16>
    %88 = vector.shape_cast %24 : vector<16x16xbf16> to vector<1x16x16xbf16>
    %89 = vector.broadcast %88 : vector<1x16x16xbf16> to vector<4x16x16xbf16>
    %cst_34 = arith.constant dense<0.000000e+00> : vector<4x16x32xf32>
    %90 = tpu.matmul %87, %85, %cst_34 {dimension_numbers = #tpu.dot_dimension_numbers<[2], [1], [1], [2], [0, 0, 0, 1, 1, 2], [0], [0]>} : vector<4x16x16xbf16>, vector<4x16x32xbf16>, vector<4x16x32xf32> -> vector<4x16x32xf32>
    %cst_35 = arith.constant 0.000000e+00 : f32
    %91 = vector.broadcast %cst_35 : f32 to vector<4x16x32xf32>
    %92 = arith.maximumf %90, %91 : vector<4x16x32xf32>
    %93 = vector.shape_cast %92 : vector<4x16x32xf32> to vector<64x32xf32>
    %cst_36 = arith.constant dense<0.000000e+00> : vector<4x16x32xf32>
    %94 = tpu.matmul %89, %85, %cst_36 {dimension_numbers = #tpu.dot_dimension_numbers<[2], [1], [1], [2], [0, 0, 0, 1, 1, 2], [0], [0]>} : vector<4x16x16xbf16>, vector<4x16x32xbf16>, vector<4x16x32xf32> -> vector<4x16x32xf32>
    %cst_37 = arith.constant 0.000000e+00 : f32
    %95 = vector.broadcast %cst_37 : f32 to vector<4x16x32xf32>
    %96 = arith.maximumf %94, %95 : vector<4x16x32xf32>
    %97 = vector.shape_cast %96 : vector<4x16x32xf32> to vector<64x32xf32>
    %c0_38 = arith.constant 0 : index
    %c0_39 = arith.constant 0 : index
    %98 = vector.load %arg10[%c0_38, %c0_39] : memref<64x32xbf16, #tpu.memory_space<vmem>>, vector<32x32xbf16>
    %99 = arith.truncf %93 : vector<64x32xf32> to vector<64x32xbf16>
    %cst_40 = arith.constant dense<0.000000e+00> : vector<64x32xf32>
    %100 = tpu.matmul %99, %98, %cst_40 {dimension_numbers = #tpu.dot_dimension_numbers<[1], [0], [0], [1], [0, 0, 1, 1], [], []>} : vector<64x32xbf16>, vector<32x32xbf16>, vector<64x32xf32> -> vector<64x32xf32>
    %c32_41 = arith.constant 32 : index
    %c0_42 = arith.constant 0 : index
    %101 = vector.load %arg10[%c32_41, %c0_42] : memref<64x32xbf16, #tpu.memory_space<vmem>>, vector<32x32xbf16>
    %102 = arith.truncf %97 : vector<64x32xf32> to vector<64x32xbf16>
    %cst_43 = arith.constant dense<0.000000e+00> : vector<64x32xf32>
    %103 = tpu.matmul %102, %101, %cst_43 {dimension_numbers = #tpu.dot_dimension_numbers<[1], [0], [0], [1], [0, 0, 1, 1], [], []>} : vector<64x32xbf16>, vector<32x32xbf16>, vector<64x32xf32> -> vector<64x32xf32>
    %104 = arith.addf %100, %103 : vector<64x32xf32>
    %c0_44 = arith.constant 0 : index
    %c0_45 = arith.constant 0 : index
    %105 = vector.load %arg11[%c0_44, %c0_45] : memref<1x32xf32, #tpu.memory_space<vmem>>, vector<1x32xf32>
    %106 = vector.broadcast %105 : vector<1x32xf32> to vector<64x32xf32>
    %107 = arith.addf %104, %106 : vector<64x32xf32>
    %cst_46 = arith.constant 0.000000e+00 : f32
    %108 = vector.broadcast %cst_46 : f32 to vector<64x32xf32>
    %109 = arith.maximumf %107, %108 : vector<64x32xf32>
    %110 = vector.extract_strided_slice %109 {offsets = [0, 0], sizes = [16, 32], strides = [1, 1]} : vector<64x32xf32> to vector<16x32xf32>
    %111 = vector.extract_strided_slice %109 {offsets = [16, 0], sizes = [16, 32], strides = [1, 1]} : vector<64x32xf32> to vector<16x32xf32>
    %112 = arith.addf %110, %111 : vector<16x32xf32>
    %113 = vector.extract_strided_slice %109 {offsets = [32, 0], sizes = [16, 32], strides = [1, 1]} : vector<64x32xf32> to vector<16x32xf32>
    %114 = arith.addf %112, %113 : vector<16x32xf32>
    %115 = vector.extract_strided_slice %109 {offsets = [48, 0], sizes = [16, 32], strides = [1, 1]} : vector<64x32xf32> to vector<16x32xf32>
    %116 = arith.addf %114, %115 : vector<16x32xf32>
    %cst_47 = arith.constant 2.500000e-01 : f32
    %117 = vector.broadcast %cst_47 : f32 to vector<16x32xf32>
    %118 = arith.mulf %116, %117 : vector<16x32xf32>
    %119 = vector.shape_cast %118 : vector<16x32xf32> to vector<1x16x32xf32>
    %120 = arith.truncf %119 : vector<1x16x32xf32> to vector<1x16x32xbf16>
    %121 = vector.shape_cast %23 : vector<16x16xbf16> to vector<1x16x16xbf16>
    %122 = vector.shape_cast %24 : vector<16x16xbf16> to vector<1x16x16xbf16>
    %cst_48 = arith.constant dense<0.000000e+00> : vector<1x16x32xf32>
    %123 = tpu.matmul %121, %120, %cst_48 {dimension_numbers = #tpu.dot_dimension_numbers<[2], [1], [1], [2], [0, 0, 0, 1, 1, 2], [0], [0]>} : vector<1x16x16xbf16>, vector<1x16x32xbf16>, vector<1x16x32xf32> -> vector<1x16x32xf32>
    %cst_49 = arith.constant 0.000000e+00 : f32
    %124 = vector.broadcast %cst_49 : f32 to vector<1x16x32xf32>
    %125 = arith.maximumf %123, %124 : vector<1x16x32xf32>
    %126 = vector.shape_cast %125 : vector<1x16x32xf32> to vector<16x32xf32>
    %cst_50 = arith.constant dense<0.000000e+00> : vector<1x16x32xf32>
    %127 = tpu.matmul %122, %120, %cst_50 {dimension_numbers = #tpu.dot_dimension_numbers<[2], [1], [1], [2], [0, 0, 0, 1, 1, 2], [0], [0]>} : vector<1x16x16xbf16>, vector<1x16x32xbf16>, vector<1x16x32xf32> -> vector<1x16x32xf32>
    %cst_51 = arith.constant 0.000000e+00 : f32
    %128 = vector.broadcast %cst_51 : f32 to vector<1x16x32xf32>
    %129 = arith.maximumf %127, %128 : vector<1x16x32xf32>
    %130 = vector.shape_cast %129 : vector<1x16x32xf32> to vector<16x32xf32>
    %131 = vector.extract_strided_slice %56 {offsets = [112, 0], sizes = [16, 32], strides = [1, 1]} : vector<128x32xf32> to vector<16x32xf32>
    %132 = vector.extract_strided_slice %60 {offsets = [112, 0], sizes = [16, 32], strides = [1, 1]} : vector<128x32xf32> to vector<16x32xf32>
    %133 = vector.extract_strided_slice %93 {offsets = [48, 0], sizes = [16, 32], strides = [1, 1]} : vector<64x32xf32> to vector<16x32xf32>
    %134 = vector.extract_strided_slice %97 {offsets = [48, 0], sizes = [16, 32], strides = [1, 1]} : vector<64x32xf32> to vector<16x32xf32>
    %c0_52 = arith.constant 0 : index
    %c0_53 = arith.constant 0 : index
    %135 = vector.load %arg12[%c0_52, %c0_53] : memref<64x256xbf16, #tpu.memory_space<vmem>>, vector<32x256xbf16>
    %136 = arith.truncf %131 : vector<16x32xf32> to vector<16x32xbf16>
    %cst_54 = arith.constant dense<0.000000e+00> : vector<16x256xf32>
    %137 = tpu.matmul %136, %135, %cst_54 {dimension_numbers = #tpu.dot_dimension_numbers<[1], [0], [0], [1], [0, 0, 1, 1], [], []>} : vector<16x32xbf16>, vector<32x256xbf16>, vector<16x256xf32> -> vector<16x256xf32>
    %c32_55 = arith.constant 32 : index
    %c0_56 = arith.constant 0 : index
    %138 = vector.load %arg12[%c32_55, %c0_56] : memref<64x256xbf16, #tpu.memory_space<vmem>>, vector<32x256xbf16>
    %139 = arith.truncf %132 : vector<16x32xf32> to vector<16x32xbf16>
    %cst_57 = arith.constant dense<0.000000e+00> : vector<16x256xf32>
    %140 = tpu.matmul %139, %138, %cst_57 {dimension_numbers = #tpu.dot_dimension_numbers<[1], [0], [0], [1], [0, 0, 1, 1], [], []>} : vector<16x32xbf16>, vector<32x256xbf16>, vector<16x256xf32> -> vector<16x256xf32>
    %141 = arith.addf %137, %140 : vector<16x256xf32>
    %c0_58 = arith.constant 0 : index
    %c0_59 = arith.constant 0 : index
    %142 = vector.load %arg13[%c0_58, %c0_59] : memref<1x256xf32, #tpu.memory_space<vmem>>, vector<1x256xf32>
    %143 = vector.broadcast %142 : vector<1x256xf32> to vector<16x256xf32>
    %144 = arith.addf %141, %143 : vector<16x256xf32>
    %c0_60 = arith.constant 0 : index
    %c0_61 = arith.constant 0 : index
    %145 = vector.load %arg14[%c0_60, %c0_61] : memref<64x256xbf16, #tpu.memory_space<vmem>>, vector<32x256xbf16>
    %146 = arith.truncf %133 : vector<16x32xf32> to vector<16x32xbf16>
    %cst_62 = arith.constant dense<0.000000e+00> : vector<16x256xf32>
    %147 = tpu.matmul %146, %145, %cst_62 {dimension_numbers = #tpu.dot_dimension_numbers<[1], [0], [0], [1], [0, 0, 1, 1], [], []>} : vector<16x32xbf16>, vector<32x256xbf16>, vector<16x256xf32> -> vector<16x256xf32>
    %148 = arith.addf %144, %147 : vector<16x256xf32>
    %c32_63 = arith.constant 32 : index
    %c0_64 = arith.constant 0 : index
    %149 = vector.load %arg14[%c32_63, %c0_64] : memref<64x256xbf16, #tpu.memory_space<vmem>>, vector<32x256xbf16>
    %150 = arith.truncf %134 : vector<16x32xf32> to vector<16x32xbf16>
    %cst_65 = arith.constant dense<0.000000e+00> : vector<16x256xf32>
    %151 = tpu.matmul %150, %149, %cst_65 {dimension_numbers = #tpu.dot_dimension_numbers<[1], [0], [0], [1], [0, 0, 1, 1], [], []>} : vector<16x32xbf16>, vector<32x256xbf16>, vector<16x256xf32> -> vector<16x256xf32>
    %152 = arith.addf %148, %151 : vector<16x256xf32>
    %c0_66 = arith.constant 0 : index
    %c0_67 = arith.constant 0 : index
    %153 = vector.load %arg15[%c0_66, %c0_67] : memref<1x256xf32, #tpu.memory_space<vmem>>, vector<1x256xf32>
    %154 = vector.broadcast %153 : vector<1x256xf32> to vector<16x256xf32>
    %155 = arith.addf %152, %154 : vector<16x256xf32>
    %c0_68 = arith.constant 0 : index
    %c0_69 = arith.constant 0 : index
    %156 = vector.load %arg16[%c0_68, %c0_69] : memref<64x256xbf16, #tpu.memory_space<vmem>>, vector<32x256xbf16>
    %157 = arith.truncf %126 : vector<16x32xf32> to vector<16x32xbf16>
    %cst_70 = arith.constant dense<0.000000e+00> : vector<16x256xf32>
    %158 = tpu.matmul %157, %156, %cst_70 {dimension_numbers = #tpu.dot_dimension_numbers<[1], [0], [0], [1], [0, 0, 1, 1], [], []>} : vector<16x32xbf16>, vector<32x256xbf16>, vector<16x256xf32> -> vector<16x256xf32>
    %159 = arith.addf %155, %158 : vector<16x256xf32>
    %c32_71 = arith.constant 32 : index
    %c0_72 = arith.constant 0 : index
    %160 = vector.load %arg16[%c32_71, %c0_72] : memref<64x256xbf16, #tpu.memory_space<vmem>>, vector<32x256xbf16>
    %161 = arith.truncf %130 : vector<16x32xf32> to vector<16x32xbf16>
    %cst_73 = arith.constant dense<0.000000e+00> : vector<16x256xf32>
    %162 = tpu.matmul %161, %160, %cst_73 {dimension_numbers = #tpu.dot_dimension_numbers<[1], [0], [0], [1], [0, 0, 1, 1], [], []>} : vector<16x32xbf16>, vector<32x256xbf16>, vector<16x256xf32> -> vector<16x256xf32>
    %163 = arith.addf %159, %162 : vector<16x256xf32>
    %c0_74 = arith.constant 0 : index
    %c0_75 = arith.constant 0 : index
    %164 = vector.load %arg17[%c0_74, %c0_75] : memref<1x256xf32, #tpu.memory_space<vmem>>, vector<1x256xf32>
    %165 = vector.broadcast %164 : vector<1x256xf32> to vector<16x256xf32>
    %166 = arith.addf %163, %165 : vector<16x256xf32>
    %cst_76 = arith.constant 0.000000e+00 : f32
    %167 = vector.broadcast %cst_76 : f32 to vector<16x256xf32>
    %168 = arith.maximumf %166, %167 : vector<16x256xf32>
    %c0_77 = arith.constant 0 : index
    %c0_78 = arith.constant 0 : index
    %169 = vector.load %arg18[%c0_77, %c0_78] : memref<256x512xbf16, #tpu.memory_space<vmem>>, vector<256x512xbf16>
    %170 = arith.truncf %168 : vector<16x256xf32> to vector<16x256xbf16>
    %cst_79 = arith.constant dense<0.000000e+00> : vector<16x512xf32>
    %171 = tpu.matmul %170, %169, %cst_79 {dimension_numbers = #tpu.dot_dimension_numbers<[1], [0], [0], [1], [0, 0, 1, 1], [], []>} : vector<16x256xbf16>, vector<256x512xbf16>, vector<16x512xf32> -> vector<16x512xf32>
    %c0_80 = arith.constant 0 : index
    %c0_81 = arith.constant 0 : index
    %172 = vector.load %arg19[%c0_80, %c0_81] : memref<1x512xf32, #tpu.memory_space<vmem>>, vector<1x512xf32>
    %173 = vector.broadcast %172 : vector<1x512xf32> to vector<16x512xf32>
    %174 = arith.addf %171, %173 : vector<16x512xf32>
    %cst_82 = arith.constant 0.000000e+00 : f32
    %175 = vector.broadcast %cst_82 : f32 to vector<16x512xf32>
    %176 = arith.maximumf %174, %175 : vector<16x512xf32>
    %c0_83 = arith.constant 0 : index
    %c0_84 = arith.constant 0 : index
    %177 = vector.load %arg20[%c0_83, %c0_84] : memref<512x12xbf16, #tpu.memory_space<vmem>>, vector<512x12xbf16>
    %178 = arith.truncf %176 : vector<16x512xf32> to vector<16x512xbf16>
    %cst_85 = arith.constant dense<0.000000e+00> : vector<16x12xf32>
    %179 = tpu.matmul %178, %177, %cst_85 {dimension_numbers = #tpu.dot_dimension_numbers<[1], [0], [0], [1], [0, 0, 1, 1], [], []>} : vector<16x512xbf16>, vector<512x12xbf16>, vector<16x12xf32> -> vector<16x12xf32>
    %c0_86 = arith.constant 0 : index
    %c0_87 = arith.constant 0 : index
    %180 = vector.load %arg21[%c0_86, %c0_87] : memref<1x12xf32, #tpu.memory_space<vmem>>, vector<1x12xf32>
    %181 = vector.broadcast %180 : vector<1x12xf32> to vector<16x12xf32>
    %182 = arith.addf %179, %181 : vector<16x12xf32>
    %c0_88 = arith.constant 0 : index
    %c0_89 = arith.constant 0 : index
    %c0_90 = arith.constant 0 : index
    %183 = vector.load %arg22[%c0_88, %c0_89, %c0_90] : memref<1x16x12xf32, #tpu.memory_space<vmem>>, vector<1x16x12xf32>
    %184 = vector.shape_cast %183 : vector<1x16x12xf32> to vector<16x12xf32>
    %185 = vector.shape_cast %182 : vector<16x12xf32> to vector<1x16x12xf32>
    tpu.vector_store %arg22[%c0_88, %c0_89, %c0_90], %185 {strides = array<i32>} : memref<1x16x12xf32, #tpu.memory_space<vmem>>, vector<1x16x12xf32>,
    return
  }
  func.func @transform_0(%arg0: i32) -> (i32, i32, i32) {
    %c0_i32 = arith.constant 0 : i32
    %c0_i32_0 = arith.constant 0 : i32
    %c0_i32_1 = arith.constant 0 : i32
    return %arg0, %c0_i32, %c0_i32_0 : i32, i32, i32
  }
  func.func @transform_1(%arg0: i32) -> (i32, i32) {
    %c0_i32 = arith.constant 0 : i32
    %c0_i32_0 = arith.constant 0 : i32
    %c0_i32_1 = arith.constant 0 : i32
    return %c0_i32, %c0_i32_0 : i32, i32
  }
  func.func @transform_2(%arg0: i32) -> (i32, i32) {
    %c0_i32 = arith.constant 0 : i32
    %c0_i32_0 = arith.constant 0 : i32
    %c0_i32_1 = arith.constant 0 : i32
    return %c0_i32, %c0_i32_0 : i32, i32
  }
  func.func @transform_3(%arg0: i32) -> (i32, i32) {
    %c0_i32 = arith.constant 0 : i32
    %c0_i32_0 = arith.constant 0 : i32
    %c0_i32_1 = arith.constant 0 : i32
    return %c0_i32, %c0_i32_0 : i32, i32
  }
  func.func @transform_4(%arg0: i32) -> (i32, i32) {
    %c0_i32 = arith.constant 0 : i32
    %c0_i32_0 = arith.constant 0 : i32
    %c0_i32_1 = arith.constant 0 : i32
    return %c0_i32, %c0_i32_0 : i32, i32
  }
  func.func @transform_5(%arg0: i32) -> (i32, i32) {
    %c0_i32 = arith.constant 0 : i32
    %c0_i32_0 = arith.constant 0 : i32
    %c0_i32_1 = arith.constant 0 : i32
    return %c0_i32, %c0_i32_0 : i32, i32
  }
  func.func @transform_6(%arg0: i32) -> (i32, i32) {
    %c0_i32 = arith.constant 0 : i32
    %c0_i32_0 = arith.constant 0 : i32
    %c0_i32_1 = arith.constant 0 : i32
    return %c0_i32, %c0_i32_0 : i32, i32
  }
  func.func @transform_7(%arg0: i32) -> (i32, i32) {
    %c0_i32 = arith.constant 0 : i32
    %c0_i32_0 = arith.constant 0 : i32
    %c0_i32_1 = arith.constant 0 : i32
    return %c0_i32, %c0_i32_0 : i32, i32
  }
  func.func @transform_8(%arg0: i32) -> (i32, i32) {
    %c0_i32 = arith.constant 0 : i32
    %c0_i32_0 = arith.constant 0 : i32
    %c0_i32_1 = arith.constant 0 : i32
    return %c0_i32, %c0_i32_0 : i32, i32
  }
  func.func @transform_9(%arg0: i32) -> (i32, i32) {
    %c0_i32 = arith.constant 0 : i32
    %c0_i32_0 = arith.constant 0 : i32
    %c0_i32_1 = arith.constant 0 : i32
    return %c0_i32, %c0_i32_0 : i32, i32
  }
  func.func @transform_10(%arg0: i32) -> (i32, i32) {
    %c0_i32 = arith.constant 0 : i32
    %c0_i32_0 = arith.constant 0 : i32
    %c0_i32_1 = arith.constant 0 : i32
    return %c0_i32, %c0_i32_0 : i32, i32
  }
  func.func @transform_11(%arg0: i32) -> (i32, i32) {
    %c0_i32 = arith.constant 0 : i32
    %c0_i32_0 = arith.constant 0 : i32
    %c0_i32_1 = arith.constant 0 : i32
    return %c0_i32, %c0_i32_0 : i32, i32
  }
  func.func @transform_12(%arg0: i32) -> (i32, i32) {
    %c0_i32 = arith.constant 0 : i32
    %c0_i32_0 = arith.constant 0 : i32
    %c0_i32_1 = arith.constant 0 : i32
    return %c0_i32, %c0_i32_0 : i32, i32
  }
  func.func @transform_13(%arg0: i32) -> (i32, i32) {
    %c0_i32 = arith.constant 0 : i32
    %c0_i32_0 = arith.constant 0 : i32
    %c0_i32_1 = arith.constant 0 : i32
    return %c0_i32, %c0_i32_0 : i32, i32
  }
  func.func @transform_14(%arg0: i32) -> (i32, i32) {
    %c0_i32 = arith.constant 0 : i32
    %c0_i32_0 = arith.constant 0 : i32
    %c0_i32_1 = arith.constant 0 : i32
    return %c0_i32, %c0_i32_0 : i32, i32
  }
  func.func @transform_15(%arg0: i32) -> (i32, i32) {
    %c0_i32 = arith.constant 0 : i32
    %c0_i32_0 = arith.constant 0 : i32
    %c0_i32_1 = arith.constant 0 : i32
    return %c0_i32, %c0_i32_0 : i32, i32
  }
  func.func @transform_16(%arg0: i32) -> (i32, i32) {
    %c0_i32 = arith.constant 0 : i32
    %c0_i32_0 = arith.constant 0 : i32
    %c0_i32_1 = arith.constant 0 : i32
    return %c0_i32, %c0_i32_0 : i32, i32
  }
  func.func @transform_17(%arg0: i32) -> (i32, i32) {
    %c0_i32 = arith.constant 0 : i32
    %c0_i32_0 = arith.constant 0 : i32
    %c0_i32_1 = arith.constant 0 : i32
    return %c0_i32, %c0_i32_0 : i32, i32
  }
  func.func @transform_18(%arg0: i32) -> (i32, i32) {
    %c0_i32 = arith.constant 0 : i32
    %c0_i32_0 = arith.constant 0 : i32
    %c0_i32_1 = arith.constant 0 : i32
    return %c0_i32, %c0_i32_0 : i32, i32
  }
  func.func @transform_19(%arg0: i32) -> (i32, i32) {
    %c0_i32 = arith.constant 0 : i32
    %c0_i32_0 = arith.constant 0 : i32
    %c0_i32_1 = arith.constant 0 : i32
    return %c0_i32, %c0_i32_0 : i32, i32
  }
  func.func @transform_20(%arg0: i32) -> (i32, i32) {
    %c0_i32 = arith.constant 0 : i32
    %c0_i32_0 = arith.constant 0 : i32
    %c0_i32_1 = arith.constant 0 : i32
    return %c0_i32, %c0_i32_0 : i32, i32
  }
  func.func @transform_21(%arg0: i32) -> (i32, i32, i32) {
    %c0_i32 = arith.constant 0 : i32
    %c0_i32_0 = arith.constant 0 : i32
    %c0_i32_1 = arith.constant 0 : i32
    return %arg0, %c0_i32, %c0_i32_0 : i32, i32, i32
  }
}

</mosaic_0001>

<llo_original>
// kernel: cldgcn_forward.1
$region0: #{cldgcn_forward.1}
  #allocation0 [shape = 'u32[]', space=smem, size = 0x4, offset = 0x4, fixed_abs, tag = 'smem constant byte address 0x4 - core index']
  #allocation1 [shape = 'u32[144,128]{1,0:T(1,128)}', space=vmem, size = 0x12000, scoped, tag = 'internal scratch']
  %s0 = inlined_call_operand.vmem [shape: f32[2,192,1], index: 0, kind: input, shape index: {}]
  %s1 = inlined_call_operand.vmem [shape: f32[16,16], index: 1, kind: input, shape index: {}]
  %s2 = inlined_call_operand.vmem [shape: f32[16,16], index: 2, kind: input, shape index: {}]
  %s3 = inlined_call_operand.vmem [shape: f32[16,10], index: 3, kind: input, shape index: {}]
  %s4 = inlined_call_operand.vmem [shape: f32[10,16], index: 4, kind: input, shape index: {}]
  %s5 = inlined_call_operand.vmem [shape: f32[1,32], index: 5, kind: input, shape index: {}]
  %s6 = inlined_call_operand.vmem [shape: f32[1,32], index: 6, kind: input, shape index: {}]
  %s7 = inlined_call_operand.vmem [shape: bf16[64,32], index: 7, kind: input, shape index: {}]
  %s8 = inlined_call_operand.vmem [shape: f32[1,32], index: 8, kind: input, shape index: {}]
  %s9 = inlined_call_operand.vmem [shape: bf16[64,32], index: 9, kind: input, shape index: {}]
  %s10 = inlined_call_operand.vmem [shape: f32[1,32], index: 10, kind: input, shape index: {}]
  %s11 = inlined_call_operand.vmem [shape: bf16[64,256], index: 11, kind: input, shape index: {}]
  %s12 = inlined_call_operand.vmem [shape: f32[1,256], index: 12, kind: input, shape index: {}]
  %s13 = inlined_call_operand.vmem [shape: bf16[64,256], index: 13, kind: input, shape index: {}]
  %s14 = inlined_call_operand.vmem [shape: f32[1,256], index: 14, kind: input, shape index: {}]
  %s15 = inlined_call_operand.vmem [shape: bf16[64,256], index: 15, kind: input, shape index: {}]
  %s16 = inlined_call_operand.vmem [shape: f32[1,256], index: 16, kind: input, shape index: {}]
  %s17 = inlined_call_operand.vmem [shape: bf16[256,512], index: 17, kind: input, shape index: {}]
  %s18 = inlined_call_operand.vmem [shape: f32[1,512], index: 18, kind: input, shape index: {}]
  %s19 = inlined_call_operand.vmem [shape: bf16[512,12], index: 19, kind: input, shape index: {}]
  %s20 = inlined_call_operand.vmem [shape: f32[1,12], index: 20, kind: input, shape index: {}]
  %s21 = inlined_call_operand.vmem [shape: f32[2,16,12], index: 21, kind: output, shape index: {}]
  %s22 = sld [smem:[#allocation0]]
  $region117: #{cldgcn_forward.1} parent=0
    _
  %s24 = ssub.s32 1, %s22
  %s25 = scalar_select 0, %s24, %s22
  loop: start=0, step=1, limit=4
  $region2: #{cldgcn_forward.1} parent=0 // loop_pre_header
    _
  $region3: #{cldgcn_forward.1} parent=0 // loop_header
    %s27 = sphi 0, %s31
    %p28 = scmp.ge.s32.totalorder %s27, 4
    %s37 = sphi 0, %s39
    %s40 = sphi 0, %s37
    %s41 = sphi 0, %s40
    %s57 = sphi 0, %s41
    %s61 = sphi 0, %s61
    %s63 = sphi 0, %s61
    %s64 = sphi 0, %s63
    %s78 = sphi 0, %s64
    %s82 = sphi 0, %s82
    %s84 = sphi 0, %s82
    %s85 = sphi 0, %s84
    %s99 = sphi 0, %s85
    %s103 = sphi 0, %s103
    %s105 = sphi 0, %s103
    %s106 = sphi 0, %s105
    %s120 = sphi 0, %s106
    %s124 = sphi 0, %s124
    %s126 = sphi 0, %s124
    %s127 = sphi 0, %s126
    %s141 = sphi 0, %s127
    %s145 = sphi 0, %s145
    %s147 = sphi 0, %s145
    %s148 = sphi 0, %s147
    %s162 = sphi 0, %s148
    %s166 = sphi 0, %s166
    %s168 = sphi 0, %s166
    %s169 = sphi 0, %s168
    %s183 = sphi 0, %s169
    %s187 = sphi 0, %s187
    %s189 = sphi 0, %s187
    %s190 = sphi 0, %s189
    %s204 = sphi 0, %s190
    %s208 = sphi 0, %s208
    %s210 = sphi 0, %s208
    %s211 = sphi 0, %s210
    %s225 = sphi 0, %s211
    %s229 = sphi 0, %s229
    %s231 = sphi 0, %s229
    %s232 = sphi 0, %s231
    %s246 = sphi 0, %s232
    %s250 = sphi 0, %s250
    %s252 = sphi 0, %s250
    %s253 = sphi 0, %s252
    %s267 = sphi 0, %s253
    %s271 = sphi 0, %s271
    %s273 = sphi 0, %s271
    %s274 = sphi 0, %s273
    %s288 = sphi 0, %s274
    %s292 = sphi 0, %s292
    %s294 = sphi 0, %s292
    %s295 = sphi 0, %s294
    %s309 = sphi 0, %s295
    %s313 = sphi 0, %s313
    %s315 = sphi 0, %s313
    %s316 = sphi 0, %s315
    %s330 = sphi 0, %s316
    %s334 = sphi 0, %s334
    %s336 = sphi 0, %s334
    %s337 = sphi 0, %s336
    %s351 = sphi 0, %s337
    %s355 = sphi 0, %s355
    %s357 = sphi 0, %s355
    %s358 = sphi 0, %s357
    %s372 = sphi 0, %s358
    %s376 = sphi 0, %s376
    %s378 = sphi 0, %s376
    %s379 = sphi 0, %s378
    %s393 = sphi 0, %s379
    %s397 = sphi 0, %s397
    %s399 = sphi 0, %s397
    %s400 = sphi 0, %s399
    %s414 = sphi 0, %s400
    %s418 = sphi 0, %s418
    %s420 = sphi 0, %s418
    %s421 = sphi 0, %s420
    %s435 = sphi 0, %s421
    %s439 = sphi 0, %s439
    %s441 = sphi 0, %s439
    %s442 = sphi 0, %s441
    %s456 = sphi 0, %s442
    %s460 = sphi 0, %s460
    %s462 = sphi 0, %s460
    %s463 = sphi 0, %s462
    %s477 = sphi 0, %s463
    %s483 = sphi 0, %s485
    %s486 = sphi 0, %s483
    %s487 = sphi 0, %s486
    %s503 = sphi 0, %s487
  $region4: #{cldgcn_forward.1} parent=0 // loop_header_branch
    %30 = sbr.rel (%p28) target = $region8
  $region5: #{cldgcn_forward.1} parent=0 // loop_body
    %s32 = ssub.s32 %s27, 1
    %s33 = ssub.s32 %s27, 2
    %s34 = sadd.s32 %s27, 1
    %s35 = ssub.s32 %s27, %s34
    %p36 = scmp.eq.s32.totalorder %s35, 0
    %s38 = sadd.s32 %s37, 1
    %s39 = scalar_select %p36, %s37, %s38
    %p42 = pneg %p36
    %p43 = scmp.eq.s32.totalorder %s27, 1
    %p44 = por %p42, %p43
    %p45 = scmp.ne.s32.totalorder %s37, %s40
    %p46 = scmp.eq.s32.totalorder %s27, 0
    %p47 = por %p45, %p46
    %p48 = scmp.ne.s32.totalorder %s37, %s40
    %p49 = scmp.eq.s32.totalorder %s32, 1
    %p50 = por %p48, %p49
    %p51 = scmp.ne.s32.totalorder %s40, %s41
    %p52 = scmp.eq.s32.totalorder %s32, 0
    %p53 = por %p51, %p52
    %p54 = scmp.ne.s32.totalorder %s40, %s41
    %p55 = scmp.eq.s32.totalorder %s33, 1
    %p56 = por %p54, %p55
    %p58 = scmp.ne.s32.totalorder %s41, %s57
    %p59 = scmp.eq.s32.totalorder %s33, 0
    %p60 = por %p58, %p59
    %s62 = sadd.s32 %s61, 1
    %p65 = scmp.eq.s32.totalorder %s27, 1
    %p66 = scmp.ne.s32.totalorder %s61, %s63
    %p67 = scmp.eq.s32.totalorder %s27, 0
    %p68 = por %p66, %p67
    %p69 = scmp.ne.s32.totalorder %s61, %s63
    %p70 = scmp.eq.s32.totalorder %s32, 1
    %p71 = por %p69, %p70
    %p72 = scmp.ne.s32.totalorder %s63, %s64
    %p73 = scmp.eq.s32.totalorder %s32, 0
    %p74 = por %p72, %p73
    %p75 = scmp.ne.s32.totalorder %s63, %s64
    %p76 = scmp.eq.s32.totalorder %s33, 1
    %p77 = por %p75, %p76
    %p79 = scmp.ne.s32.totalorder %s64, %s78
    %p80 = scmp.eq.s32.totalorder %s33, 0
    %p81 = por %p79, %p80
    %s83 = sadd.s32 %s82, 1
    %p86 = scmp.eq.s32.totalorder %s27, 1
    %p87 = scmp.ne.s32.totalorder %s82, %s84
    %p88 = scmp.eq.s32.totalorder %s27, 0
    %p89 = por %p87, %p88
    %p90 = scmp.ne.s32.totalorder %s82, %s84
    %p91 = scmp.eq.s32.totalorder %s32, 1
    %p92 = por %p90, %p91
    %p93 = scmp.ne.s32.totalorder %s84, %s85
    %p94 = scmp.eq.s32.totalorder %s32, 0
    %p95 = por %p93, %p94
    %p96 = scmp.ne.s32.totalorder %s84, %s85
    %p97 = scmp.eq.s32.totalorder %s33, 1
    %p98 = por %p96, %p97
    %p100 = scmp.ne.s32.totalorder %s85, %s99
    %p101 = scmp.eq.s32.totalorder %s33, 0
    %p102 = por %p100, %p101
    %s104 = sadd.s32 %s103, 1
    %p107 = scmp.eq.s32.totalorder %s27, 1
    %p108 = scmp.ne.s32.totalorder %s103, %s105
    %p109 = scmp.eq.s32.totalorder %s27, 0
    %p110 = por %p108, %p109
    %p111 = scmp.ne.s32.totalorder %s103, %s105
    %p112 = scmp.eq.s32.totalorder %s32, 1
    %p113 = por %p111, %p112
    %p114 = scmp.ne.s32.totalorder %s105, %s106
    %p115 = scmp.eq.s32.totalorder %s32, 0
    %p116 = por %p114, %p115
    %p117 = scmp.ne.s32.totalorder %s105, %s106
    %p118 = scmp.eq.s32.totalorder %s33, 1
    %p119 = por %p117, %p118
    %p121 = scmp.ne.s32.totalorder %s106, %s120
    %p122 = scmp.eq.s32.totalorder %s33, 0
    %p123 = por %p121, %p122
    %s125 = sadd.s32 %s124, 1
    %p128 = scmp.eq.s32.totalorder %s27, 1
    %p129 = scmp.ne.s32.totalorder %s124, %s126
    %p130 = scmp.eq.s32.totalorder %s27, 0
    %p131 = por %p129, %p130
    %p132 = scmp.ne.s32.totalorder %s124, %s126
    %p133 = scmp.eq.s32.totalorder %s32, 1
    %p134 = por %p132, %p133
    %p135 = scmp.ne.s32.totalorder %s126, %s127
    %p136 = scmp.eq.s32.totalorder %s32, 0
    %p137 = por %p135, %p136
    %p138 = scmp.ne.s32.totalorder %s126, %s127
    %p139 = scmp.eq.s32.totalorder %s33, 1
    %p140 = por %p138, %p139
    %p142 = scmp.ne.s32.totalorder %s127, %s141
    %p143 = scmp.eq.s32.totalorder %s33, 0
    %p144 = por %p142, %p143
    %s146 = sadd.s32 %s145, 1
    %p149 = scmp.eq.s32.totalorder %s27, 1
    %p150 = scmp.ne.s32.totalorder %s145, %s147
    %p151 = scmp.eq.s32.totalorder %s27, 0
    %p152 = por %p150, %p151
    %p153 = scmp.ne.s32.totalorder %s145, %s147
    %p154 = scmp.eq.s32.totalorder %s32, 1
    %p155 = por %p153, %p154
    %p156 = scmp.ne.s32.totalorder %s147, %s148
    %p157 = scmp.eq.s32.totalorder %s32, 0
    %p158 = por %p156, %p157
    %p159 = scmp.ne.s32.totalorder %s147, %s148
    %p160 = scmp.eq.s32.totalorder %s33, 1
    %p161 = por %p159, %p160
    %p163 = scmp.ne.s32.totalorder %s148, %s162
    %p164 = scmp.eq.s32.totalorder %s33, 0
    %p165 = por %p163, %p164
    %s167 = sadd.s32 %s166, 1
    %p170 = scmp.eq.s32.totalorder %s27, 1
    %p171 = scmp.ne.s32.totalorder %s166, %s168
    %p172 = scmp.eq.s32.totalorder %s27, 0
    %p173 = por %p171, %p172
    %p174 = scmp.ne.s32.totalorder %s166, %s168
    %p175 = scmp.eq.s32.totalorder %s32, 1
    %p176 = por %p174, %p175
    %p177 = scmp.ne.s32.totalorder %s168, %s169
    %p178 = scmp.eq.s32.totalorder %s32, 0
    %p179 = por %p177, %p178
    %p180 = scmp.ne.s32.totalorder %s168, %s169
    %p181 = scmp.eq.s32.totalorder %s33, 1
    %p182 = por %p180, %p181
    %p184 = scmp.ne.s32.totalorder %s169, %s183
    %p185 = scmp.eq.s32.totalorder %s33, 0
    %p186 = por %p184, %p185
    %s188 = sadd.s32 %s187, 1
    %p191 = scmp.eq.s32.totalorder %s27, 1
    %p192 = scmp.ne.s32.totalorder %s187, %s189
    %p193 = scmp.eq.s32.totalorder %s27, 0
    %p194 = por %p192, %p193
    %p195 = scmp.ne.s32.totalorder %s187, %s189
    %p196 = scmp.eq.s32.totalorder %s32, 1
    %p197 = por %p195, %p196
    %p198 = scmp.ne.s32.totalorder %s189, %s190
    %p199 = scmp.eq.s32.totalorder %s32, 0
    %p200 = por %p198, %p199
    %p201 = scmp.ne.s32.totalorder %s189, %s190
    %p202 = scmp.eq.s32.totalorder %s33, 1
    %p203 = por %p201, %p202
    %p205 = scmp.ne.s32.totalorder %s190, %s204
    %p206 = scmp.eq.s32.totalorder %s33, 0
    %p207 = por %p205, %p206
    %s209 = sadd.s32 %s208, 1
    %p212 = scmp.eq.s32.totalorder %s27, 1
    %p213 = scmp.ne.s32.totalorder %s208, %s210
    %p214 = scmp.eq.s32.totalorder %s27, 0
    %p215 = por %p213, %p214
    %p216 = scmp.ne.s32.totalorder %s208, %s210
    %p217 = scmp.eq.s32.totalorder %s32, 1
    %p218 = por %p216, %p217
    %p219 = scmp.ne.s32.totalorder %s210, %s211
    %p220 = scmp.eq.s32.totalorder %s32, 0
    %p221 = por %p219, %p220
    %p222 = scmp.ne.s32.totalorder %s210, %s211
    %p223 = scmp.eq.s32.totalorder %s33, 1
    %p224 = por %p222, %p223
    %p226 = scmp.ne.s32.totalorder %s211, %s225
    %p227 = scmp.eq.s32.totalorder %s33, 0
    %p228 = por %p226, %p227
    %s230 = sadd.s32 %s229, 1
    %p233 = scmp.eq.s32.totalorder %s27, 1
    %p234 = scmp.ne.s32.totalorder %s229, %s231
    %p235 = scmp.eq.s32.totalorder %s27, 0
    %p236 = por %p234, %p235
    %p237 = scmp.ne.s32.totalorder %s229, %s231
    %p238 = scmp.eq.s32.totalorder %s32, 1
    %p239 = por %p237, %p238
    %p240 = scmp.ne.s32.totalorder %s231, %s232
    %p241 = scmp.eq.s32.totalorder %s32, 0
    %p242 = por %p240, %p241
    %p243 = scmp.ne.s32.totalorder %s231, %s232
    %p244 = scmp.eq.s32.totalorder %s33, 1
    %p245 = por %p243, %p244
    %p247 = scmp.ne.s32.totalorder %s232, %s246
    %p248 = scmp.eq.s32.totalorder %s33, 0
    %p249 = por %p247, %p248
    %s251 = sadd.s32 %s250, 1
    %p254 = scmp.eq.s32.totalorder %s27, 1
    %p255 = scmp.ne.s32.totalorder %s250, %s252
    %p256 = scmp.eq.s32.totalorder %s27, 0
    %p257 = por %p255, %p256
    %p258 = scmp.ne.s32.totalorder %s250, %s252
    %p259 = scmp.eq.s32.totalorder %s32, 1
    %p260 = por %p258, %p259
    %p261 = scmp.ne.s32.totalorder %s252, %s253
    %p262 = scmp.eq.s32.totalorder %s32, 0
    %p263 = por %p261, %p262
    %p264 = scmp.ne.s32.totalorder %s252, %s253
    %p265 = scmp.eq.s32.totalorder %s33, 1
    %p266 = por %p264, %p265
    %p268 = scmp.ne.s32.totalorder %s253, %s267
    %p269 = scmp.eq.s32.totalorder %s33, 0
    %p270 = por %p268, %p269
    %s272 = sadd.s32 %s271, 1
    %p275 = scmp.eq.s32.totalorder %s27, 1
    %p276 = scmp.ne.s32.totalorder %s271, %s273
    %p277 = scmp.eq.s32.totalorder %s27, 0
    %p278 = por %p276, %p277
    %p279 = scmp.ne.s32.totalorder %s271, %s273
    %p280 = scmp.eq.s32.totalorder %s32, 1
    %p281 = por %p279, %p280
    %p282 = scmp.ne.s32.totalorder %s273, %s274
    %p283 = scmp.eq.s32.totalorder %s32, 0
    %p284 = por %p282, %p283
    %p285 = scmp.ne.s32.totalorder %s273, %s274
    %p286 = scmp.eq.s32.totalorder %s33, 1
    %p287 = por %p285, %p286
    %p289 = scmp.ne.s32.totalorder %s274, %s288
    %p290 = scmp.eq.s32.totalorder %s33, 0
    %p291 = por %p289, %p290
    %s293 = sadd.s32 %s292, 1
    %p296 = scmp.eq.s32.totalorder %s27, 1
    %p297 = scmp.ne.s32.totalorder %s292, %s294
    %p298 = scmp.eq.s32.totalorder %s27, 0
    %p299 = por %p297, %p298
    %p300 = scmp.ne.s32.totalorder %s292, %s294
    %p301 = scmp.eq.s32.totalorder %s32, 1
    %p302 = por %p300, %p301
    %p303 = scmp.ne.s32.totalorder %s294, %s295
    %p304 = scmp.eq.s32.totalorder %s32, 0
    %p305 = por %p303, %p304
    %p306 = scmp.ne.s32.totalorder %s294, %s295
    %p307 = scmp.eq.s32.totalorder %s33, 1
    %p308 = por %p306, %p307
    %p310 = scmp.ne.s32.totalorder %s295, %s309
    %p311 = scmp.eq.s32.totalorder %s33, 0
    %p312 = por %p310, %p311
    %s314 = sadd.s32 %s313, 1
    %p317 = scmp.eq.s32.totalorder %s27, 1
    %p318 = scmp.ne.s32.totalorder %s313, %s315
    %p319 = scmp.eq.s32.totalorder %s27, 0
    %p320 = por %p318, %p319
    %p321 = scmp.ne.s32.totalorder %s313, %s315
    %p322 = scmp.eq.s32.totalorder %s32, 1
    %p323 = por %p321, %p322
    %p324 = scmp.ne.s32.totalorder %s315, %s316
    %p325 = scmp.eq.s32.totalorder %s32, 0
    %p326 = por %p324, %p325
    %p327 = scmp.ne.s32.totalorder %s315, %s316
    %p328 = scmp.eq.s32.totalorder %s33, 1
    %p329 = por %p327, %p328
    %p331 = scmp.ne.s32.totalorder %s316, %s330
    %p332 = scmp.eq.s32.totalorder %s33, 0
    %p333 = por %p331, %p332
    %s335 = sadd.s32 %s334, 1
    %p338 = scmp.eq.s32.totalorder %s27, 1
    %p339 = scmp.ne.s32.totalorder %s334, %s336
    %p340 = scmp.eq.s32.totalorder %s27, 0
    %p341 = por %p339, %p340
    %p342 = scmp.ne.s32.totalorder %s334, %s336
    %p343 = scmp.eq.s32.totalorder %s32, 1
    %p344 = por %p342, %p343
    %p345 = scmp.ne.s32.totalorder %s336, %s337
    %p346 = scmp.eq.s32.totalorder %s32, 0
    %p347 = por %p345, %p346
    %p348 = scmp.ne.s32.totalorder %s336, %s337
    %p349 = scmp.eq.s32.totalorder %s33, 1
    %p350 = por %p348, %p349
    %p352 = scmp.ne.s32.totalorder %s337, %s351
    %p353 = scmp.eq.s32.totalorder %s33, 0
    %p354 = por %p352, %p353
    %s356 = sadd.s32 %s355, 1
    %p359 = scmp.eq.s32.totalorder %s27, 1
    %p360 = scmp.ne.s32.totalorder %s355, %s357
    %p361 = scmp.eq.s32.totalorder %s27, 0
    %p362 = por %p360, %p361
    %p363 = scmp.ne.s32.totalorder %s355, %s357
    %p364 = scmp.eq.s32.totalorder %s32, 1
    %p365 = por %p363, %p364
    %p366 = scmp.ne.s32.totalorder %s357, %s358
    %p367 = scmp.eq.s32.totalorder %s32, 0
    %p368 = por %p366, %p367
    %p369 = scmp.ne.s32.totalorder %s357, %s358
    %p370 = scmp.eq.s32.totalorder %s33, 1
    %p371 = por %p369, %p370
    %p373 = scmp.ne.s32.totalorder %s358, %s372
    %p374 = scmp.eq.s32.totalorder %s33, 0
    %p375 = por %p373, %p374
    %s377 = sadd.s32 %s376, 1
    %p380 = scmp.eq.s32.totalorder %s27, 1
    %p381 = scmp.ne.s32.totalorder %s376, %s378
    %p382 = scmp.eq.s32.totalorder %s27, 0
    %p383 = por %p381, %p382
    %p384 = scmp.ne.s32.totalorder %s376, %s378
    %p385 = scmp.eq.s32.totalorder %s32, 1
    %p386 = por %p384, %p385
    %p387 = scmp.ne.s32.totalorder %s378, %s379
    %p388 = scmp.eq.s32.totalorder %s32, 0
    %p389 = por %p387, %p388
    %p390 = scmp.ne.s32.totalorder %s378, %s379
    %p391 = scmp.eq.s32.totalorder %s33, 1
    %p392 = por %p390, %p391
    %p394 = scmp.ne.s32.totalorder %s379, %s393
    %p395 = scmp.eq.s32.totalorder %s33, 0
    %p396 = por %p394, %p395
    %s398 = sadd.s32 %s397, 1
    %p401 = scmp.eq.s32.totalorder %s27, 1
    %p402 = scmp.ne.s32.totalorder %s397, %s399
    %p403 = scmp.eq.s32.totalorder %s27, 0
    %p404 = por %p402, %p403
    %p405 = scmp.ne.s32.totalorder %s397, %s399
    %p406 = scmp.eq.s32.totalorder %s32, 1
    %p407 = por %p405, %p406
    %p408 = scmp.ne.s32.totalorder %s399, %s400
    %p409 = scmp.eq.s32.totalorder %s32, 0
    %p410 = por %p408, %p409
    %p411 = scmp.ne.s32.totalorder %s399, %s400
    %p412 = scmp.eq.s32.totalorder %s33, 1
    %p413 = por %p411, %p412
    %p415 = scmp.ne.s32.totalorder %s400, %s414
    %p416 = scmp.eq.s32.totalorder %s33, 0
    %p417 = por %p415, %p416
    %s419 = sadd.s32 %s418, 1
    %p422 = scmp.eq.s32.totalorder %s27, 1
    %p423 = scmp.ne.s32.totalorder %s418, %s420
    %p424 = scmp.eq.s32.totalorder %s27, 0
    %p425 = por %p423, %p424
    %p426 = scmp.ne.s32.totalorder %s418, %s420
    %p427 = scmp.eq.s32.totalorder %s32, 1
    %p428 = por %p426, %p427
    %p429 = scmp.ne.s32.totalorder %s420, %s421
    %p430 = scmp.eq.s32.totalorder %s32, 0
    %p431 = por %p429, %p430
    %p432 = scmp.ne.s32.totalorder %s420, %s421
    %p433 = scmp.eq.s32.totalorder %s33, 1
    %p434 = por %p432, %p433
    %p436 = scmp.ne.s32.totalorder %s421, %s435
    %p437 = scmp.eq.s32.totalorder %s33, 0
    %p438 = por %p436, %p437
    %s440 = sadd.s32 %s439, 1
    %p443 = scmp.eq.s32.totalorder %s27, 1
    %p444 = scmp.ne.s32.totalorder %s439, %s441
    %p445 = scmp.eq.s32.totalorder %s27, 0
    %p446 = por %p444, %p445
    %p447 = scmp.ne.s32.totalorder %s439, %s441
    %p448 = scmp.eq.s32.totalorder %s32, 1
    %p449 = por %p447, %p448
    %p450 = scmp.ne.s32.totalorder %s441, %s442
    %p451 = scmp.eq.s32.totalorder %s32, 0
    %p452 = por %p450, %p451
    %p453 = scmp.ne.s32.totalorder %s441, %s442
    %p454 = scmp.eq.s32.totalorder %s33, 1
    %p455 = por %p453, %p454
    %p457 = scmp.ne.s32.totalorder %s442, %s456
    %p458 = scmp.eq.s32.totalorder %s33, 0
    %p459 = por %p457, %p458
    %s461 = sadd.s32 %s460, 1
    %p464 = scmp.eq.s32.totalorder %s27, 1
    %p465 = scmp.ne.s32.totalorder %s460, %s462
    %p466 = scmp.eq.s32.totalorder %s27, 0
    %p467 = por %p465, %p466
    %p468 = scmp.ne.s32.totalorder %s460, %s462
    %p469 = scmp.eq.s32.totalorder %s32, 1
    %p470 = por %p468, %p469
    %p471 = scmp.ne.s32.totalorder %s462, %s463
    %p472 = scmp.eq.s32.totalorder %s32, 0
    %p473 = por %p471, %p472
    %p474 = scmp.ne.s32.totalorder %s462, %s463
    %p475 = scmp.eq.s32.totalorder %s33, 1
    %p476 = por %p474, %p475
    %p478 = scmp.ne.s32.totalorder %s463, %s477
    %p479 = scmp.eq.s32.totalorder %s33, 0
    %p480 = por %p478, %p479
    %s481 = ssub.s32 %s27, %s34
    %p482 = scmp.eq.s32.totalorder %s481, 0
    %s484 = sadd.s32 %s483, 1
    %s485 = scalar_select %p482, %s483, %s484
    %p488 = pneg %p482
    %p489 = scmp.eq.s32.totalorder %s27, 1
    %p490 = por %p488, %p489
    %p491 = scmp.ne.s32.totalorder %s483, %s486
    %p492 = scmp.eq.s32.totalorder %s27, 0
    %p493 = por %p491, %p492
    %p494 = scmp.ne.s32.totalorder %s483, %s486
    %p495 = scmp.eq.s32.totalorder %s32, 1
    %p496 = por %p494, %p495
    %p497 = scmp.ne.s32.totalorder %s486, %s487
    %p498 = scmp.eq.s32.totalorder %s32, 0
    %p499 = por %p497, %p498
    %p500 = scmp.ne.s32.totalorder %s486, %s487
    %p501 = scmp.eq.s32.totalorder %s33, 1
    %p502 = por %p500, %p501
    %p504 = scmp.ne.s32.totalorder %s487, %s503
    %p505 = scmp.eq.s32.totalorder %s33, 0
    %p506 = por %p504, %p505
    %p507 = scmp.le.s32.totalorder 1, %s27
    %p508 = scmp.lt.s32.totalorder %s27, 3
    %p509 = pnand %p507, %p508
    %p510 = pneg %p509
    // Predicated region
    $region9: #{cldgcn_forward.1} parent=5 // pred_check
      _
    $region10: #{cldgcn_forward.1} parent=5 // pred_check_branch
      %512 = sbr.rel (%p509) target = $region12
    $region11: #{cldgcn_forward.1} parent=5 // pred_region
      %s513 = ssub.s32 %s27, 1
      // Predicated region
      $region13: #{cldgcn_forward.1} parent=11 // pred_check
        %p514 = pneg %p74
      $region14: #{cldgcn_forward.1} parent=11 // pred_check_branch
        %516 = sbr.rel (%p514) target = $region16
      $region15: #{cldgcn_forward.1} parent=11 // pred_region
        _
      $region16: #{cldgcn_forward.1} parent=11 // pred_fallthru
        _
      // Predicated region
      $region17: #{cldgcn_forward.1} parent=11 // pred_check
        %p517 = pneg %p95
      $region18: #{cldgcn_forward.1} parent=11 // pred_check_branch
        %519 = sbr.rel (%p517) target = $region20
      $region19: #{cldgcn_forward.1} parent=11 // pred_region
        _
      $region20: #{cldgcn_forward.1} parent=11 // pred_fallthru
        _
      // Predicated region
      $region21: #{cldgcn_forward.1} parent=11 // pred_check
        %p520 = pneg %p116
      $region22: #{cldgcn_forward.1} parent=11 // pred_check_branch
        %522 = sbr.rel (%p520) target = $region24
      $region23: #{cldgcn_forward.1} parent=11 // pred_region
        _
      $region24: #{cldgcn_forward.1} parent=11 // pred_fallthru
        _
      // Predicated region
      $region25: #{cldgcn_forward.1} parent=11 // pred_check
        %p523 = pneg %p137
      $region26: #{cldgcn_forward.1} parent=11 // pred_check_branch
        %525 = sbr.rel (%p523) target = $region28
      $region27: #{cldgcn_forward.1} parent=11 // pred_region
        _
      $region28: #{cldgcn_forward.1} parent=11 // pred_fallthru
        _
      // Predicated region
      $region29: #{cldgcn_forward.1} parent=11 // pred_check
        %p526 = pneg %p158
      $region30: #{cldgcn_forward.1} parent=11 // pred_check_branch
        %528 = sbr.rel (%p526) target = $region32
      $region31: #{cldgcn_forward.1} parent=11 // pred_region
        _
      $region32: #{cldgcn_forward.1} parent=11 // pred_fallthru
        _
      // Predicated region
      $region33: #{cldgcn_forward.1} parent=11 // pred_check
        %p529 = pneg %p179
      $region34: #{cldgcn_forward.1} parent=11 // pred_check_branch
        %531 = sbr.rel (%p529) target = $region36
      $region35: #{cldgcn_forward.1} parent=11 // pred_region
        _
      $region36: #{cldgcn_forward.1} parent=11 // pred_fallthru
        _
      // Predicated region
      $region37: #{cldgcn_forward.1} parent=11 // pred_check
        %p532 = pneg %p200
      $region38: #{cldgcn_forward.1} parent=11 // pred_check_branch
        %534 = sbr.rel (%p532) target = $region40
      $region39: #{cldgcn_forward.1} parent=11 // pred_region
        _
      $region40: #{cldgcn_forward.1} parent=11 // pred_fallthru
        _
      // Predicated region
      $region41: #{cldgcn_forward.1} parent=11 // pred_check
        %p535 = pneg %p221
      $region42: #{cldgcn_forward.1} parent=11 // pred_check_branch
        %537 = sbr.rel (%p535) target = $region44
      $region43: #{cldgcn_forward.1} parent=11 // pred_region
        _
      $region44: #{cldgcn_forward.1} parent=11 // pred_fallthru
        _
      // Predicated region
      $region45: #{cldgcn_forward.1} parent=11 // pred_check
        %p538 = pneg %p242
      $region46: #{cldgcn_forward.1} parent=11 // pred_check_branch
        %540 = sbr.rel (%p538) target = $region48
      $region47: #{cldgcn_forward.1} parent=11 // pred_region
        _
      $region48: #{cldgcn_forward.1} parent=11 // pred_fallthru
        _
      // Predicated region
      $region49: #{cldgcn_forward.1} parent=11 // pred_check
        %p541 = pneg %p263
      $region50: #{cldgcn_forward.1} parent=11 // pred_check_branch
        %543 = sbr.rel (%p541) target = $region52
      $region51: #{cldgcn_forward.1} parent=11 // pred_region
        _
      $region52: #{cldgcn_forward.1} parent=11 // pred_fallthru
        _
      // Predicated region
      $region53: #{cldgcn_forward.1} parent=11 // pred_check
        %p544 = pneg %p284
      $region54: #{cldgcn_forward.1} parent=11 // pred_check_branch
        %546 = sbr.rel (%p544) target = $region56
      $region55: #{cldgcn_forward.1} parent=11 // pred_region
        _
      $region56: #{cldgcn_forward.1} parent=11 // pred_fallthru
        _
      // Predicated region
      $region57: #{cldgcn_forward.1} parent=11 // pred_check
        %p547 = pneg %p305
      $region58: #{cldgcn_forward.1} parent=11 // pred_check_branch
        %549 = sbr.rel (%p547) target = $region60
      $region59: #{cldgcn_forward.1} parent=11 // pred_region
        _
      $region60: #{cldgcn_forward.1} parent=11 // pred_fallthru
        _
      // Predicated region
      $region61: #{cldgcn_forward.1} parent=11 // pred_check
        %p550 = pneg %p326
      $region62: #{cldgcn_forward.1} parent=11 // pred_check_branch
        %552 = sbr.rel (%p550) target = $region64
      $region63: #{cldgcn_forward.1} parent=11 // pred_region
        _
      $region64: #{cldgcn_forward.1} parent=11 // pred_fallthru
        _
      // Predicated region
      $region65: #{cldgcn_forward.1} parent=11 // pred_check
        %p553 = pneg %p347
      $region66: #{cldgcn_forward.1} parent=11 // pred_check_branch
        %555 = sbr.rel (%p553) target = $region68
      $region67: #{cldgcn_forward.1} parent=11 // pred_region
        _
      $region68: #{cldgcn_forward.1} parent=11 // pred_fallthru
        _
      // Predicated region
      $region69: #{cldgcn_forward.1} parent=11 // pred_check
        %p556 = pneg %p368
      $region70: #{cldgcn_forward.1} parent=11 // pred_check_branch
        %558 = sbr.rel (%p556) target = $region72
      $region71: #{cldgcn_forward.1} parent=11 // pred_region
        _
      $region72: #{cldgcn_forward.1} parent=11 // pred_fallthru
        _
      // Predicated region
      $region73: #{cldgcn_forward.1} parent=11 // pred_check
        %p559 = pneg %p389
      $region74: #{cldgcn_forward.1} parent=11 // pred_check_branch
        %561 = sbr.rel (%p559) target = $region76
      $region75: #{cldgcn_forward.1} parent=11 // pred_region
        _
      $region76: #{cldgcn_forward.1} parent=11 // pred_fallthru
        _
      // Predicated region
      $region77: #{cldgcn_forward.1} parent=11 // pred_check
        %p562 = pneg %p410
      $region78: #{cldgcn_forward.1} parent=11 // pred_check_branch
        %564 = sbr.rel (%p562) target = $region80
      $region79: #{cldgcn_forward.1} parent=11 // pred_region
        _
      $region80: #{cldgcn_forward.1} parent=11 // pred_fallthru
        _
      // Predicated region
      $region81: #{cldgcn_forward.1} parent=11 // pred_check
        %p565 = pneg %p431
      $region82: #{cldgcn_forward.1} parent=11 // pred_check_branch
        %567 = sbr.rel (%p565) target = $region84
      $region83: #{cldgcn_forward.1} parent=11 // pred_region
        _
      $region84: #{cldgcn_forward.1} parent=11 // pred_fallthru
        _
      // Predicated region
      $region85: #{cldgcn_forward.1} parent=11 // pred_check
        %p568 = pneg %p452
      $region86: #{cldgcn_forward.1} parent=11 // pred_check_branch
        %570 = sbr.rel (%p568) target = $region88
      $region87: #{cldgcn_forward.1} parent=11 // pred_region
        _
      $region88: #{cldgcn_forward.1} parent=11 // pred_fallthru
        _
      // Predicated region
      $region89: #{cldgcn_forward.1} parent=11 // pred_check
        %p571 = pneg %p473
      $region90: #{cldgcn_forward.1} parent=11 // pred_check_branch
        %573 = sbr.rel (%p571) target = $region92
      $region91: #{cldgcn_forward.1} parent=11 // pred_region
        _
      $region92: #{cldgcn_forward.1} parent=11 // pred_fallthru
        _
    $region12: #{cldgcn_forward.1} parent=5 // pred_fallthru
      _
    %p574 = scmp.lt.s32.totalorder %s27, 2
    // Predicated region
    $region93: #{cldgcn_forward.1} parent=5 // pred_check
      %p575 = pneg %p574
    $region94: #{cldgcn_forward.1} parent=5 // pred_check_branch
      %577 = sbr.rel (%p575) target = $region96
    $region95: #{cldgcn_forward.1} parent=5 // pred_region
      // Predicated region
      $region97: #{cldgcn_forward.1} parent=95 // pred_check
        %p578 = pneg %p47
      $region98: #{cldgcn_forward.1} parent=95 // pred_check_branch
        %580 = sbr.rel (%p578) target = $region100
      $region99: #{cldgcn_forward.1} parent=95 // pred_region
        %p581 = scmp.lt.s32.totalorder %s27, 1
        %s582 = scalar_select %p581, %s27, 1
        %s583 = smul.addr %s582, 24
        %s584 = smul.addr %s583, 8
        %s585 = scalar_lea.vmem %s0, %s584
      $region100: #{cldgcn_forward.1} parent=95 // pred_fallthru
        _
    $region96: #{cldgcn_forward.1} parent=5 // pred_fallthru
      _
    %p586 = scmp.le.s32.totalorder 1, %s27
    %p587 = scmp.lt.s32.totalorder %s27, 3
    %p588 = pnand %p586, %p587
    %p589 = pneg %p588
    // Predicated region
    $region101: #{cldgcn_forward.1} parent=5 // pred_check
      _
    $region102: #{cldgcn_forward.1} parent=5 // pred_check_branch
      %591 = sbr.rel (%p588) target = $region104
    $region103: #{cldgcn_forward.1} parent=5 // pred_region
      %s592 = ssub.s32 %s27, 1
      %p593 = scmp.lt.s32.totalorder %s32, 1
      %s594 = scalar_select %p593, %s32, 1
      %s595 = smul.addr %s594, 24
      %s596 = smul.addr %s595, 8
      %s597 = scalar_lea.vmem %s0, %s596
      %p598 = pneg %p53
      %p599 = pneg %p50
      %p600 = pneg %p74
      %p601 = pneg %p71
      %p602 = pneg %p95
      %p603 = pneg %p92
      %p604 = pneg %p116
      %p605 = pneg %p113
      %p606 = pneg %p137
      %p607 = pneg %p134
      %p608 = pneg %p158
      %p609 = pneg %p155
      %p610 = pneg %p179
      %p611 = pneg %p176
      %p612 = pneg %p200
      %p613 = pneg %p197
      %p614 = pneg %p221
      %p615 = pneg %p218
      %p616 = pneg %p242
      %p617 = pneg %p239
      %p618 = pneg %p263
      %p619 = pneg %p260
      %p620 = pneg %p284
      %p621 = pneg %p281
      %p622 = pneg %p305
      %p623 = pneg %p302
      %p624 = pneg %p326
      %p625 = pneg %p323
      %p626 = pneg %p347
      %p627 = pneg %p344
      %p628 = pneg %p368
      %p629 = pneg %p365
      %p630 = pneg %p389
      %p631 = pneg %p386
      %p632 = pneg %p410
      %p633 = pneg %p407
      %p634 = pneg %p431
      %p635 = pneg %p428
      %p636 = pneg %p452
      %p637 = pneg %p449
      %p638 = pneg %p473
      %p639 = pneg %p470
      %p640 = pneg %p499
      %p641 = pneg %p496
      %p642 = scmp.lt.s32.totalorder %s32, 1
      %s643 = scalar_select %p642, %s32, 1
      %s644 = smul.addr %s643, 2
      %s645 = smul.addr %s644, 8
      %s646 = scalar_lea.vmem %s21, %s645
      %p647 = scmp.lt.s32.totalorder %s32, 1
      %s648 = scalar_select %p647, %s32, 1
      %s649 = smul.addr %s648, 24
      %s650 = smul.addr %s649, 8
      %s651 = scalar_lea.vmem %s0, %s650
      %p652 = scmp.lt.s32.totalorder %s32, 1
      %s653 = scalar_select %p652, %s32, 1
      %s654 = smul.addr %s653, 2
      %s655 = smul.addr %s654, 8
      %s656 = scalar_lea.vmem %s21, %s655
      %v658 = vld [vmem:[%s1] sm:$0xff]
      %v659 = vld [vmem:[%s1 + $0x8] sm:$0xff]
      %v660 = vld [vmem:[%s2] sm:$0xff]
      %v661 = vld [vmem:[%s2 + $0x8] sm:$0xff]
      %v662 = vadd.f32 %v658, %v660
      %v663 = vadd.f32 %v659, %v661
      %vm664 = vcmask 130048
      %v665 = vsel %vm664, %v662, 0.0
      %666 = vadd.xlane.f32.xlu0 %v665
      %v667 = vpop.xlane.xlu0 %666
      %v668 = vsel %vm664, %v663, 0.0
      %669 = vadd.xlane.f32.xlu0 %v668
      %v670 = vpop.xlane.xlu0 %669
      %v671 = vadd.f32 %v667, 0.0001
      %v672 = vadd.f32 %v670, 0.0001
      %v673 = vrcp.pop %v671
      %v674 = vmul.f32 %v662, %v673
      %v675 = vrcp.pop %v672
      %v676 = vmul.f32 %v663, %v675
      %v677 = vld [vmem:[%s3] sm:$0xff]
      %v678 = vld [vmem:[%s3 + $0x8] sm:$0xff]
      %v679 = vld [vmem:[%s4] sm:$0xff]
      %v680 = vld [vmem:[%s4 + $0x8] sm:$0x3]
      %vm681 = vcmask 80896
      %v683 = vsel %vm681, %v677, 0
      %v686 = vsel %vm681, %v678, 0
      %vm688 = vcmask 1041408
      %v690 = vsel %vm688, %v680, 0
      %692 = vmatprep.subr.mxu0 0.0
      %693 = vmatpush1.msra.mxu0 0.0
      %694 = vmatprep.subr.mxu0 0.0
      %695 = vmatpush1.msra.mxu0 0.0
      %696 = vmatprep.subr.mxu0 0.0
      %697 = vmatpush1.msra.mxu0 0.0
      %698 = vmatprep.subr.mxu0 0.0
      %699 = vmatpush1.msra.mxu0 0.0
      %700 = vmatprep.subr.mxu0 0.0
      %701 = vmatpush1.msra.mxu0 0.0
      %702 = vmatprep.subr.mxu0 0.0
      %703 = vmatpush1.msra.mxu0 0.0
      %704 = vmatprep.subr.mxu0 0.0
      %705 = vmatpush1.msra.mxu0 0.0
      %706 = vmatprep.subr.mxu0 0.0
      %707 = vmatpush1.msra.mxu0 0.0
      %708 = vmatprep.subr.mxu0 0.0
      %709 = vmatpush1.msra.mxu0 0.0
      %710 = vmatprep.subr.mxu0 0.0
      %711 = vmatpush1.msra.mxu0 0.0
      %712 = vmatprep.subr.mxu0 0.0
      %713 = vmatpush1.msra.mxu0 0.0
      %714 = vmatprep.subr.mxu0 0.0
      %715 = vmatpush1.msra.mxu0 0.0
      %716 = vmatprep.subr.mxu0 0.0
      %717 = vmatpush1.msra.mxu0 0.0
      %718 = vmatprep.subr.mxu0 0.0
      %719 = vmatpush1.msra.mxu0 0.0
      %720 = vmatprep.subr.mxu0 0.0
      %721 = vmatpush1.msra.mxu0 %v690
      %722 = vmatprep.subr.mxu0 0.0
      %723 = vmatpush1.msra.mxu0 %v679
      %724 = vmatprep.subr.mxu0 0.0
      %725 = vmatpush2.msra.mxu0 0.0
      %726 = vmatprep.subr.mxu0 0.0
      %727 = vmatpush2.msra.mxu0 0.0
      %728 = vmatprep.subr.mxu0 0.0
      %729 = vmatpush2.msra.mxu0 0.0
      %730 = vmatprep.subr.mxu0 0.0
      %731 = vmatpush2.msra.mxu0 0.0
      %732 = vmatprep.subr.mxu0 0.0
      %733 = vmatpush2.msra.mxu0 0.0
      %734 = vmatprep.subr.mxu0 0.0
      %735 = vmatpush2.msra.mxu0 0.0
      %736 = vmatprep.subr.mxu0 0.0
      %737 = vmatpush2.msra.mxu0 0.0
      %738 = vmatprep.subr.mxu0 0.0
      %739 = vmatpush2.msra.mxu0 0.0
      %740 = vmatprep.subr.mxu0 0.0
      %741 = vmatpush2.msra.mxu0 0.0
      %742 = vmatprep.subr.mxu0 0.0
      %743 = vmatpush2.msra.mxu0 0.0
      %744 = vmatprep.subr.mxu0 0.0
      %745 = vmatpush2.msra.mxu0 0.0
      %746 = vmatprep.subr.mxu0 0.0
      %747 = vmatpush2.msra.mxu0 0.0
      %748 = vmatprep.subr.mxu0 0.0
      %749 = vmatpush2.msra.mxu0 0.0
      %750 = vmatprep.subr.mxu0 0.0
      %751 = vmatpush2.msra.mxu0 0.0
      %752 = vmatprep.subr.mxu0 0.0
      %753 = vmatpush2.msra.mxu0 0.0
      %754 = vmatprep.subr.mxu0 0.0
      %755 = vmatpush2.msra.mxu0 0.0
      %756 = vmatprep.mubr.f32.mxu0 0.0
      %757 = vmatmul.mubr.f32.gmra.mxu0 %v683
      %v758 = vpop.f32.mrf.mxu0
      %v759 = vadd.f32 0.0, %v758
      %v760 = vpop.f32.mrf.mxu0
      %761 = vmatprep.mubr.f32.mxu0 0.0
      %762 = vmatmul.mubr.f32.gmra.mxu0 %v686
      %v763 = vpop.f32.mrf.mxu0
      %v764 = vadd.f32 0.0, %v763
      %v765 = vpop.f32.mrf.mxu0
      %766 = vdwg.mxu0
      %v767 = vmax.f32 %v759, 0.0
      %v768 = vmax.f32 %v764, 0.0
      %v769 = vsel %vm664, %v767, -inf
      %770 = vmax.xlane.f32.xlu0 %v769
      %v771 = vpop.xlane.xlu0 %770
      %v772 = vsel %vm664, %v768, -inf
      %773 = vmax.xlane.f32.xlu0 %v772
      %v774 = vpop.xlane.xlu0 %773
      %v775 = vsub.f32 %v767, %v771
      %v776 = vsub.f32 %v768, %v774
      %v777 = vmul.f32 %v775, 1.442695
      %v778 = vpow.pop %v777
      %v779 = vmul.f32 %v776, 1.442695
      %v780 = vpow.pop %v779
      %v781 = vsel %vm664, %v778, 0.0
      %782 = vadd.xlane.f32.xlu0 %v781
      %v783 = vpop.xlane.xlu0 %782
      %v784 = vsel %vm664, %v780, 0.0
      %785 = vadd.xlane.f32.xlu0 %v784
      %v786 = vpop.xlane.xlu0 %785
      %v787 = vrcp.pop %v783
      %v788 = vmul.f32 %v778, %v787
      %v789 = vrcp.pop %v786
      %v790 = vmul.f32 %v780, %v789
      %v791 = vpack.c.bf16 %v676, %v674
      %v792 = vpack.c.bf16 %v790, %v788
      %v793 = vld [vmem:[%s651] sm:$0xff]
      %v794 = vld [vmem:[%s651 + $0x8] sm:$0xff]
      %v795 = vld [vmem:[%s651 + $0x10] sm:$0xff]
      %v796 = vld [vmem:[%s651 + $0x18] sm:$0xff]
      %v797 = vld [vmem:[%s651 + $0x20] sm:$0xff]
      %v798 = vld [vmem:[%s651 + $0x28] sm:$0xff]
      %v799 = vld [vmem:[%s651 + $0x30] sm:$0xff]
      %v800 = vld [vmem:[%s651 + $0x38] sm:$0xff]
      %v801 = vld [vmem:[%s651 + $0x40] sm:$0xff]
      %v802 = vld [vmem:[%s651 + $0x48] sm:$0xff]
      %v803 = vld [vmem:[%s651 + $0x50] sm:$0xff]
      %v804 = vld [vmem:[%s651 + $0x58] sm:$0xff]
      %v805 = vld [vmem:[%s651 + $0x60] sm:$0xff]
      %v806 = vld [vmem:[%s651 + $0x68] sm:$0xff]
      %v807 = vld [vmem:[%s651 + $0x70] sm:$0xff]
      %v808 = vld [vmem:[%s651 + $0x78] sm:$0xff]
      %v809 = vld [vmem:[%s651 + $0x80] sm:$0xff]
      %v810 = vld [vmem:[%s651 + $0x88] sm:$0xff]
      %v811 = vld [vmem:[%s651 + $0x90] sm:$0xff]
      %v812 = vld [vmem:[%s651 + $0x98] sm:$0xff]
      %v813 = vld [vmem:[%s651 + $0xa0] sm:$0xff]
      %v814 = vld [vmem:[%s651 + $0xa8] sm:$0xff]
      %v815 = vld [vmem:[%s651 + $0xb0] sm:$0xff]
      %v816 = vld [vmem:[%s651 + $0xb8] sm:$0xff]
      %v817 = vld [vmem:[%s5] sm:$0x1]
      %819 = vset.pattern.permute.xlu0 0
      %820 = vperm.xlu0 %819, %v793
      %v821 = vpop.permute.xlu0 %820
      %824 = vset.pattern.permute.xlu0 0
      %825 = vperm.xlu0 %824, %v794
      %v826 = vpop.permute.xlu0 %825
      %829 = vset.pattern.permute.xlu0 0
      %830 = vperm.xlu0 %829, %v795
      %v831 = vpop.permute.xlu0 %830
      %834 = vset.pattern.permute.xlu0 0
      %835 = vperm.xlu0 %834, %v796
      %v836 = vpop.permute.xlu0 %835
      %839 = vset.pattern.permute.xlu0 0
      %840 = vperm.xlu0 %839, %v797
      %v841 = vpop.permute.xlu0 %840
      %844 = vset.pattern.permute.xlu0 0
      %845 = vperm.xlu0 %844, %v798
      %v846 = vpop.permute.xlu0 %845
      %849 = vset.pattern.permute.xlu0 0
      %850 = vperm.xlu0 %849, %v799
      %v851 = vpop.permute.xlu0 %850
      %854 = vset.pattern.permute.xlu0 0
      %855 = vperm.xlu0 %854, %v800
      %v856 = vpop.permute.xlu0 %855
      %859 = vset.pattern.permute.xlu0 0
      %860 = vperm.xlu0 %859, %v801
      %v861 = vpop.permute.xlu0 %860
      %864 = vset.pattern.permute.xlu0 0
      %865 = vperm.xlu0 %864, %v802
      %v866 = vpop.permute.xlu0 %865
      %869 = vset.pattern.permute.xlu0 0
      %870 = vperm.xlu0 %869, %v803
      %v871 = vpop.permute.xlu0 %870
      %874 = vset.pattern.permute.xlu0 0
      %875 = vperm.xlu0 %874, %v804
      %v876 = vpop.permute.xlu0 %875
      %879 = vset.pattern.permute.xlu0 0
      %880 = vperm.xlu0 %879, %v805
      %v881 = vpop.permute.xlu0 %880
      %884 = vset.pattern.permute.xlu0 0
      %885 = vperm.xlu0 %884, %v806
      %v886 = vpop.permute.xlu0 %885
      %889 = vset.pattern.permute.xlu0 0
      %890 = vperm.xlu0 %889, %v807
      %v891 = vpop.permute.xlu0 %890
      %894 = vset.pattern.permute.xlu0 0
      %895 = vperm.xlu0 %894, %v808
      %v896 = vpop.permute.xlu0 %895
      %899 = vset.pattern.permute.xlu0 0
      %900 = vperm.xlu0 %899, %v809
      %v901 = vpop.permute.xlu0 %900
      %904 = vset.pattern.permute.xlu0 0
      %905 = vperm.xlu0 %904, %v810
      %v906 = vpop.permute.xlu0 %905
      %909 = vset.pattern.permute.xlu0 0
      %910 = vperm.xlu0 %909, %v811
      %v911 = vpop.permute.xlu0 %910
      %914 = vset.pattern.permute.xlu0 0
      %915 = vperm.xlu0 %914, %v812
      %v916 = vpop.permute.xlu0 %915
      %919 = vset.pattern.permute.xlu0 0
      %920 = vperm.xlu0 %919, %v813
      %v921 = vpop.permute.xlu0 %920
      %924 = vset.pattern.permute.xlu0 0
      %925 = vperm.xlu0 %924, %v814
      %v926 = vpop.permute.xlu0 %925
      %929 = vset.pattern.permute.xlu0 0
      %930 = vperm.xlu0 %929, %v815
      %v931 = vpop.permute.xlu0 %930
      %934 = vset.pattern.permute.xlu0 0
      %935 = vperm.xlu0 %934, %v816
      %v936 = vpop.permute.xlu0 %935
      %v939 = vlaneseq
      %v940 = vshrl.u32 %v939, 7
      %v941 = vsub.s32 0, %v940
      %v942 = vrot.slane %v817, %v941
      %v944 = vmul.f32 %v821, %v942
      %v945 = vmul.f32 %v826, %v942
      %v946 = vmul.f32 %v831, %v942
      %v947 = vmul.f32 %v836, %v942
      %v948 = vmul.f32 %v841, %v942
      %v949 = vmul.f32 %v846, %v942
      %v950 = vmul.f32 %v851, %v942
      %v951 = vmul.f32 %v856, %v942
      %v952 = vmul.f32 %v861, %v942
      %v953 = vmul.f32 %v866, %v942
      %v954 = vmul.f32 %v871, %v942
      %v955 = vmul.f32 %v876, %v942
      %v956 = vmul.f32 %v881, %v942
      %v957 = vmul.f32 %v886, %v942
      %v958 = vmul.f32 %v891, %v942
      %v959 = vmul.f32 %v896, %v942
      %v960 = vmul.f32 %v901, %v942
      %v961 = vmul.f32 %v906, %v942
      %v962 = vmul.f32 %v911, %v942
      %v963 = vmul.f32 %v916, %v942
      %v964 = vmul.f32 %v921, %v942
      %v965 = vmul.f32 %v926, %v942
      %v966 = vmul.f32 %v931, %v942
      %v967 = vmul.f32 %v936, %v942
      %v968 = vld [vmem:[%s6] sm:$0x1]
      %v970 = vlaneseq
      %v971 = vshrl.u32 %v970, 7
      %v972 = vsub.s32 0, %v971
      %v973 = vrot.slane %v968, %v972
      %v975 = vadd.f32 %v944, %v973
      %v976 = vadd.f32 %v945, %v973
      %v977 = vadd.f32 %v946, %v973
      %v978 = vadd.f32 %v947, %v973
      %v979 = vadd.f32 %v948, %v973
      %v980 = vadd.f32 %v949, %v973
      %v981 = vadd.f32 %v950, %v973
      %v982 = vadd.f32 %v951, %v973
      %v983 = vadd.f32 %v952, %v973
      %v984 = vadd.f32 %v953, %v973
      %v985 = vadd.f32 %v954, %v973
      %v986 = vadd.f32 %v955, %v973
      %v987 = vadd.f32 %v956, %v973
      %v988 = vadd.f32 %v957, %v973
      %v989 = vadd.f32 %v958, %v973
      %v990 = vadd.f32 %v959, %v973
      %v991 = vadd.f32 %v960, %v973
      %v992 = vadd.f32 %v961, %v973
      %v993 = vadd.f32 %v962, %v973
      %v994 = vadd.f32 %v963, %v973
      %v995 = vadd.f32 %v964, %v973
      %v996 = vadd.f32 %v965, %v973
      %v997 = vadd.f32 %v966, %v973
      %v998 = vadd.f32 %v967, %v973
      %v999 = vmax.f32 %v975, 0.0
      %v1000 = vmax.f32 %v976, 0.0
      %v1001 = vmax.f32 %v977, 0.0
      %v1002 = vmax.f32 %v978, 0.0
      %v1003 = vmax.f32 %v979, 0.0
      %v1004 = vmax.f32 %v980, 0.0
      %v1005 = vmax.f32 %v981, 0.0
      %v1006 = vmax.f32 %v982, 0.0
      %v1007 = vmax.f32 %v983, 0.0
      %v1008 = vmax.f32 %v984, 0.0
      %v1009 = vmax.f32 %v985, 0.0
      %v1010 = vmax.f32 %v986, 0.0
      %v1011 = vmax.f32 %v987, 0.0
      %v1012 = vmax.f32 %v988, 0.0
      %v1013 = vmax.f32 %v989, 0.0
      %v1014 = vmax.f32 %v990, 0.0
      %v1015 = vmax.f32 %v991, 0.0
      %v1016 = vmax.f32 %v992, 0.0
      %v1017 = vmax.f32 %v993, 0.0
      %v1018 = vmax.f32 %v994, 0.0
      %v1019 = vmax.f32 %v995, 0.0
      %v1020 = vmax.f32 %v996, 0.0
      %v1021 = vmax.f32 %v997, 0.0
      %v1022 = vmax.f32 %v998, 0.0
      %v1023 = vadd.f32 %v999, %v1001
      %v1024 = vadd.f32 %v1000, %v1002
      %v1025 = vadd.f32 %v1001, %v1003
      %v1026 = vadd.f32 %v1002, %v1004
      %v1027 = vadd.f32 %v1003, %v1005
      %v1028 = vadd.f32 %v1004, %v1006
      %v1029 = vadd.f32 %v1005, %v1007
      %v1030 = vadd.f32 %v1006, %v1008
      %v1031 = vadd.f32 %v1007, %v1009
      %v1032 = vadd.f32 %v1008, %v1010
      %v1033 = vadd.f32 %v1009, %v1011
      %v1034 = vadd.f32 %v1010, %v1012
      %v1035 = vadd.f32 %v1011, %v1013
      %v1036 = vadd.f32 %v1012, %v1014
      %v1037 = vadd.f32 %v1013, %v1015
      %v1038 = vadd.f32 %v1014, %v1016
      %v1039 = vadd.f32 %v1023, %v1003
      %v1040 = vadd.f32 %v1024, %v1004
      %v1041 = vadd.f32 %v1025, %v1005
      %v1042 = vadd.f32 %v1026, %v1006
      %v1043 = vadd.f32 %v1027, %v1007
      %v1044 = vadd.f32 %v1028, %v1008
      %v1045 = vadd.f32 %v1029, %v1009
      %v1046 = vadd.f32 %v1030, %v1010
      %v1047 = vadd.f32 %v1031, %v1011
      %v1048 = vadd.f32 %v1032, %v1012
      %v1049 = vadd.f32 %v1033, %v1013
      %v1050 = vadd.f32 %v1034, %v1014
      %v1051 = vadd.f32 %v1035, %v1015
      %v1052 = vadd.f32 %v1036, %v1016
      %v1053 = vadd.f32 %v1037, %v1017
      %v1054 = vadd.f32 %v1038, %v1018
      %v1055 = vadd.f32 %v1039, %v1005
      %v1056 = vadd.f32 %v1040, %v1006
      %v1057 = vadd.f32 %v1041, %v1007
      %v1058 = vadd.f32 %v1042, %v1008
      %v1059 = vadd.f32 %v1043, %v1009
      %v1060 = vadd.f32 %v1044, %v1010
      %v1061 = vadd.f32 %v1045, %v1011
      %v1062 = vadd.f32 %v1046, %v1012
      %v1063 = vadd.f32 %v1047, %v1013
      %v1064 = vadd.f32 %v1048, %v1014
      %v1065 = vadd.f32 %v1049, %v1015
      %v1066 = vadd.f32 %v1050, %v1016
      %v1067 = vadd.f32 %v1051, %v1017
      %v1068 = vadd.f32 %v1052, %v1018
      %v1069 = vadd.f32 %v1053, %v1019
      %v1070 = vadd.f32 %v1054, %v1020
      %v1071 = vadd.f32 %v1055, %v1007
      %v1072 = vadd.f32 %v1056, %v1008
      %v1073 = vadd.f32 %v1057, %v1009
      %v1074 = vadd.f32 %v1058, %v1010
      %v1075 = vadd.f32 %v1059, %v1011
      %v1076 = vadd.f32 %v1060, %v1012
      %v1077 = vadd.f32 %v1061, %v1013
      %v1078 = vadd.f32 %v1062, %v1014
      %v1079 = vadd.f32 %v1063, %v1015
      %v1080 = vadd.f32 %v1064, %v1016
      %v1081 = vadd.f32 %v1065, %v1017
      %v1082 = vadd.f32 %v1066, %v1018
      %v1083 = vadd.f32 %v1067, %v1019
      %v1084 = vadd.f32 %v1068, %v1020
      %v1085 = vadd.f32 %v1069, %v1021
      %v1086 = vadd.f32 %v1070, %v1022
      %v1087 = vmul.f32 %v1071, 0.2
      %v1088 = vmul.f32 %v1072, 0.2
      %v1089 = vmul.f32 %v1073, 0.2
      %v1090 = vmul.f32 %v1074, 0.2
      %v1091 = vmul.f32 %v1075, 0.2
      %v1092 = vmul.f32 %v1076, 0.2
      %v1093 = vmul.f32 %v1077, 0.2
      %v1094 = vmul.f32 %v1078, 0.2
      %v1095 = vmul.f32 %v1079, 0.2
      %v1096 = vmul.f32 %v1080, 0.2
      %v1097 = vmul.f32 %v1081, 0.2
      %v1098 = vmul.f32 %v1082, 0.2
      %v1099 = vmul.f32 %v1083, 0.2
      %v1100 = vmul.f32 %v1084, 0.2
      %v1101 = vmul.f32 %v1085, 0.2
      %v1102 = vmul.f32 %v1086, 0.2
      %v1103 = vpack.c.bf16 %v1088, %v1087
      %v1104 = vpack.c.bf16 %v1090, %v1089
      %v1105 = vpack.c.bf16 %v1092, %v1091
      %v1106 = vpack.c.bf16 %v1094, %v1093
      %v1107 = vpack.c.bf16 %v1096, %v1095
      %v1108 = vpack.c.bf16 %v1098, %v1097
      %v1109 = vpack.c.bf16 %v1100, %v1099
      %v1110 = vpack.c.bf16 %v1102, %v1101
      %v1112 = vsel %vm664, %v791, 0
      %1114 = vmatprep.subr.bf16.mxu0 0
      %1115 = vmatpush1.bf16.msra.mxu0 0
      %1116 = vmatprep.subr.bf16.mxu0 0
      %1117 = vmatpush1.bf16.msra.mxu0 0
      %1118 = vmatprep.subr.bf16.mxu0 0
      %1119 = vmatpush1.bf16.msra.mxu0 0
      %1120 = vmatprep.subr.bf16.mxu0 0
      %1121 = vmatpush1.bf16.msra.mxu0 0
      %1122 = vmatprep.subr.bf16.mxu0 0
      %1123 = vmatpush1.bf16.msra.mxu0 0
      %1124 = vmatprep.subr.bf16.mxu0 0
      %1125 = vmatpush1.bf16.msra.mxu0 0
      %1126 = vmatprep.subr.bf16.mxu0 0
      %1127 = vmatpush1.bf16.msra.mxu0 0
      %1128 = vmatprep.subr.bf16.mxu0 0
      %1129 = vmatpush1.bf16.msra.mxu0 %v1103
      %1130 = vmatprep.subr.bf16.mxu0 0
      %1131 = vmatpush2.bf16.msra.mxu0 0
      %1132 = vmatprep.subr.bf16.mxu0 0
      %1133 = vmatpush2.bf16.msra.mxu0 0
      %1134 = vmatprep.subr.bf16.mxu0 0
      %1135 = vmatpush2.bf16.msra.mxu0 0
      %1136 = vmatprep.subr.bf16.mxu0 0
      %1137 = vmatpush2.bf16.msra.mxu0 0
      %1138 = vmatprep.subr.bf16.mxu0 0
      %1139 = vmatpush2.bf16.msra.mxu0 0
      %1140 = vmatprep.subr.bf16.mxu0 0
      %1141 = vmatpush2.bf16.msra.mxu0 0
      %1142 = vmatprep.subr.bf16.mxu0 0
      %1143 = vmatpush2.bf16.msra.mxu0 0
      %1144 = vmatprep.subr.bf16.mxu0 0
      %1145 = vmatpush2.bf16.msra.mxu0 0
      %1146 = vmatprep.mubr.bf16.mxu0 0
      %1147 = vmatmul.mubr.bf16.gmra.mxu0 %v1112
      %v1148 = vpop.f32.mrf.mxu0
      %v1149 = vadd.f32 0.0, %v1148
      %v1150 = vpop.f32.mrf.mxu0
      %v1151 = vpop.f32.mrf.mxu0
      %v1152 = vadd.f32 0.0, %v1151
      %v1153 = vpop.f32.mrf.mxu0
      %1154 = vdwg.mxu0
      %1155 = vmatprep.subr.bf16.mxu0 0
      %1156 = vmatpush1.bf16.msra.mxu0 0
      %1157 = vmatprep.subr.bf16.mxu0 0
      %1158 = vmatpush1.bf16.msra.mxu0 0
      %1159 = vmatprep.subr.bf16.mxu0 0
      %1160 = vmatpush1.bf16.msra.mxu0 0
      %1161 = vmatprep.subr.bf16.mxu0 0
      %1162 = vmatpush1.bf16.msra.mxu0 0
      %1163 = vmatprep.subr.bf16.mxu0 0
      %1164 = vmatpush1.bf16.msra.mxu0 0
      %1165 = vmatprep.subr.bf16.mxu0 0
      %1166 = vmatpush1.bf16.msra.mxu0 0
      %1167 = vmatprep.subr.bf16.mxu0 0
      %1168 = vmatpush1.bf16.msra.mxu0 0
      %1169 = vmatprep.subr.bf16.mxu0 0
      %1170 = vmatpush1.bf16.msra.mxu0 %v1104
      %1171 = vmatprep.subr.bf16.mxu0 0
      %1172 = vmatpush2.bf16.msra.mxu0 0
      %1173 = vmatprep.subr.bf16.mxu0 0
      %1174 = vmatpush2.bf16.msra.mxu0 0
      %1175 = vmatprep.subr.bf16.mxu0 0
      %1176 = vmatpush2.bf16.msra.mxu0 0
      %1177 = vmatprep.subr.bf16.mxu0 0
      %1178 = vmatpush2.bf16.msra.mxu0 0
      %1179 = vmatprep.subr.bf16.mxu0 0
      %1180 = vmatpush2.bf16.msra.mxu0 0
      %1181 = vmatprep.subr.bf16.mxu0 0
      %1182 = vmatpush2.bf16.msra.mxu0 0
      %1183 = vmatprep.subr.bf16.mxu0 0
      %1184 = vmatpush2.bf16.msra.mxu0 0
      %1185 = vmatprep.subr.bf16.mxu0 0
      %1186 = vmatpush2.bf16.msra.mxu0 0
      %1187 = vmatprep.mubr.bf16.mxu0 0
      %1188 = vmatmul.mubr.bf16.gmra.mxu0 %v1112
      %v1189 = vpop.f32.mrf.mxu0
      %v1190 = vadd.f32 0.0, %v1189
      %v1191 = vpop.f32.mrf.mxu0
      %v1192 = vpop.f32.mrf.mxu0
      %v1193 = vadd.f32 0.0, %v1192
      %v1194 = vpop.f32.mrf.mxu0
      %1195 = vdwg.mxu0
      %1196 = vmatprep.subr.bf16.mxu0 0
      %1197 = vmatpush1.bf16.msra.mxu0 0
      %1198 = vmatprep.subr.bf16.mxu0 0
      %1199 = vmatpush1.bf16.msra.mxu0 0
      %1200 = vmatprep.subr.bf16.mxu0 0
      %1201 = vmatpush1.bf16.msra.mxu0 0
      %1202 = vmatprep.subr.bf16.mxu0 0
      %1203 = vmatpush1.bf16.msra.mxu0 0
      %1204 = vmatprep.subr.bf16.mxu0 0
      %1205 = vmatpush1.bf16.msra.mxu0 0
      %1206 = vmatprep.subr.bf16.mxu0 0
      %1207 = vmatpush1.bf16.msra.mxu0 0
      %1208 = vmatprep.subr.bf16.mxu0 0
      %1209 = vmatpush1.bf16.msra.mxu0 0
      %1210 = vmatprep.subr.bf16.mxu0 0
      %1211 = vmatpush1.bf16.msra.mxu0 %v1105
      %1212 = vmatprep.subr.bf16.mxu0 0
      %1213 = vmatpush2.bf16.msra.mxu0 0
      %1214 = vmatprep.subr.bf16.mxu0 0
      %1215 = vmatpush2.bf16.msra.mxu0 0
      %1216 = vmatprep.subr.bf16.mxu0 0
      %1217 = vmatpush2.bf16.msra.mxu0 0
      %1218 = vmatprep.subr.bf16.mxu0 0
      %1219 = vmatpush2.bf16.msra.mxu0 0
      %1220 = vmatprep.subr.bf16.mxu0 0
      %1221 = vmatpush2.bf16.msra.mxu0 0
      %1222 = vmatprep.subr.bf16.mxu0 0
      %1223 = vmatpush2.bf16.msra.mxu0 0
      %1224 = vmatprep.subr.bf16.mxu0 0
      %1225 = vmatpush2.bf16.msra.mxu0 0
      %1226 = vmatprep.subr.bf16.mxu0 0
      %1227 = vmatpush2.bf16.msra.mxu0 0
      %1228 = vmatprep.mubr.bf16.mxu0 0
      %1229 = vmatmul.mubr.bf16.gmra.mxu0 %v1112
      %v1230 = vpop.f32.mrf.mxu0
      %v1231 = vadd.f32 0.0, %v1230
      %v1232 = vpop.f32.mrf.mxu0
      %v1233 = vpop.f32.mrf.mxu0
      %v1234 = vadd.f32 0.0, %v1233
      %v1235 = vpop.f32.mrf.mxu0
      %1236 = vdwg.mxu0
      %1237 = vmatprep.subr.bf16.mxu0 0
      %1238 = vmatpush1.bf16.msra.mxu0 0
      %1239 = vmatprep.subr.bf16.mxu0 0
      %1240 = vmatpush1.bf16.msra.mxu0 0
      %1241 = vmatprep.subr.bf16.mxu0 0
      %1242 = vmatpush1.bf16.msra.mxu0 0
      %1243 = vmatprep.subr.bf16.mxu0 0
      %1244 = vmatpush1.bf16.msra.mxu0 0
      %1245 = vmatprep.subr.bf16.mxu0 0
      %1246 = vmatpush1.bf16.msra.mxu0 0
      %1247 = vmatprep.subr.bf16.mxu0 0
      %1248 = vmatpush1.bf16.msra.mxu0 0
      %1249 = vmatprep.subr.bf16.mxu0 0
      %1250 = vmatpush1.bf16.msra.mxu0 0
      %1251 = vmatprep.subr.bf16.mxu0 0
      %1252 = vmatpush1.bf16.msra.mxu0 %v1106
      %1253 = vmatprep.subr.bf16.mxu0 0
      %1254 = vmatpush2.bf16.msra.mxu0 0
      %1255 = vmatprep.subr.bf16.mxu0 0
      %1256 = vmatpush2.bf16.msra.mxu0 0
      %1257 = vmatprep.subr.bf16.mxu0 0
      %1258 = vmatpush2.bf16.msra.mxu0 0
      %1259 = vmatprep.subr.bf16.mxu0 0
      %1260 = vmatpush2.bf16.msra.mxu0 0
      %1261 = vmatprep.subr.bf16.mxu0 0
      %1262 = vmatpush2.bf16.msra.mxu0 0
      %1263 = vmatprep.subr.bf16.mxu0 0
      %1264 = vmatpush2.bf16.msra.mxu0 0
      %1265 = vmatprep.subr.bf16.mxu0 0
      %1266 = vmatpush2.bf16.msra.mxu0 0
      %1267 = vmatprep.subr.bf16.mxu0 0
      %1268 = vmatpush2.bf16.msra.mxu0 0
      %1269 = vmatprep.mubr.bf16.mxu0 0
      %1270 = vmatmul.mubr.bf16.gmra.mxu0 %v1112
      %v1271 = vpop.f32.mrf.mxu0
      %v1272 = vadd.f32 0.0, %v1271
      %v1273 = vpop.f32.mrf.mxu0
      %v1274 = vpop.f32.mrf.mxu0
      %v1275 = vadd.f32 0.0, %v1274
      %v1276 = vpop.f32.mrf.mxu0
      %1277 = vdwg.mxu0
      %1278 = vmatprep.subr.bf16.mxu0 0
      %1279 = vmatpush1.bf16.msra.mxu0 0
      %1280 = vmatprep.subr.bf16.mxu0 0
      %1281 = vmatpush1.bf16.msra.mxu0 0
      %1282 = vmatprep.subr.bf16.mxu0 0
      %1283 = vmatpush1.bf16.msra.mxu0 0
      %1284 = vmatprep.subr.bf16.mxu0 0
      %1285 = vmatpush1.bf16.msra.mxu0 0
      %1286 = vmatprep.subr.bf16.mxu0 0
      %1287 = vmatpush1.bf16.msra.mxu0 0
      %1288 = vmatprep.subr.bf16.mxu0 0
      %1289 = vmatpush1.bf16.msra.mxu0 0
      %1290 = vmatprep.subr.bf16.mxu0 0
      %1291 = vmatpush1.bf16.msra.mxu0 0
      %1292 = vmatprep.subr.bf16.mxu0 0
      %1293 = vmatpush1.bf16.msra.mxu0 %v1107
      %1294 = vmatprep.subr.bf16.mxu0 0
      %1295 = vmatpush2.bf16.msra.mxu0 0
      %1296 = vmatprep.subr.bf16.mxu0 0
      %1297 = vmatpush2.bf16.msra.mxu0 0
      %1298 = vmatprep.subr.bf16.mxu0 0
      %1299 = vmatpush2.bf16.msra.mxu0 0
      %1300 = vmatprep.subr.bf16.mxu0 0
      %1301 = vmatpush2.bf16.msra.mxu0 0
      %1302 = vmatprep.subr.bf16.mxu0 0
      %1303 = vmatpush2.bf16.msra.mxu0 0
      %1304 = vmatprep.subr.bf16.mxu0 0
      %1305 = vmatpush2.bf16.msra.mxu0 0
      %1306 = vmatprep.subr.bf16.mxu0 0
      %1307 = vmatpush2.bf16.msra.mxu0 0
      %1308 = vmatprep.subr.bf16.mxu0 0
      %1309 = vmatpush2.bf16.msra.mxu0 0
      %1310 = vmatprep.mubr.bf16.mxu0 0
      %1311 = vmatmul.mubr.bf16.gmra.mxu0 %v1112
      %v1312 = vpop.f32.mrf.mxu0
      %v1313 = vadd.f32 0.0, %v1312
      %v1314 = vpop.f32.mrf.mxu0
      %v1315 = vpop.f32.mrf.mxu0
      %v1316 = vadd.f32 0.0, %v1315
      %v1317 = vpop.f32.mrf.mxu0
      %1318 = vdwg.mxu0
      %1319 = vmatprep.subr.bf16.mxu0 0
      %1320 = vmatpush1.bf16.msra.mxu0 0
      %1321 = vmatprep.subr.bf16.mxu0 0
      %1322 = vmatpush1.bf16.msra.mxu0 0
      %1323 = vmatprep.subr.bf16.mxu0 0
      %1324 = vmatpush1.bf16.msra.mxu0 0
      %1325 = vmatprep.subr.bf16.mxu0 0
      %1326 = vmatpush1.bf16.msra.mxu0 0
      %1327 = vmatprep.subr.bf16.mxu0 0
      %1328 = vmatpush1.bf16.msra.mxu0 0
      %1329 = vmatprep.subr.bf16.mxu0 0
      %1330 = vmatpush1.bf16.msra.mxu0 0
      %1331 = vmatprep.subr.bf16.mxu0 0
      %1332 = vmatpush1.bf16.msra.mxu0 0
      %1333 = vmatprep.subr.bf16.mxu0 0
      %1334 = vmatpush1.bf16.msra.mxu0 %v1108
      %1335 = vmatprep.subr.bf16.mxu0 0
      %1336 = vmatpush2.bf16.msra.mxu0 0
      %1337 = vmatprep.subr.bf16.mxu0 0
      %1338 = vmatpush2.bf16.msra.mxu0 0
      %1339 = vmatprep.subr.bf16.mxu0 0
      %1340 = vmatpush2.bf16.msra.mxu0 0
      %1341 = vmatprep.subr.bf16.mxu0 0
      %1342 = vmatpush2.bf16.msra.mxu0 0
      %1343 = vmatprep.subr.bf16.mxu0 0
      %1344 = vmatpush2.bf16.msra.mxu0 0
      %1345 = vmatprep.subr.bf16.mxu0 0
      %1346 = vmatpush2.bf16.msra.mxu0 0
      %1347 = vmatprep.subr.bf16.mxu0 0
      %1348 = vmatpush2.bf16.msra.mxu0 0
      %1349 = vmatprep.subr.bf16.mxu0 0
      %1350 = vmatpush2.bf16.msra.mxu0 0
      %1351 = vmatprep.mubr.bf16.mxu0 0
      %1352 = vmatmul.mubr.bf16.gmra.mxu0 %v1112
      %v1353 = vpop.f32.mrf.mxu0
      %v1354 = vadd.f32 0.0, %v1353
      %v1355 = vpop.f32.mrf.mxu0
      %v1356 = vpop.f32.mrf.mxu0
      %v1357 = vadd.f32 0.0, %v1356
      %v1358 = vpop.f32.mrf.mxu0
      %1359 = vdwg.mxu0
      %1360 = vmatprep.subr.bf16.mxu0 0
      %1361 = vmatpush1.bf16.msra.mxu0 0
      %1362 = vmatprep.subr.bf16.mxu0 0
      %1363 = vmatpush1.bf16.msra.mxu0 0
      %1364 = vmatprep.subr.bf16.mxu0 0
      %1365 = vmatpush1.bf16.msra.mxu0 0
      %1366 = vmatprep.subr.bf16.mxu0 0
      %1367 = vmatpush1.bf16.msra.mxu0 0
      %1368 = vmatprep.subr.bf16.mxu0 0
      %1369 = vmatpush1.bf16.msra.mxu0 0
      %1370 = vmatprep.subr.bf16.mxu0 0
      %1371 = vmatpush1.bf16.msra.mxu0 0
      %1372 = vmatprep.subr.bf16.mxu0 0
      %1373 = vmatpush1.bf16.msra.mxu0 0
      %1374 = vmatprep.subr.bf16.mxu0 0
      %1375 = vmatpush1.bf16.msra.mxu0 %v1109
      %1376 = vmatprep.subr.bf16.mxu0 0
      %1377 = vmatpush2.bf16.msra.mxu0 0
      %1378 = vmatprep.subr.bf16.mxu0 0
      %1379 = vmatpush2.bf16.msra.mxu0 0
      %1380 = vmatprep.subr.bf16.mxu0 0
      %1381 = vmatpush2.bf16.msra.mxu0 0
      %1382 = vmatprep.subr.bf16.mxu0 0
      %1383 = vmatpush2.bf16.msra.mxu0 0
      %1384 = vmatprep.subr.bf16.mxu0 0
      %1385 = vmatpush2.bf16.msra.mxu0 0
      %1386 = vmatprep.subr.bf16.mxu0 0
      %1387 = vmatpush2.bf16.msra.mxu0 0
      %1388 = vmatprep.subr.bf16.mxu0 0
      %1389 = vmatpush2.bf16.msra.mxu0 0
      %1390 = vmatprep.subr.bf16.mxu0 0
      %1391 = vmatpush2.bf16.msra.mxu0 0
      %1392 = vmatprep.mubr.bf16.mxu0 0
      %1393 = vmatmul.mubr.bf16.gmra.mxu0 %v1112
      %v1394 = vpop.f32.mrf.mxu0
      %v1395 = vadd.f32 0.0, %v1394
      %v1396 = vpop.f32.mrf.mxu0
      %v1397 = vpop.f32.mrf.mxu0
      %v1398 = vadd.f32 0.0, %v1397
      %v1399 = vpop.f32.mrf.mxu0
      %1400 = vdwg.mxu0
      %1401 = vmatprep.subr.bf16.mxu0 0
      %1402 = vmatpush1.bf16.msra.mxu0 0
      %1403 = vmatprep.subr.bf16.mxu0 0
      %1404 = vmatpush1.bf16.msra.mxu0 0
      %1405 = vmatprep.subr.bf16.mxu0 0
      %1406 = vmatpush1.bf16.msra.mxu0 0
      %1407 = vmatprep.subr.bf16.mxu0 0
      %1408 = vmatpush1.bf16.msra.mxu0 0
      %1409 = vmatprep.subr.bf16.mxu0 0
      %1410 = vmatpush1.bf16.msra.mxu0 0
      %1411 = vmatprep.subr.bf16.mxu0 0
      %1412 = vmatpush1.bf16.msra.mxu0 0
      %1413 = vmatprep.subr.bf16.mxu0 0
      %1414 = vmatpush1.bf16.msra.mxu0 0
      %1415 = vmatprep.subr.bf16.mxu0 0
      %1416 = vmatpush1.bf16.msra.mxu0 %v1110
      %1417 = vmatprep.subr.bf16.mxu0 0
      %1418 = vmatpush2.bf16.msra.mxu0 0
      %1419 = vmatprep.subr.bf16.mxu0 0
      %1420 = vmatpush2.bf16.msra.mxu0 0
      %1421 = vmatprep.subr.bf16.mxu0 0
      %1422 = vmatpush2.bf16.msra.mxu0 0
      %1423 = vmatprep.subr.bf16.mxu0 0
      %1424 = vmatpush2.bf16.msra.mxu0 0
      %1425 = vmatprep.subr.bf16.mxu0 0
      %1426 = vmatpush2.bf16.msra.mxu0 0
      %1427 = vmatprep.subr.bf16.mxu0 0
      %1428 = vmatpush2.bf16.msra.mxu0 0
      %1429 = vmatprep.subr.bf16.mxu0 0
      %1430 = vmatpush2.bf16.msra.mxu0 0
      %1431 = vmatprep.subr.bf16.mxu0 0
      %1432 = vmatpush2.bf16.msra.mxu0 0
      %1433 = vmatprep.mubr.bf16.mxu0 0
      %1434 = vmatmul.mubr.bf16.gmra.mxu0 %v1112
      %v1435 = vpop.f32.mrf.mxu0
      %v1436 = vadd.f32 0.0, %v1435
      %v1437 = vpop.f32.mrf.mxu0
      %v1438 = vpop.f32.mrf.mxu0
      %v1439 = vadd.f32 0.0, %v1438
      %v1440 = vpop.f32.mrf.mxu0
      %1441 = vdwg.mxu0
      %v1442 = vmax.f32 %v1149, 0.0
      %v1443 = vmax.f32 %v1152, 0.0
      %v1444 = vmax.f32 %v1190, 0.0
      %v1445 = vmax.f32 %v1193, 0.0
      %v1446 = vmax.f32 %v1231, 0.0
      %v1447 = vmax.f32 %v1234, 0.0
      %v1448 = vmax.f32 %v1272, 0.0
      %v1449 = vmax.f32 %v1275, 0.0
      %v1450 = vmax.f32 %v1313, 0.0
      %v1451 = vmax.f32 %v1316, 0.0
      %v1452 = vmax.f32 %v1354, 0.0
      %v1453 = vmax.f32 %v1357, 0.0
      %v1454 = vmax.f32 %v1395, 0.0
      %v1455 = vmax.f32 %v1398, 0.0
      %v1456 = vmax.f32 %v1436, 0.0
      %v1457 = vmax.f32 %v1439, 0.0
      %v1459 = vsel %vm664, %v792, 0
      %1461 = vmatprep.subr.bf16.mxu0 0
      %1462 = vmatpush1.bf16.msra.mxu0 0
      %1463 = vmatprep.subr.bf16.mxu0 0
      %1464 = vmatpush1.bf16.msra.mxu0 0
      %1465 = vmatprep.subr.bf16.mxu0 0
      %1466 = vmatpush1.bf16.msra.mxu0 0
      %1467 = vmatprep.subr.bf16.mxu0 0
      %1468 = vmatpush1.bf16.msra.mxu0 0
      %1469 = vmatprep.subr.bf16.mxu0 0
      %1470 = vmatpush1.bf16.msra.mxu0 0
      %1471 = vmatprep.subr.bf16.mxu0 0
      %1472 = vmatpush1.bf16.msra.mxu0 0
      %1473 = vmatprep.subr.bf16.mxu0 0
      %1474 = vmatpush1.bf16.msra.mxu0 0
      %1475 = vmatprep.subr.bf16.mxu0 0
      %1476 = vmatpush1.bf16.msra.mxu0 %v1103
      %1477 = vmatprep.subr.bf16.mxu0 0
      %1478 = vmatpush2.bf16.msra.mxu0 0
      %1479 = vmatprep.subr.bf16.mxu0 0
      %1480 = vmatpush2.bf16.msra.mxu0 0
      %1481 = vmatprep.subr.bf16.mxu0 0
      %1482 = vmatpush2.bf16.msra.mxu0 0
      %1483 = vmatprep.subr.bf16.mxu0 0
      %1484 = vmatpush2.bf16.msra.mxu0 0
      %1485 = vmatprep.subr.bf16.mxu0 0
      %1486 = vmatpush2.bf16.msra.mxu0 0
      %1487 = vmatprep.subr.bf16.mxu0 0
      %1488 = vmatpush2.bf16.msra.mxu0 0
      %1489 = vmatprep.subr.bf16.mxu0 0
      %1490 = vmatpush2.bf16.msra.mxu0 0
      %1491 = vmatprep.subr.bf16.mxu0 0
      %1492 = vmatpush2.bf16.msra.mxu0 0
      %1493 = vmatprep.mubr.bf16.mxu0 0
      %1494 = vmatmul.mubr.bf16.gmra.mxu0 %v1459
      %v1495 = vpop.f32.mrf.mxu0
      %v1496 = vadd.f32 0.0, %v1495
      %v1497 = vpop.f32.mrf.mxu0
      %v1498 = vpop.f32.mrf.mxu0
      %v1499 = vadd.f32 0.0, %v1498
      %v1500 = vpop.f32.mrf.mxu0
      %1501 = vdwg.mxu0
      %1502 = vmatprep.subr.bf16.mxu0 0
      %1503 = vmatpush1.bf16.msra.mxu0 0
      %1504 = vmatprep.subr.bf16.mxu0 0
      %1505 = vmatpush1.bf16.msra.mxu0 0
      %1506 = vmatprep.subr.bf16.mxu0 0
      %1507 = vmatpush1.bf16.msra.mxu0 0
      %1508 = vmatprep.subr.bf16.mxu0 0
      %1509 = vmatpush1.bf16.msra.mxu0 0
      %1510 = vmatprep.subr.bf16.mxu0 0
      %1511 = vmatpush1.bf16.msra.mxu0 0
      %1512 = vmatprep.subr.bf16.mxu0 0
      %1513 = vmatpush1.bf16.msra.mxu0 0
      %1514 = vmatprep.subr.bf16.mxu0 0
      %1515 = vmatpush1.bf16.msra.mxu0 0
      %1516 = vmatprep.subr.bf16.mxu0 0
      %1517 = vmatpush1.bf16.msra.mxu0 %v1104
      %1518 = vmatprep.subr.bf16.mxu0 0
      %1519 = vmatpush2.bf16.msra.mxu0 0
      %1520 = vmatprep.subr.bf16.mxu0 0
      %1521 = vmatpush2.bf16.msra.mxu0 0
      %1522 = vmatprep.subr.bf16.mxu0 0
      %1523 = vmatpush2.bf16.msra.mxu0 0
      %1524 = vmatprep.subr.bf16.mxu0 0
      %1525 = vmatpush2.bf16.msra.mxu0 0
      %1526 = vmatprep.subr.bf16.mxu0 0
      %1527 = vmatpush2.bf16.msra.mxu0 0
      %1528 = vmatprep.subr.bf16.mxu0 0
      %1529 = vmatpush2.bf16.msra.mxu0 0
      %1530 = vmatprep.subr.bf16.mxu0 0
      %1531 = vmatpush2.bf16.msra.mxu0 0
      %1532 = vmatprep.subr.bf16.mxu0 0
      %1533 = vmatpush2.bf16.msra.mxu0 0
      %1534 = vmatprep.mubr.bf16.mxu0 0
      %1535 = vmatmul.mubr.bf16.gmra.mxu0 %v1459
      %v1536 = vpop.f32.mrf.mxu0
      %v1537 = vadd.f32 0.0, %v1536
      %v1538 = vpop.f32.mrf.mxu0
      %v1539 = vpop.f32.mrf.mxu0
      %v1540 = vadd.f32 0.0, %v1539
      %v1541 = vpop.f32.mrf.mxu0
      %1542 = vdwg.mxu0
      %1543 = vmatprep.subr.bf16.mxu0 0
      %1544 = vmatpush1.bf16.msra.mxu0 0
      %1545 = vmatprep.subr.bf16.mxu0 0
      %1546 = vmatpush1.bf16.msra.mxu0 0
      %1547 = vmatprep.subr.bf16.mxu0 0
      %1548 = vmatpush1.bf16.msra.mxu0 0
      %1549 = vmatprep.subr.bf16.mxu0 0
      %1550 = vmatpush1.bf16.msra.mxu0 0
      %1551 = vmatprep.subr.bf16.mxu0 0
      %1552 = vmatpush1.bf16.msra.mxu0 0
      %1553 = vmatprep.subr.bf16.mxu0 0
      %1554 = vmatpush1.bf16.msra.mxu0 0
      %1555 = vmatprep.subr.bf16.mxu0 0
      %1556 = vmatpush1.bf16.msra.mxu0 0
      %1557 = vmatprep.subr.bf16.mxu0 0
      %1558 = vmatpush1.bf16.msra.mxu0 %v1105
      %1559 = vmatprep.subr.bf16.mxu0 0
      %1560 = vmatpush2.bf16.msra.mxu0 0
      %1561 = vmatprep.subr.bf16.mxu0 0
      %1562 = vmatpush2.bf16.msra.mxu0 0
      %1563 = vmatprep.subr.bf16.mxu0 0
      %1564 = vmatpush2.bf16.msra.mxu0 0
      %1565 = vmatprep.subr.bf16.mxu0 0
      %1566 = vmatpush2.bf16.msra.mxu0 0
      %1567 = vmatprep.subr.bf16.mxu0 0
      %1568 = vmatpush2.bf16.msra.mxu0 0
      %1569 = vmatprep.subr.bf16.mxu0 0
      %1570 = vmatpush2.bf16.msra.mxu0 0
      %1571 = vmatprep.subr.bf16.mxu0 0
      %1572 = vmatpush2.bf16.msra.mxu0 0
      %1573 = vmatprep.subr.bf16.mxu0 0
      %1574 = vmatpush2.bf16.msra.mxu0 0
      %1575 = vmatprep.mubr.bf16.mxu0 0
      %1576 = vmatmul.mubr.bf16.gmra.mxu0 %v1459
      %v1577 = vpop.f32.mrf.mxu0
      %v1578 = vadd.f32 0.0, %v1577
      %v1579 = vpop.f32.mrf.mxu0
      %v1580 = vpop.f32.mrf.mxu0
      %v1581 = vadd.f32 0.0, %v1580
      %v1582 = vpop.f32.mrf.mxu0
      %1583 = vdwg.mxu0
      %1584 = vmatprep.subr.bf16.mxu0 0
      %1585 = vmatpush1.bf16.msra.mxu0 0
      %1586 = vmatprep.subr.bf16.mxu0 0
      %1587 = vmatpush1.bf16.msra.mxu0 0
      %1588 = vmatprep.subr.bf16.mxu0 0
      %1589 = vmatpush1.bf16.msra.mxu0 0
      %1590 = vmatprep.subr.bf16.mxu0 0
      %1591 = vmatpush1.bf16.msra.mxu0 0
      %1592 = vmatprep.subr.bf16.mxu0 0
      %1593 = vmatpush1.bf16.msra.mxu0 0
      %1594 = vmatprep.subr.bf16.mxu0 0
      %1595 = vmatpush1.bf16.msra.mxu0 0
      %1596 = vmatprep.subr.bf16.mxu0 0
      %1597 = vmatpush1.bf16.msra.mxu0 0
      %1598 = vmatprep.subr.bf16.mxu0 0
      %1599 = vmatpush1.bf16.msra.mxu0 %v1106
      %1600 = vmatprep.subr.bf16.mxu0 0
      %1601 = vmatpush2.bf16.msra.mxu0 0
      %1602 = vmatprep.subr.bf16.mxu0 0
      %1603 = vmatpush2.bf16.msra.mxu0 0
      %1604 = vmatprep.subr.bf16.mxu0 0
      %1605 = vmatpush2.bf16.msra.mxu0 0
      %1606 = vmatprep.subr.bf16.mxu0 0
      %1607 = vmatpush2.bf16.msra.mxu0 0
      %1608 = vmatprep.subr.bf16.mxu0 0
      %1609 = vmatpush2.bf16.msra.mxu0 0
      %1610 = vmatprep.subr.bf16.mxu0 0
      %1611 = vmatpush2.bf16.msra.mxu0 0
      %1612 = vmatprep.subr.bf16.mxu0 0
      %1613 = vmatpush2.bf16.msra.mxu0 0
      %1614 = vmatprep.subr.bf16.mxu0 0
      %1615 = vmatpush2.bf16.msra.mxu0 0
      %1616 = vmatprep.mubr.bf16.mxu0 0
      %1617 = vmatmul.mubr.bf16.gmra.mxu0 %v1459
      %v1618 = vpop.f32.mrf.mxu0
      %v1619 = vadd.f32 0.0, %v1618
      %v1620 = vpop.f32.mrf.mxu0
      %v1621 = vpop.f32.mrf.mxu0
      %v1622 = vadd.f32 0.0, %v1621
      %v1623 = vpop.f32.mrf.mxu0
      %1624 = vdwg.mxu0
      %1625 = vmatprep.subr.bf16.mxu0 0
      %1626 = vmatpush1.bf16.msra.mxu0 0
      %1627 = vmatprep.subr.bf16.mxu0 0
      %1628 = vmatpush1.bf16.msra.mxu0 0
      %1629 = vmatprep.subr.bf16.mxu0 0
      %1630 = vmatpush1.bf16.msra.mxu0 0
      %1631 = vmatprep.subr.bf16.mxu0 0
      %1632 = vmatpush1.bf16.msra.mxu0 0
      %1633 = vmatprep.subr.bf16.mxu0 0
      %1634 = vmatpush1.bf16.msra.mxu0 0
      %1635 = vmatprep.subr.bf16.mxu0 0
      %1636 = vmatpush1.bf16.msra.mxu0 0
      %1637 = vmatprep.subr.bf16.mxu0 0
      %1638 = vmatpush1.bf16.msra.mxu0 0
      %1639 = vmatprep.subr.bf16.mxu0 0
      %1640 = vmatpush1.bf16.msra.mxu0 %v1107
      %1641 = vmatprep.subr.bf16.mxu0 0
      %1642 = vmatpush2.bf16.msra.mxu0 0
      %1643 = vmatprep.subr.bf16.mxu0 0
      %1644 = vmatpush2.bf16.msra.mxu0 0
      %1645 = vmatprep.subr.bf16.mxu0 0
      %1646 = vmatpush2.bf16.msra.mxu0 0
      %1647 = vmatprep.subr.bf16.mxu0 0
      %1648 = vmatpush2.bf16.msra.mxu0 0
      %1649 = vmatprep.subr.bf16.mxu0 0
      %1650 = vmatpush2.bf16.msra.mxu0 0
      %1651 = vmatprep.subr.bf16.mxu0 0
      %1652 = vmatpush2.bf16.msra.mxu0 0
      %1653 = vmatprep.subr.bf16.mxu0 0
      %1654 = vmatpush2.bf16.msra.mxu0 0
      %1655 = vmatprep.subr.bf16.mxu0 0
      %1656 = vmatpush2.bf16.msra.mxu0 0
      %1657 = vmatprep.mubr.bf16.mxu0 0
      %1658 = vmatmul.mubr.bf16.gmra.mxu0 %v1459
      %v1659 = vpop.f32.mrf.mxu0
      %v1660 = vadd.f32 0.0, %v1659
      %v1661 = vpop.f32.mrf.mxu0
      %v1662 = vpop.f32.mrf.mxu0
      %v1663 = vadd.f32 0.0, %v1662
      %v1664 = vpop.f32.mrf.mxu0
      %1665 = vdwg.mxu0
      %1666 = vmatprep.subr.bf16.mxu0 0
      %1667 = vmatpush1.bf16.msra.mxu0 0
      %1668 = vmatprep.subr.bf16.mxu0 0
      %1669 = vmatpush1.bf16.msra.mxu0 0
      %1670 = vmatprep.subr.bf16.mxu0 0
      %1671 = vmatpush1.bf16.msra.mxu0 0
      %1672 = vmatprep.subr.bf16.mxu0 0
      %1673 = vmatpush1.bf16.msra.mxu0 0
      %1674 = vmatprep.subr.bf16.mxu0 0
      %1675 = vmatpush1.bf16.msra.mxu0 0
      %1676 = vmatprep.subr.bf16.mxu0 0
      %1677 = vmatpush1.bf16.msra.mxu0 0
      %1678 = vmatprep.subr.bf16.mxu0 0
      %1679 = vmatpush1.bf16.msra.mxu0 0
      %1680 = vmatprep.subr.bf16.mxu0 0
      %1681 = vmatpush1.bf16.msra.mxu0 %v1108
      %1682 = vmatprep.subr.bf16.mxu0 0
      %1683 = vmatpush2.bf16.msra.mxu0 0
      %1684 = vmatprep.subr.bf16.mxu0 0
      %1685 = vmatpush2.bf16.msra.mxu0 0
      %1686 = vmatprep.subr.bf16.mxu0 0
      %1687 = vmatpush2.bf16.msra.mxu0 0
      %1688 = vmatprep.subr.bf16.mxu0 0
      %1689 = vmatpush2.bf16.msra.mxu0 0
      %1690 = vmatprep.subr.bf16.mxu0 0
      %1691 = vmatpush2.bf16.msra.mxu0 0
      %1692 = vmatprep.subr.bf16.mxu0 0
      %1693 = vmatpush2.bf16.msra.mxu0 0
      %1694 = vmatprep.subr.bf16.mxu0 0
      %1695 = vmatpush2.bf16.msra.mxu0 0
      %1696 = vmatprep.subr.bf16.mxu0 0
      %1697 = vmatpush2.bf16.msra.mxu0 0
      %1698 = vmatprep.mubr.bf16.mxu0 0
      %1699 = vmatmul.mubr.bf16.gmra.mxu0 %v1459
      %v1700 = vpop.f32.mrf.mxu0
      %v1701 = vadd.f32 0.0, %v1700
      %v1702 = vpop.f32.mrf.mxu0
      %v1703 = vpop.f32.mrf.mxu0
      %v1704 = vadd.f32 0.0, %v1703
      %v1705 = vpop.f32.mrf.mxu0
      %1706 = vdwg.mxu0
      %1707 = vmatprep.subr.bf16.mxu0 0
      %1708 = vmatpush1.bf16.msra.mxu0 0
      %1709 = vmatprep.subr.bf16.mxu0 0
      %1710 = vmatpush1.bf16.msra.mxu0 0
      %1711 = vmatprep.subr.bf16.mxu0 0
      %1712 = vmatpush1.bf16.msra.mxu0 0
      %1713 = vmatprep.subr.bf16.mxu0 0
      %1714 = vmatpush1.bf16.msra.mxu0 0
      %1715 = vmatprep.subr.bf16.mxu0 0
      %1716 = vmatpush1.bf16.msra.mxu0 0
      %1717 = vmatprep.subr.bf16.mxu0 0
      %1718 = vmatpush1.bf16.msra.mxu0 0
      %1719 = vmatprep.subr.bf16.mxu0 0
      %1720 = vmatpush1.bf16.msra.mxu0 0
      %1721 = vmatprep.subr.bf16.mxu0 0
      %1722 = vmatpush1.bf16.msra.mxu0 %v1109
      %1723 = vmatprep.subr.bf16.mxu0 0
      %1724 = vmatpush2.bf16.msra.mxu0 0
      %1725 = vmatprep.subr.bf16.mxu0 0
      %1726 = vmatpush2.bf16.msra.mxu0 0
      %1727 = vmatprep.subr.bf16.mxu0 0
      %1728 = vmatpush2.bf16.msra.mxu0 0
      %1729 = vmatprep.subr.bf16.mxu0 0
      %1730 = vmatpush2.bf16.msra.mxu0 0
      %1731 = vmatprep.subr.bf16.mxu0 0
      %1732 = vmatpush2.bf16.msra.mxu0 0
      %1733 = vmatprep.subr.bf16.mxu0 0
      %1734 = vmatpush2.bf16.msra.mxu0 0
      %1735 = vmatprep.subr.bf16.mxu0 0
      %1736 = vmatpush2.bf16.msra.mxu0 0
      %1737 = vmatprep.subr.bf16.mxu0 0
      %1738 = vmatpush2.bf16.msra.mxu0 0
      %1739 = vmatprep.mubr.bf16.mxu0 0
      %1740 = vmatmul.mubr.bf16.gmra.mxu0 %v1459
      %v1741 = vpop.f32.mrf.mxu0
      %v1742 = vadd.f32 0.0, %v1741
      %v1743 = vpop.f32.mrf.mxu0
      %v1744 = vpop.f32.mrf.mxu0
      %v1745 = vadd.f32 0.0, %v1744
      %v1746 = vpop.f32.mrf.mxu0
      %1747 = vdwg.mxu0
      %1748 = vmatprep.subr.bf16.mxu0 0
      %1749 = vmatpush1.bf16.msra.mxu0 0
      %1750 = vmatprep.subr.bf16.mxu0 0
      %1751 = vmatpush1.bf16.msra.mxu0 0
      %1752 = vmatprep.subr.bf16.mxu0 0
      %1753 = vmatpush1.bf16.msra.mxu0 0
      %1754 = vmatprep.subr.bf16.mxu0 0
      %1755 = vmatpush1.bf16.msra.mxu0 0
      %1756 = vmatprep.subr.bf16.mxu0 0
      %1757 = vmatpush1.bf16.msra.mxu0 0
      %1758 = vmatprep.subr.bf16.mxu0 0
      %1759 = vmatpush1.bf16.msra.mxu0 0
      %1760 = vmatprep.subr.bf16.mxu0 0
      %1761 = vmatpush1.bf16.msra.mxu0 0
      %1762 = vmatprep.subr.bf16.mxu0 0
      %1763 = vmatpush1.bf16.msra.mxu0 %v1110
      %1764 = vmatprep.subr.bf16.mxu0 0
      %1765 = vmatpush2.bf16.msra.mxu0 0
      %1766 = vmatprep.subr.bf16.mxu0 0
      %1767 = vmatpush2.bf16.msra.mxu0 0
      %1768 = vmatprep.subr.bf16.mxu0 0
      %1769 = vmatpush2.bf16.msra.mxu0 0
      %1770 = vmatprep.subr.bf16.mxu0 0
      %1771 = vmatpush2.bf16.msra.mxu0 0
      %1772 = vmatprep.subr.bf16.mxu0 0
      %1773 = vmatpush2.bf16.msra.mxu0 0
      %1774 = vmatprep.subr.bf16.mxu0 0
      %1775 = vmatpush2.bf16.msra.mxu0 0
      %1776 = vmatprep.subr.bf16.mxu0 0
      %1777 = vmatpush2.bf16.msra.mxu0 0
      %1778 = vmatprep.subr.bf16.mxu0 0
      %1779 = vmatpush2.bf16.msra.mxu0 0
      %1780 = vmatprep.mubr.bf16.mxu0 0
      %1781 = vmatmul.mubr.bf16.gmra.mxu0 %v1459
      %v1782 = vpop.f32.mrf.mxu0
      %v1783 = vadd.f32 0.0, %v1782
      %v1784 = vpop.f32.mrf.mxu0
      %v1785 = vpop.f32.mrf.mxu0
      %v1786 = vadd.f32 0.0, %v1785
      %v1787 = vpop.f32.mrf.mxu0
      %1788 = vdwg.mxu0
      %v1789 = vmax.f32 %v1496, 0.0
      %v1790 = vmax.f32 %v1499, 0.0
      %v1791 = vmax.f32 %v1537, 0.0
      %v1792 = vmax.f32 %v1540, 0.0
      %v1793 = vmax.f32 %v1578, 0.0
      %v1794 = vmax.f32 %v1581, 0.0
      %v1795 = vmax.f32 %v1619, 0.0
      %v1796 = vmax.f32 %v1622, 0.0
      %v1797 = vmax.f32 %v1660, 0.0
      %v1798 = vmax.f32 %v1663, 0.0
      %v1799 = vmax.f32 %v1701, 0.0
      %v1800 = vmax.f32 %v1704, 0.0
      %v1801 = vmax.f32 %v1742, 0.0
      %v1802 = vmax.f32 %v1745, 0.0
      %v1803 = vmax.f32 %v1783, 0.0
      %v1804 = vmax.f32 %v1786, 0.0
      %v1805 = vld [vmem:[%s7] sm:$0xf]
      %v1806 = vld [vmem:[%s7 + $0x4] sm:$0xf]
      %v1807 = vld [vmem:[%s7 + $0x8] sm:$0xf]
      %v1808 = vld [vmem:[%s7 + $0xc] sm:$0xf]
      %v1809 = vpack.c.bf16 %v1443, %v1442
      %v1810 = vpack.c.bf16 %v1445, %v1444
      %v1811 = vpack.c.bf16 %v1447, %v1446
      %v1812 = vpack.c.bf16 %v1449, %v1448
      %v1813 = vpack.c.bf16 %v1451, %v1450
      %v1814 = vpack.c.bf16 %v1453, %v1452
      %v1815 = vpack.c.bf16 %v1455, %v1454
      %v1816 = vpack.c.bf16 %v1457, %v1456
      %v1817 = vld [vmem:[%s7 + $0x10] sm:$0xf]
      %v1818 = vld [vmem:[%s7 + $0x14] sm:$0xf]
      %v1819 = vld [vmem:[%s7 + $0x18] sm:$0xf]
      %v1820 = vld [vmem:[%s7 + $0x1c] sm:$0xf]
      %v1821 = vpack.c.bf16 %v1790, %v1789
      %v1822 = vpack.c.bf16 %v1792, %v1791
      %v1823 = vpack.c.bf16 %v1794, %v1793
      %v1824 = vpack.c.bf16 %v1796, %v1795
      %v1825 = vpack.c.bf16 %v1798, %v1797
      %v1826 = vpack.c.bf16 %v1800, %v1799
      %v1827 = vpack.c.bf16 %v1802, %v1801
      %v1828 = vpack.c.bf16 %v1804, %v1803
      %v1833 = vunpack.c.l.b16 %v1817
      %v1834 = vunpack.c.l.b16 %v1818
      %v1835 = vunpack.c.l.b16 %v1819
      %v1836 = vunpack.c.l.b16 %v1820
      %v1837 = vpack.c.b16 %v1834, %v1833
      %v1838 = vpack.c.b16 %v1836, %v1835
      %vm1841 = vcmask 261120
      %v1843 = vsel %vm1841, %v1821, 0
      %v1846 = vsel %vm1841, %v1822, 0
      %v1849 = vsel %vm1841, %v1823, 0
      %v1852 = vsel %vm1841, %v1824, 0
      %v1855 = vsel %vm1841, %v1825, 0
      %v1858 = vsel %vm1841, %v1826, 0
      %v1861 = vsel %vm1841, %v1827, 0
      %v1864 = vsel %vm1841, %v1828, 0
      %1866 = vmatprep.subr.bf16.mxu0 0
      %1867 = vmatpush1.bf16.msra.mxu0 0
      %1868 = vmatprep.subr.bf16.mxu0 0
      %1869 = vmatpush1.bf16.msra.mxu0 0
      %1870 = vmatprep.subr.bf16.mxu0 0
      %1871 = vmatpush1.bf16.msra.mxu0 0
      %1872 = vmatprep.subr.bf16.mxu0 0
      %1873 = vmatpush1.bf16.msra.mxu0 0
      %1874 = vmatprep.subr.bf16.mxu0 0
      %1875 = vmatpush1.bf16.msra.mxu0 0
      %1876 = vmatprep.subr.bf16.mxu0 0
      %1877 = vmatpush1.bf16.msra.mxu0 0
      %1878 = vmatprep.subr.bf16.mxu0 0
      %1879 = vmatpush1.bf16.msra.mxu0 %v1838
      %1880 = vmatprep.subr.bf16.mxu0 0
      %1881 = vmatpush1.bf16.msra.mxu0 %v1837
      %1882 = vmatprep.subr.bf16.mxu0 0
      %1883 = vmatpush2.bf16.msra.mxu0 0
      %1884 = vmatprep.subr.bf16.mxu0 0
      %1885 = vmatpush2.bf16.msra.mxu0 0
      %1886 = vmatprep.subr.bf16.mxu0 0
      %1887 = vmatpush2.bf16.msra.mxu0 0
      %1888 = vmatprep.subr.bf16.mxu0 0
      %1889 = vmatpush2.bf16.msra.mxu0 0
      %1890 = vmatprep.subr.bf16.mxu0 0
      %1891 = vmatpush2.bf16.msra.mxu0 0
      %1892 = vmatprep.subr.bf16.mxu0 0
      %1893 = vmatpush2.bf16.msra.mxu0 0
      %1894 = vmatprep.subr.bf16.mxu0 0
      %1895 = vmatpush2.bf16.msra.mxu0 0
      %1896 = vmatprep.subr.bf16.mxu0 0
      %1897 = vmatpush2.bf16.msra.mxu0 0
      %1898 = vmatprep.mubr.bf16.mxu0 0
      %1899 = vmatmul.mubr.bf16.gmra.mxu0 %v1843
      %v1900 = vpop.f32.mrf.mxu0
      %v1901 = vadd.f32 0.0, %v1900
      %v1902 = vpop.f32.mrf.mxu0
      %v1903 = vpop.f32.mrf.mxu0
      %v1904 = vadd.f32 0.0, %v1903
      %v1905 = vpop.f32.mrf.mxu0
      %1906 = vmatprep.mubr.bf16.mxu0 0
      %1907 = vmatmul.mubr.bf16.gmra.mxu0 %v1846
      %v1908 = vpop.f32.mrf.mxu0
      %v1909 = vadd.f32 0.0, %v1908
      %v1910 = vpop.f32.mrf.mxu0
      %v1911 = vpop.f32.mrf.mxu0
      %v1912 = vadd.f32 0.0, %v1911
      %v1913 = vpop.f32.mrf.mxu0
      %1914 = vmatprep.mubr.bf16.mxu0 0
      %1915 = vmatmul.mubr.bf16.gmra.mxu0 %v1849
      %v1916 = vpop.f32.mrf.mxu0
      %v1917 = vadd.f32 0.0, %v1916
      %v1918 = vpop.f32.mrf.mxu0
      %v1919 = vpop.f32.mrf.mxu0
      %v1920 = vadd.f32 0.0, %v1919
      %v1921 = vpop.f32.mrf.mxu0
      %1922 = vmatprep.mubr.bf16.mxu0 0
      %1923 = vmatmul.mubr.bf16.gmra.mxu0 %v1852
      %v1924 = vpop.f32.mrf.mxu0
      %v1925 = vadd.f32 0.0, %v1924
      %v1926 = vpop.f32.mrf.mxu0
      %v1927 = vpop.f32.mrf.mxu0
      %v1928 = vadd.f32 0.0, %v1927
      %v1929 = vpop.f32.mrf.mxu0
      %1930 = vmatprep.mubr.bf16.mxu0 0
      %1931 = vmatmul.mubr.bf16.gmra.mxu0 %v1855
      %v1932 = vpop.f32.mrf.mxu0
      %v1933 = vadd.f32 0.0, %v1932
      %v1934 = vpop.f32.mrf.mxu0
      %v1935 = vpop.f32.mrf.mxu0
      %v1936 = vadd.f32 0.0, %v1935
      %v1937 = vpop.f32.mrf.mxu0
      %1938 = vmatprep.mubr.bf16.mxu0 0
      %1939 = vmatmul.mubr.bf16.gmra.mxu0 %v1858
      %v1940 = vpop.f32.mrf.mxu0
      %v1941 = vadd.f32 0.0, %v1940
      %v1942 = vpop.f32.mrf.mxu0
      %v1943 = vpop.f32.mrf.mxu0
      %v1944 = vadd.f32 0.0, %v1943
      %v1945 = vpop.f32.mrf.mxu0
      %1946 = vmatprep.mubr.bf16.mxu0 0
      %1947 = vmatmul.mubr.bf16.gmra.mxu0 %v1861
      %v1948 = vpop.f32.mrf.mxu0
      %v1949 = vadd.f32 0.0, %v1948
      %v1950 = vpop.f32.mrf.mxu0
      %v1951 = vpop.f32.mrf.mxu0
      %v1952 = vadd.f32 0.0, %v1951
      %v1953 = vpop.f32.mrf.mxu0
      %1954 = vmatprep.mubr.bf16.mxu0 0
      %1955 = vmatmul.mubr.bf16.gmra.mxu0 %v1864
      %v1956 = vpop.f32.mrf.mxu0
      %v1957 = vadd.f32 0.0, %v1956
      %v1958 = vpop.f32.mrf.mxu0
      %v1959 = vpop.f32.mrf.mxu0
      %v1960 = vadd.f32 0.0, %v1959
      %v1961 = vpop.f32.mrf.mxu0
      %1962 = vdwg.mxu0
      %v1967 = vunpack.c.l.b16 %v1805
      %v1968 = vunpack.c.l.b16 %v1806
      %v1969 = vunpack.c.l.b16 %v1807
      %v1970 = vunpack.c.l.b16 %v1808
      %v1971 = vpack.c.b16 %v1968, %v1967
      %v1972 = vpack.c.b16 %v1970, %v1969
      %v1976 = vsel %vm1841, %v1809, 0
      %v1979 = vsel %vm1841, %v1810, 0
      %v1982 = vsel %vm1841, %v1811, 0
      %v1985 = vsel %vm1841, %v1812, 0
      %v1988 = vsel %vm1841, %v1813, 0
      %v1991 = vsel %vm1841, %v1814, 0
      %v1994 = vsel %vm1841, %v1815, 0
      %v1997 = vsel %vm1841, %v1816, 0
      %1999 = vmatprep.subr.bf16.mxu0 0
      %2000 = vmatpush1.bf16.msra.mxu0 0
      %2001 = vmatprep.subr.bf16.mxu0 0
      %2002 = vmatpush1.bf16.msra.mxu0 0
      %2003 = vmatprep.subr.bf16.mxu0 0
      %2004 = vmatpush1.bf16.msra.mxu0 0
      %2005 = vmatprep.subr.bf16.mxu0 0
      %2006 = vmatpush1.bf16.msra.mxu0 0
      %2007 = vmatprep.subr.bf16.mxu0 0
      %2008 = vmatpush1.bf16.msra.mxu0 0
      %2009 = vmatprep.subr.bf16.mxu0 0
      %2010 = vmatpush1.bf16.msra.mxu0 0
      %2011 = vmatprep.subr.bf16.mxu0 0
      %2012 = vmatpush1.bf16.msra.mxu0 %v1972
      %2013 = vmatprep.subr.bf16.mxu0 0
      %2014 = vmatpush1.bf16.msra.mxu0 %v1971
      %2015 = vmatprep.subr.bf16.mxu0 0
      %2016 = vmatpush2.bf16.msra.mxu0 0
      %2017 = vmatprep.subr.bf16.mxu0 0
      %2018 = vmatpush2.bf16.msra.mxu0 0
      %2019 = vmatprep.subr.bf16.mxu0 0
      %2020 = vmatpush2.bf16.msra.mxu0 0
      %2021 = vmatprep.subr.bf16.mxu0 0
      %2022 = vmatpush2.bf16.msra.mxu0 0
      %2023 = vmatprep.subr.bf16.mxu0 0
      %2024 = vmatpush2.bf16.msra.mxu0 0
      %2025 = vmatprep.subr.bf16.mxu0 0
      %2026 = vmatpush2.bf16.msra.mxu0 0
      %2027 = vmatprep.subr.bf16.mxu0 0
      %2028 = vmatpush2.bf16.msra.mxu0 0
      %2029 = vmatprep.subr.bf16.mxu0 0
      %2030 = vmatpush2.bf16.msra.mxu0 0
      %2031 = vmatprep.mubr.bf16.mxu0 0
      %2032 = vmatmul.mubr.bf16.gmra.mxu0 %v1976
      %v2033 = vpop.f32.mrf.mxu0
      %v2034 = vadd.f32 %v1901, %v2033
      %v2035 = vpop.f32.mrf.mxu0
      %v2036 = vpop.f32.mrf.mxu0
      %v2037 = vadd.f32 %v1904, %v2036
      %v2038 = vpop.f32.mrf.mxu0
      %2039 = vmatprep.mubr.bf16.mxu0 0
      %2040 = vmatmul.mubr.bf16.gmra.mxu0 %v1979
      %v2041 = vpop.f32.mrf.mxu0
      %v2042 = vadd.f32 %v1909, %v2041
      %v2043 = vpop.f32.mrf.mxu0
      %v2044 = vpop.f32.mrf.mxu0
      %v2045 = vadd.f32 %v1912, %v2044
      %v2046 = vpop.f32.mrf.mxu0
      %2047 = vmatprep.mubr.bf16.mxu0 0
      %2048 = vmatmul.mubr.bf16.gmra.mxu0 %v1982
      %v2049 = vpop.f32.mrf.mxu0
      %v2050 = vadd.f32 %v1917, %v2049
      %v2051 = vpop.f32.mrf.mxu0
      %v2052 = vpop.f32.mrf.mxu0
      %v2053 = vadd.f32 %v1920, %v2052
      %v2054 = vpop.f32.mrf.mxu0
      %2055 = vmatprep.mubr.bf16.mxu0 0
      %2056 = vmatmul.mubr.bf16.gmra.mxu0 %v1985
      %v2057 = vpop.f32.mrf.mxu0
      %v2058 = vadd.f32 %v1925, %v2057
      %v2059 = vpop.f32.mrf.mxu0
      %v2060 = vpop.f32.mrf.mxu0
      %v2061 = vadd.f32 %v1928, %v2060
      %v2062 = vpop.f32.mrf.mxu0
      %2063 = vmatprep.mubr.bf16.mxu0 0
      %2064 = vmatmul.mubr.bf16.gmra.mxu0 %v1988
      %v2065 = vpop.f32.mrf.mxu0
      %v2066 = vadd.f32 %v1933, %v2065
      %v2067 = vpop.f32.mrf.mxu0
      %v2068 = vpop.f32.mrf.mxu0
      %v2069 = vadd.f32 %v1936, %v2068
      %v2070 = vpop.f32.mrf.mxu0
      %2071 = vmatprep.mubr.bf16.mxu0 0
      %2072 = vmatmul.mubr.bf16.gmra.mxu0 %v1991
      %v2073 = vpop.f32.mrf.mxu0
      %v2074 = vadd.f32 %v1941, %v2073
      %v2075 = vpop.f32.mrf.mxu0
      %v2076 = vpop.f32.mrf.mxu0
      %v2077 = vadd.f32 %v1944, %v2076
      %v2078 = vpop.f32.mrf.mxu0
      %2079 = vmatprep.mubr.bf16.mxu0 0
      %2080 = vmatmul.mubr.bf16.gmra.mxu0 %v1994
      %v2081 = vpop.f32.mrf.mxu0
      %v2082 = vadd.f32 %v1949, %v2081
      %v2083 = vpop.f32.mrf.mxu0
      %v2084 = vpop.f32.mrf.mxu0
      %v2085 = vadd.f32 %v1952, %v2084
      %v2086 = vpop.f32.mrf.mxu0
      %2087 = vmatprep.mubr.bf16.mxu0 0
      %2088 = vmatmul.mubr.bf16.gmra.mxu0 %v1997
      %v2089 = vpop.f32.mrf.mxu0
      %v2090 = vadd.f32 %v1957, %v2089
      %v2091 = vpop.f32.mrf.mxu0
      %v2092 = vpop.f32.mrf.mxu0
      %v2093 = vadd.f32 %v1960, %v2092
      %v2094 = vpop.f32.mrf.mxu0
      %2095 = vdwg.mxu0
      %v2096 = vld [vmem:[%s8] sm:$0x1]
      %v2098 = vlaneseq
      %v2099 = vshrl.u32 %v2098, 7
      %v2100 = vsub.s32 0, %v2099
      %v2101 = vrot.slane %v2096, %v2100
      %v2103 = vadd.f32 %v2034, %v2101
      %v2104 = vadd.f32 %v2037, %v2101
      %v2105 = vadd.f32 %v2042, %v2101
      %v2106 = vadd.f32 %v2045, %v2101
      %v2107 = vadd.f32 %v2050, %v2101
      %v2108 = vadd.f32 %v2053, %v2101
      %v2109 = vadd.f32 %v2058, %v2101
      %v2110 = vadd.f32 %v2061, %v2101
      %v2111 = vadd.f32 %v2066, %v2101
      %v2112 = vadd.f32 %v2069, %v2101
      %v2113 = vadd.f32 %v2074, %v2101
      %v2114 = vadd.f32 %v2077, %v2101
      %v2115 = vadd.f32 %v2082, %v2101
      %v2116 = vadd.f32 %v2085, %v2101
      %v2117 = vadd.f32 %v2090, %v2101
      %v2118 = vadd.f32 %v2093, %v2101
      %v2119 = vmax.f32 %v2103, 0.0
      %v2120 = vmax.f32 %v2104, 0.0
      %v2121 = vmax.f32 %v2105, 0.0
      %v2122 = vmax.f32 %v2106, 0.0
      %v2123 = vmax.f32 %v2107, 0.0
      %v2124 = vmax.f32 %v2108, 0.0
      %v2125 = vmax.f32 %v2109, 0.0
      %v2126 = vmax.f32 %v2110, 0.0
      %v2127 = vmax.f32 %v2111, 0.0
      %v2128 = vmax.f32 %v2112, 0.0
      %v2129 = vmax.f32 %v2113, 0.0
      %v2130 = vmax.f32 %v2114, 0.0
      %v2131 = vmax.f32 %v2115, 0.0
      %v2132 = vmax.f32 %v2116, 0.0
      %v2133 = vmax.f32 %v2117, 0.0
      %v2134 = vmax.f32 %v2118, 0.0
      %v2135 = vadd.f32 %v2119, %v2121
      %v2136 = vadd.f32 %v2120, %v2122
      %v2137 = vadd.f32 %v2121, %v2123
      %v2138 = vadd.f32 %v2122, %v2124
      %v2139 = vadd.f32 %v2123, %v2125
      %v2140 = vadd.f32 %v2124, %v2126
      %v2141 = vadd.f32 %v2125, %v2127
      %v2142 = vadd.f32 %v2126, %v2128
      %v2143 = vadd.f32 %v2135, %v2123
      %v2144 = vadd.f32 %v2136, %v2124
      %v2145 = vadd.f32 %v2137, %v2125
      %v2146 = vadd.f32 %v2138, %v2126
      %v2147 = vadd.f32 %v2139, %v2127
      %v2148 = vadd.f32 %v2140, %v2128
      %v2149 = vadd.f32 %v2141, %v2129
      %v2150 = vadd.f32 %v2142, %v2130
      %v2151 = vadd.f32 %v2143, %v2125
      %v2152 = vadd.f32 %v2144, %v2126
      %v2153 = vadd.f32 %v2145, %v2127
      %v2154 = vadd.f32 %v2146, %v2128
      %v2155 = vadd.f32 %v2147, %v2129
      %v2156 = vadd.f32 %v2148, %v2130
      %v2157 = vadd.f32 %v2149, %v2131
      %v2158 = vadd.f32 %v2150, %v2132
      %v2159 = vadd.f32 %v2151, %v2127
      %v2160 = vadd.f32 %v2152, %v2128
      %v2161 = vadd.f32 %v2153, %v2129
      %v2162 = vadd.f32 %v2154, %v2130
      %v2163 = vadd.f32 %v2155, %v2131
      %v2164 = vadd.f32 %v2156, %v2132
      %v2165 = vadd.f32 %v2157, %v2133
      %v2166 = vadd.f32 %v2158, %v2134
      %v2167 = vmul.f32 %v2159, 0.2
      %v2168 = vmul.f32 %v2160, 0.2
      %v2169 = vmul.f32 %v2161, 0.2
      %v2170 = vmul.f32 %v2162, 0.2
      %v2171 = vmul.f32 %v2163, 0.2
      %v2172 = vmul.f32 %v2164, 0.2
      %v2173 = vmul.f32 %v2165, 0.2
      %v2174 = vmul.f32 %v2166, 0.2
      %v2175 = vpack.c.bf16 %v2168, %v2167
      %v2176 = vpack.c.bf16 %v2170, %v2169
      %v2177 = vpack.c.bf16 %v2172, %v2171
      %v2178 = vpack.c.bf16 %v2174, %v2173
      %2179 = vmatprep.subr.bf16.mxu0 0
      %2180 = vmatpush1.bf16.msra.mxu0 0
      %2181 = vmatprep.subr.bf16.mxu0 0
      %2182 = vmatpush1.bf16.msra.mxu0 0
      %2183 = vmatprep.subr.bf16.mxu0 0
      %2184 = vmatpush1.bf16.msra.mxu0 0
      %2185 = vmatprep.subr.bf16.mxu0 0
      %2186 = vmatpush1.bf16.msra.mxu0 0
      %2187 = vmatprep.subr.bf16.mxu0 0
      %2188 = vmatpush1.bf16.msra.mxu0 0
      %2189 = vmatprep.subr.bf16.mxu0 0
      %2190 = vmatpush1.bf16.msra.mxu0 0
      %2191 = vmatprep.subr.bf16.mxu0 0
      %2192 = vmatpush1.bf16.msra.mxu0 0
      %2193 = vmatprep.subr.bf16.mxu0 0
      %2194 = vmatpush1.bf16.msra.mxu0 %v2175
      %2195 = vmatprep.subr.bf16.mxu0 0
      %2196 = vmatpush2.bf16.msra.mxu0 0
      %2197 = vmatprep.subr.bf16.mxu0 0
      %2198 = vmatpush2.bf16.msra.mxu0 0
      %2199 = vmatprep.subr.bf16.mxu0 0
      %2200 = vmatpush2.bf16.msra.mxu0 0
      %2201 = vmatprep.subr.bf16.mxu0 0
      %2202 = vmatpush2.bf16.msra.mxu0 0
      %2203 = vmatprep.subr.bf16.mxu0 0
      %2204 = vmatpush2.bf16.msra.mxu0 0
      %2205 = vmatprep.subr.bf16.mxu0 0
      %2206 = vmatpush2.bf16.msra.mxu0 0
      %2207 = vmatprep.subr.bf16.mxu0 0
      %2208 = vmatpush2.bf16.msra.mxu0 0
      %2209 = vmatprep.subr.bf16.mxu0 0
      %2210 = vmatpush2.bf16.msra.mxu0 0
      %2211 = vmatprep.mubr.bf16.mxu0 0
      %2212 = vmatmul.mubr.bf16.gmra.mxu0 %v1112
      %v2213 = vpop.f32.mrf.mxu0
      %v2214 = vadd.f32 0.0, %v2213
      %v2215 = vpop.f32.mrf.mxu0
      %v2216 = vpop.f32.mrf.mxu0
      %v2217 = vadd.f32 0.0, %v2216
      %v2218 = vpop.f32.mrf.mxu0
      %2219 = vdwg.mxu0
      %2220 = vmatprep.subr.bf16.mxu0 0
      %2221 = vmatpush1.bf16.msra.mxu0 0
      %2222 = vmatprep.subr.bf16.mxu0 0
      %2223 = vmatpush1.bf16.msra.mxu0 0
      %2224 = vmatprep.subr.bf16.mxu0 0
      %2225 = vmatpush1.bf16.msra.mxu0 0
      %2226 = vmatprep.subr.bf16.mxu0 0
      %2227 = vmatpush1.bf16.msra.mxu0 0
      %2228 = vmatprep.subr.bf16.mxu0 0
      %2229 = vmatpush1.bf16.msra.mxu0 0
      %2230 = vmatprep.subr.bf16.mxu0 0
      %2231 = vmatpush1.bf16.msra.mxu0 0
      %2232 = vmatprep.subr.bf16.mxu0 0
      %2233 = vmatpush1.bf16.msra.mxu0 0
      %2234 = vmatprep.subr.bf16.mxu0 0
      %2235 = vmatpush1.bf16.msra.mxu0 %v2176
      %2236 = vmatprep.subr.bf16.mxu0 0
      %2237 = vmatpush2.bf16.msra.mxu0 0
      %2238 = vmatprep.subr.bf16.mxu0 0
      %2239 = vmatpush2.bf16.msra.mxu0 0
      %2240 = vmatprep.subr.bf16.mxu0 0
      %2241 = vmatpush2.bf16.msra.mxu0 0
      %2242 = vmatprep.subr.bf16.mxu0 0
      %2243 = vmatpush2.bf16.msra.mxu0 0
      %2244 = vmatprep.subr.bf16.mxu0 0
      %2245 = vmatpush2.bf16.msra.mxu0 0
      %2246 = vmatprep.subr.bf16.mxu0 0
      %2247 = vmatpush2.bf16.msra.mxu0 0
      %2248 = vmatprep.subr.bf16.mxu0 0
      %2249 = vmatpush2.bf16.msra.mxu0 0
      %2250 = vmatprep.subr.bf16.mxu0 0
      %2251 = vmatpush2.bf16.msra.mxu0 0
      %2252 = vmatprep.mubr.bf16.mxu0 0
      %2253 = vmatmul.mubr.bf16.gmra.mxu0 %v1112
      %v2254 = vpop.f32.mrf.mxu0
      %v2255 = vadd.f32 0.0, %v2254
      %v2256 = vpop.f32.mrf.mxu0
      %v2257 = vpop.f32.mrf.mxu0
      %v2258 = vadd.f32 0.0, %v2257
      %v2259 = vpop.f32.mrf.mxu0
      %2260 = vdwg.mxu0
      %2261 = vmatprep.subr.bf16.mxu0 0
      %2262 = vmatpush1.bf16.msra.mxu0 0
      %2263 = vmatprep.subr.bf16.mxu0 0
      %2264 = vmatpush1.bf16.msra.mxu0 0
      %2265 = vmatprep.subr.bf16.mxu0 0
      %2266 = vmatpush1.bf16.msra.mxu0 0
      %2267 = vmatprep.subr.bf16.mxu0 0
      %2268 = vmatpush1.bf16.msra.mxu0 0
      %2269 = vmatprep.subr.bf16.mxu0 0
      %2270 = vmatpush1.bf16.msra.mxu0 0
      %2271 = vmatprep.subr.bf16.mxu0 0
      %2272 = vmatpush1.bf16.msra.mxu0 0
      %2273 = vmatprep.subr.bf16.mxu0 0
      %2274 = vmatpush1.bf16.msra.mxu0 0
      %2275 = vmatprep.subr.bf16.mxu0 0
      %2276 = vmatpush1.bf16.msra.mxu0 %v2177
      %2277 = vmatprep.subr.bf16.mxu0 0
      %2278 = vmatpush2.bf16.msra.mxu0 0
      %2279 = vmatprep.subr.bf16.mxu0 0
      %2280 = vmatpush2.bf16.msra.mxu0 0
      %2281 = vmatprep.subr.bf16.mxu0 0
      %2282 = vmatpush2.bf16.msra.mxu0 0
      %2283 = vmatprep.subr.bf16.mxu0 0
      %2284 = vmatpush2.bf16.msra.mxu0 0
      %2285 = vmatprep.subr.bf16.mxu0 0
      %2286 = vmatpush2.bf16.msra.mxu0 0
      %2287 = vmatprep.subr.bf16.mxu0 0
      %2288 = vmatpush2.bf16.msra.mxu0 0
      %2289 = vmatprep.subr.bf16.mxu0 0
      %2290 = vmatpush2.bf16.msra.mxu0 0
      %2291 = vmatprep.subr.bf16.mxu0 0
      %2292 = vmatpush2.bf16.msra.mxu0 0
      %2293 = vmatprep.mubr.bf16.mxu0 0
      %2294 = vmatmul.mubr.bf16.gmra.mxu0 %v1112
      %v2295 = vpop.f32.mrf.mxu0
      %v2296 = vadd.f32 0.0, %v2295
      %v2297 = vpop.f32.mrf.mxu0
      %v2298 = vpop.f32.mrf.mxu0
      %v2299 = vadd.f32 0.0, %v2298
      %v2300 = vpop.f32.mrf.mxu0
      %2301 = vdwg.mxu0
      %2302 = vmatprep.subr.bf16.mxu0 0
      %2303 = vmatpush1.bf16.msra.mxu0 0
      %2304 = vmatprep.subr.bf16.mxu0 0
      %2305 = vmatpush1.bf16.msra.mxu0 0
      %2306 = vmatprep.subr.bf16.mxu0 0
      %2307 = vmatpush1.bf16.msra.mxu0 0
      %2308 = vmatprep.subr.bf16.mxu0 0
      %2309 = vmatpush1.bf16.msra.mxu0 0
      %2310 = vmatprep.subr.bf16.mxu0 0
      %2311 = vmatpush1.bf16.msra.mxu0 0
      %2312 = vmatprep.subr.bf16.mxu0 0
      %2313 = vmatpush1.bf16.msra.mxu0 0
      %2314 = vmatprep.subr.bf16.mxu0 0
      %2315 = vmatpush1.bf16.msra.mxu0 0
      %2316 = vmatprep.subr.bf16.mxu0 0
      %2317 = vmatpush1.bf16.msra.mxu0 %v2178
      %2318 = vmatprep.subr.bf16.mxu0 0
      %2319 = vmatpush2.bf16.msra.mxu0 0
      %2320 = vmatprep.subr.bf16.mxu0 0
      %2321 = vmatpush2.bf16.msra.mxu0 0
      %2322 = vmatprep.subr.bf16.mxu0 0
      %2323 = vmatpush2.bf16.msra.mxu0 0
      %2324 = vmatprep.subr.bf16.mxu0 0
      %2325 = vmatpush2.bf16.msra.mxu0 0
      %2326 = vmatprep.subr.bf16.mxu0 0
      %2327 = vmatpush2.bf16.msra.mxu0 0
      %2328 = vmatprep.subr.bf16.mxu0 0
      %2329 = vmatpush2.bf16.msra.mxu0 0
      %2330 = vmatprep.subr.bf16.mxu0 0
      %2331 = vmatpush2.bf16.msra.mxu0 0
      %2332 = vmatprep.subr.bf16.mxu0 0
      %2333 = vmatpush2.bf16.msra.mxu0 0
      %2334 = vmatprep.mubr.bf16.mxu0 0
      %2335 = vmatmul.mubr.bf16.gmra.mxu0 %v1112
      %v2336 = vpop.f32.mrf.mxu0
      %v2337 = vadd.f32 0.0, %v2336
      %v2338 = vpop.f32.mrf.mxu0
      %v2339 = vpop.f32.mrf.mxu0
      %v2340 = vadd.f32 0.0, %v2339
      %v2341 = vpop.f32.mrf.mxu0
      %2342 = vdwg.mxu0
      %v2343 = vmax.f32 %v2214, 0.0
      %v2344 = vmax.f32 %v2217, 0.0
      %v2345 = vmax.f32 %v2255, 0.0
      %v2346 = vmax.f32 %v2258, 0.0
      %v2347 = vmax.f32 %v2296, 0.0
      %v2348 = vmax.f32 %v2299, 0.0
      %v2349 = vmax.f32 %v2337, 0.0
      %v2350 = vmax.f32 %v2340, 0.0
      %2351 = vmatprep.subr.bf16.mxu0 0
      %2352 = vmatpush1.bf16.msra.mxu0 0
      %2353 = vmatprep.subr.bf16.mxu0 0
      %2354 = vmatpush1.bf16.msra.mxu0 0
      %2355 = vmatprep.subr.bf16.mxu0 0
      %2356 = vmatpush1.bf16.msra.mxu0 0
      %2357 = vmatprep.subr.bf16.mxu0 0
      %2358 = vmatpush1.bf16.msra.mxu0 0
      %2359 = vmatprep.subr.bf16.mxu0 0
      %2360 = vmatpush1.bf16.msra.mxu0 0
      %2361 = vmatprep.subr.bf16.mxu0 0
      %2362 = vmatpush1.bf16.msra.mxu0 0
      %2363 = vmatprep.subr.bf16.mxu0 0
      %2364 = vmatpush1.bf16.msra.mxu0 0
      %2365 = vmatprep.subr.bf16.mxu0 0
      %2366 = vmatpush1.bf16.msra.mxu0 %v2175
      %2367 = vmatprep.subr.bf16.mxu0 0
      %2368 = vmatpush2.bf16.msra.mxu0 0
      %2369 = vmatprep.subr.bf16.mxu0 0
      %2370 = vmatpush2.bf16.msra.mxu0 0
      %2371 = vmatprep.subr.bf16.mxu0 0
      %2372 = vmatpush2.bf16.msra.mxu0 0
      %2373 = vmatprep.subr.bf16.mxu0 0
      %2374 = vmatpush2.bf16.msra.mxu0 0
      %2375 = vmatprep.subr.bf16.mxu0 0
      %2376 = vmatpush2.bf16.msra.mxu0 0
      %2377 = vmatprep.subr.bf16.mxu0 0
      %2378 = vmatpush2.bf16.msra.mxu0 0
      %2379 = vmatprep.subr.bf16.mxu0 0
      %2380 = vmatpush2.bf16.msra.mxu0 0
      %2381 = vmatprep.subr.bf16.mxu0 0
      %2382 = vmatpush2.bf16.msra.mxu0 0
      %2383 = vmatprep.mubr.bf16.mxu0 0
      %2384 = vmatmul.mubr.bf16.gmra.mxu0 %v1459
      %v2385 = vpop.f32.mrf.mxu0
      %v2386 = vadd.f32 0.0, %v2385
      %v2387 = vpop.f32.mrf.mxu0
      %v2388 = vpop.f32.mrf.mxu0
      %v2389 = vadd.f32 0.0, %v2388
      %v2390 = vpop.f32.mrf.mxu0
      %2391 = vdwg.mxu0
      %2392 = vmatprep.subr.bf16.mxu0 0
      %2393 = vmatpush1.bf16.msra.mxu0 0
      %2394 = vmatprep.subr.bf16.mxu0 0
      %2395 = vmatpush1.bf16.msra.mxu0 0
      %2396 = vmatprep.subr.bf16.mxu0 0
      %2397 = vmatpush1.bf16.msra.mxu0 0
      %2398 = vmatprep.subr.bf16.mxu0 0
      %2399 = vmatpush1.bf16.msra.mxu0 0
      %2400 = vmatprep.subr.bf16.mxu0 0
      %2401 = vmatpush1.bf16.msra.mxu0 0
      %2402 = vmatprep.subr.bf16.mxu0 0
      %2403 = vmatpush1.bf16.msra.mxu0 0
      %2404 = vmatprep.subr.bf16.mxu0 0
      %2405 = vmatpush1.bf16.msra.mxu0 0
      %2406 = vmatprep.subr.bf16.mxu0 0
      %2407 = vmatpush1.bf16.msra.mxu0 %v2176
      %2408 = vmatprep.subr.bf16.mxu0 0
      %2409 = vmatpush2.bf16.msra.mxu0 0
      %2410 = vmatprep.subr.bf16.mxu0 0
      %2411 = vmatpush2.bf16.msra.mxu0 0
      %2412 = vmatprep.subr.bf16.mxu0 0
      %2413 = vmatpush2.bf16.msra.mxu0 0
      %2414 = vmatprep.subr.bf16.mxu0 0
      %2415 = vmatpush2.bf16.msra.mxu0 0
      %2416 = vmatprep.subr.bf16.mxu0 0
      %2417 = vmatpush2.bf16.msra.mxu0 0
      %2418 = vmatprep.subr.bf16.mxu0 0
      %2419 = vmatpush2.bf16.msra.mxu0 0
      %2420 = vmatprep.subr.bf16.mxu0 0
      %2421 = vmatpush2.bf16.msra.mxu0 0
      %2422 = vmatprep.subr.bf16.mxu0 0
      %2423 = vmatpush2.bf16.msra.mxu0 0
      %2424 = vmatprep.mubr.bf16.mxu0 0
      %2425 = vmatmul.mubr.bf16.gmra.mxu0 %v1459
      %v2426 = vpop.f32.mrf.mxu0
      %v2427 = vadd.f32 0.0, %v2426
      %v2428 = vpop.f32.mrf.mxu0
      %v2429 = vpop.f32.mrf.mxu0
      %v2430 = vadd.f32 0.0, %v2429
      %v2431 = vpop.f32.mrf.mxu0
      %2432 = vdwg.mxu0
      %2433 = vmatprep.subr.bf16.mxu0 0
      %2434 = vmatpush1.bf16.msra.mxu0 0
      %2435 = vmatprep.subr.bf16.mxu0 0
      %2436 = vmatpush1.bf16.msra.mxu0 0
      %2437 = vmatprep.subr.bf16.mxu0 0
      %2438 = vmatpush1.bf16.msra.mxu0 0
      %2439 = vmatprep.subr.bf16.mxu0 0
      %2440 = vmatpush1.bf16.msra.mxu0 0
      %2441 = vmatprep.subr.bf16.mxu0 0
      %2442 = vmatpush1.bf16.msra.mxu0 0
      %2443 = vmatprep.subr.bf16.mxu0 0
      %2444 = vmatpush1.bf16.msra.mxu0 0
      %2445 = vmatprep.subr.bf16.mxu0 0
      %2446 = vmatpush1.bf16.msra.mxu0 0
      %2447 = vmatprep.subr.bf16.mxu0 0
      %2448 = vmatpush1.bf16.msra.mxu0 %v2177
      %2449 = vmatprep.subr.bf16.mxu0 0
      %2450 = vmatpush2.bf16.msra.mxu0 0
      %2451 = vmatprep.subr.bf16.mxu0 0
      %2452 = vmatpush2.bf16.msra.mxu0 0
      %2453 = vmatprep.subr.bf16.mxu0 0
      %2454 = vmatpush2.bf16.msra.mxu0 0
      %2455 = vmatprep.subr.bf16.mxu0 0
      %2456 = vmatpush2.bf16.msra.mxu0 0
      %2457 = vmatprep.subr.bf16.mxu0 0
      %2458 = vmatpush2.bf16.msra.mxu0 0
      %2459 = vmatprep.subr.bf16.mxu0 0
      %2460 = vmatpush2.bf16.msra.mxu0 0
      %2461 = vmatprep.subr.bf16.mxu0 0
      %2462 = vmatpush2.bf16.msra.mxu0 0
      %2463 = vmatprep.subr.bf16.mxu0 0
      %2464 = vmatpush2.bf16.msra.mxu0 0
      %2465 = vmatprep.mubr.bf16.mxu0 0
      %2466 = vmatmul.mubr.bf16.gmra.mxu0 %v1459
      %v2467 = vpop.f32.mrf.mxu0
      %v2468 = vadd.f32 0.0, %v2467
      %v2469 = vpop.f32.mrf.mxu0
      %v2470 = vpop.f32.mrf.mxu0
      %v2471 = vadd.f32 0.0, %v2470
      %v2472 = vpop.f32.mrf.mxu0
      %2473 = vdwg.mxu0
      %2474 = vmatprep.subr.bf16.mxu0 0
      %2475 = vmatpush1.bf16.msra.mxu0 0
      %2476 = vmatprep.subr.bf16.mxu0 0
      %2477 = vmatpush1.bf16.msra.mxu0 0
      %2478 = vmatprep.subr.bf16.mxu0 0
      %2479 = vmatpush1.bf16.msra.mxu0 0
      %2480 = vmatprep.subr.bf16.mxu0 0
      %2481 = vmatpush1.bf16.msra.mxu0 0
      %2482 = vmatprep.subr.bf16.mxu0 0
      %2483 = vmatpush1.bf16.msra.mxu0 0
      %2484 = vmatprep.subr.bf16.mxu0 0
      %2485 = vmatpush1.bf16.msra.mxu0 0
      %2486 = vmatprep.subr.bf16.mxu0 0
      %2487 = vmatpush1.bf16.msra.mxu0 0
      %2488 = vmatprep.subr.bf16.mxu0 0
      %2489 = vmatpush1.bf16.msra.mxu0 %v2178
      %2490 = vmatprep.subr.bf16.mxu0 0
      %2491 = vmatpush2.bf16.msra.mxu0 0
      %2492 = vmatprep.subr.bf16.mxu0 0
      %2493 = vmatpush2.bf16.msra.mxu0 0
      %2494 = vmatprep.subr.bf16.mxu0 0
      %2495 = vmatpush2.bf16.msra.mxu0 0
      %2496 = vmatprep.subr.bf16.mxu0 0
      %2497 = vmatpush2.bf16.msra.mxu0 0
      %2498 = vmatprep.subr.bf16.mxu0 0
      %2499 = vmatpush2.bf16.msra.mxu0 0
      %2500 = vmatprep.subr.bf16.mxu0 0
      %2501 = vmatpush2.bf16.msra.mxu0 0
      %2502 = vmatprep.subr.bf16.mxu0 0
      %2503 = vmatpush2.bf16.msra.mxu0 0
      %2504 = vmatprep.subr.bf16.mxu0 0
      %2505 = vmatpush2.bf16.msra.mxu0 0
      %2506 = vmatprep.mubr.bf16.mxu0 0
      %2507 = vmatmul.mubr.bf16.gmra.mxu0 %v1459
      %v2508 = vpop.f32.mrf.mxu0
      %v2509 = vadd.f32 0.0, %v2508
      %v2510 = vpop.f32.mrf.mxu0
      %v2511 = vpop.f32.mrf.mxu0
      %v2512 = vadd.f32 0.0, %v2511
      %v2513 = vpop.f32.mrf.mxu0
      %2514 = vdwg.mxu0
      %v2515 = vmax.f32 %v2386, 0.0
      %v2516 = vmax.f32 %v2389, 0.0
      %v2517 = vmax.f32 %v2427, 0.0
      %v2518 = vmax.f32 %v2430, 0.0
      %v2519 = vmax.f32 %v2468, 0.0
      %v2520 = vmax.f32 %v2471, 0.0
      %v2521 = vmax.f32 %v2509, 0.0
      %v2522 = vmax.f32 %v2512, 0.0
      %v2523 = vld [vmem:[%s9] sm:$0xf]
      %v2524 = vld [vmem:[%s9 + $0x4] sm:$0xf]
      %v2525 = vld [vmem:[%s9 + $0x8] sm:$0xf]
      %v2526 = vld [vmem:[%s9 + $0xc] sm:$0xf]
      %v2527 = vpack.c.bf16 %v2344, %v2343
      %v2528 = vpack.c.bf16 %v2346, %v2345
      %v2529 = vpack.c.bf16 %v2348, %v2347
      %v2530 = vpack.c.bf16 %v2350, %v2349
      %v2531 = vld [vmem:[%s9 + $0x10] sm:$0xf]
      %v2532 = vld [vmem:[%s9 + $0x14] sm:$0xf]
      %v2533 = vld [vmem:[%s9 + $0x18] sm:$0xf]
      %v2534 = vld [vmem:[%s9 + $0x1c] sm:$0xf]
      %v2535 = vpack.c.bf16 %v2516, %v2515
      %v2536 = vpack.c.bf16 %v2518, %v2517
      %v2537 = vpack.c.bf16 %v2520, %v2519
      %v2538 = vpack.c.bf16 %v2522, %v2521
      %v2543 = vunpack.c.l.b16 %v2531
      %v2544 = vunpack.c.l.b16 %v2532
      %v2545 = vunpack.c.l.b16 %v2533
      %v2546 = vunpack.c.l.b16 %v2534
      %v2547 = vpack.c.b16 %v2544, %v2543
      %v2548 = vpack.c.b16 %v2546, %v2545
      %v2552 = vsel %vm1841, %v2535, 0
      %v2555 = vsel %vm1841, %v2536, 0
      %v2558 = vsel %vm1841, %v2537, 0
      %v2561 = vsel %vm1841, %v2538, 0
      %2563 = vmatprep.subr.bf16.mxu0 0
      %2564 = vmatpush1.bf16.msra.mxu0 0
      %2565 = vmatprep.subr.bf16.mxu0 0
      %2566 = vmatpush1.bf16.msra.mxu0 0
      %2567 = vmatprep.subr.bf16.mxu0 0
      %2568 = vmatpush1.bf16.msra.mxu0 0
      %2569 = vmatprep.subr.bf16.mxu0 0
      %2570 = vmatpush1.bf16.msra.mxu0 0
      %2571 = vmatprep.subr.bf16.mxu0 0
      %2572 = vmatpush1.bf16.msra.mxu0 0
      %2573 = vmatprep.subr.bf16.mxu0 0
      %2574 = vmatpush1.bf16.msra.mxu0 0
      %2575 = vmatprep.subr.bf16.mxu0 0
      %2576 = vmatpush1.bf16.msra.mxu0 %v2548
      %2577 = vmatprep.subr.bf16.mxu0 0
      %2578 = vmatpush1.bf16.msra.mxu0 %v2547
      %2579 = vmatprep.subr.bf16.mxu0 0
      %2580 = vmatpush2.bf16.msra.mxu0 0
      %2581 = vmatprep.subr.bf16.mxu0 0
      %2582 = vmatpush2.bf16.msra.mxu0 0
      %2583 = vmatprep.subr.bf16.mxu0 0
      %2584 = vmatpush2.bf16.msra.mxu0 0
      %2585 = vmatprep.subr.bf16.mxu0 0
      %2586 = vmatpush2.bf16.msra.mxu0 0
      %2587 = vmatprep.subr.bf16.mxu0 0
      %2588 = vmatpush2.bf16.msra.mxu0 0
      %2589 = vmatprep.subr.bf16.mxu0 0
      %2590 = vmatpush2.bf16.msra.mxu0 0
      %2591 = vmatprep.subr.bf16.mxu0 0
      %2592 = vmatpush2.bf16.msra.mxu0 0
      %2593 = vmatprep.subr.bf16.mxu0 0
      %2594 = vmatpush2.bf16.msra.mxu0 0
      %2595 = vmatprep.mubr.bf16.mxu0 0
      %2596 = vmatmul.mubr.bf16.gmra.mxu0 %v2552
      %v2597 = vpop.f32.mrf.mxu0
      %v2598 = vadd.f32 0.0, %v2597
      %v2599 = vpop.f32.mrf.mxu0
      %v2600 = vpop.f32.mrf.mxu0
      %v2601 = vadd.f32 0.0, %v2600
      %v2602 = vpop.f32.mrf.mxu0
      %2603 = vmatprep.mubr.bf16.mxu0 0
      %2604 = vmatmul.mubr.bf16.gmra.mxu0 %v2555
      %v2605 = vpop.f32.mrf.mxu0
      %v2606 = vadd.f32 0.0, %v2605
      %v2607 = vpop.f32.mrf.mxu0
      %v2608 = vpop.f32.mrf.mxu0
      %v2609 = vadd.f32 0.0, %v2608
      %v2610 = vpop.f32.mrf.mxu0
      %2611 = vmatprep.mubr.bf16.mxu0 0
      %2612 = vmatmul.mubr.bf16.gmra.mxu0 %v2558
      %v2613 = vpop.f32.mrf.mxu0
      %v2614 = vadd.f32 0.0, %v2613
      %v2615 = vpop.f32.mrf.mxu0
      %v2616 = vpop.f32.mrf.mxu0
      %v2617 = vadd.f32 0.0, %v2616
      %v2618 = vpop.f32.mrf.mxu0
      %2619 = vmatprep.mubr.bf16.mxu0 0
      %2620 = vmatmul.mubr.bf16.gmra.mxu0 %v2561
      %v2621 = vpop.f32.mrf.mxu0
      %v2622 = vadd.f32 0.0, %v2621
      %v2623 = vpop.f32.mrf.mxu0
      %v2624 = vpop.f32.mrf.mxu0
      %v2625 = vadd.f32 0.0, %v2624
      %v2626 = vpop.f32.mrf.mxu0
      %2627 = vdwg.mxu0
      %v2632 = vunpack.c.l.b16 %v2523
      %v2633 = vunpack.c.l.b16 %v2524
      %v2634 = vunpack.c.l.b16 %v2525
      %v2635 = vunpack.c.l.b16 %v2526
      %v2636 = vpack.c.b16 %v2633, %v2632
      %v2637 = vpack.c.b16 %v2635, %v2634
      %v2641 = vsel %vm1841, %v2527, 0
      %v2644 = vsel %vm1841, %v2528, 0
      %v2647 = vsel %vm1841, %v2529, 0
      %v2650 = vsel %vm1841, %v2530, 0
      %2652 = vmatprep.subr.bf16.mxu0 0
      %2653 = vmatpush1.bf16.msra.mxu0 0
      %2654 = vmatprep.subr.bf16.mxu0 0
      %2655 = vmatpush1.bf16.msra.mxu0 0
      %2656 = vmatprep.subr.bf16.mxu0 0
      %2657 = vmatpush1.bf16.msra.mxu0 0
      %2658 = vmatprep.subr.bf16.mxu0 0
      %2659 = vmatpush1.bf16.msra.mxu0 0
      %2660 = vmatprep.subr.bf16.mxu0 0
      %2661 = vmatpush1.bf16.msra.mxu0 0
      %2662 = vmatprep.subr.bf16.mxu0 0
      %2663 = vmatpush1.bf16.msra.mxu0 0
      %2664 = vmatprep.subr.bf16.mxu0 0
      %2665 = vmatpush1.bf16.msra.mxu0 %v2637
      %2666 = vmatprep.subr.bf16.mxu0 0
      %2667 = vmatpush1.bf16.msra.mxu0 %v2636
      %2668 = vmatprep.subr.bf16.mxu0 0
      %2669 = vmatpush2.bf16.msra.mxu0 0
      %2670 = vmatprep.subr.bf16.mxu0 0
      %2671 = vmatpush2.bf16.msra.mxu0 0
      %2672 = vmatprep.subr.bf16.mxu0 0
      %2673 = vmatpush2.bf16.msra.mxu0 0
      %2674 = vmatprep.subr.bf16.mxu0 0
      %2675 = vmatpush2.bf16.msra.mxu0 0
      %2676 = vmatprep.subr.bf16.mxu0 0
      %2677 = vmatpush2.bf16.msra.mxu0 0
      %2678 = vmatprep.subr.bf16.mxu0 0
      %2679 = vmatpush2.bf16.msra.mxu0 0
      %2680 = vmatprep.subr.bf16.mxu0 0
      %2681 = vmatpush2.bf16.msra.mxu0 0
      %2682 = vmatprep.subr.bf16.mxu0 0
      %2683 = vmatpush2.bf16.msra.mxu0 0
      %2684 = vmatprep.mubr.bf16.mxu0 0
      %2685 = vmatmul.mubr.bf16.gmra.mxu0 %v2641
      %v2686 = vpop.f32.mrf.mxu0
      %v2687 = vadd.f32 %v2598, %v2686
      %v2688 = vpop.f32.mrf.mxu0
      %v2689 = vpop.f32.mrf.mxu0
      %v2690 = vadd.f32 %v2601, %v2689
      %v2691 = vpop.f32.mrf.mxu0
      %2692 = vmatprep.mubr.bf16.mxu0 0
      %2693 = vmatmul.mubr.bf16.gmra.mxu0 %v2644
      %v2694 = vpop.f32.mrf.mxu0
      %v2695 = vadd.f32 %v2606, %v2694
      %v2696 = vpop.f32.mrf.mxu0
      %v2697 = vpop.f32.mrf.mxu0
      %v2698 = vadd.f32 %v2609, %v2697
      %v2699 = vpop.f32.mrf.mxu0
      %2700 = vmatprep.mubr.bf16.mxu0 0
      %2701 = vmatmul.mubr.bf16.gmra.mxu0 %v2647
      %v2702 = vpop.f32.mrf.mxu0
      %v2703 = vadd.f32 %v2614, %v2702
      %v2704 = vpop.f32.mrf.mxu0
      %v2705 = vpop.f32.mrf.mxu0
      %v2706 = vadd.f32 %v2617, %v2705
      %v2707 = vpop.f32.mrf.mxu0
      %2708 = vmatprep.mubr.bf16.mxu0 0
      %2709 = vmatmul.mubr.bf16.gmra.mxu0 %v2650
      %v2710 = vpop.f32.mrf.mxu0
      %v2711 = vadd.f32 %v2622, %v2710
      %v2712 = vpop.f32.mrf.mxu0
      %v2713 = vpop.f32.mrf.mxu0
      %v2714 = vadd.f32 %v2625, %v2713
      %v2715 = vpop.f32.mrf.mxu0
      %2716 = vdwg.mxu0
      %v2717 = vld [vmem:[%s10] sm:$0x1]
      %v2719 = vlaneseq
      %v2720 = vshrl.u32 %v2719, 7
      %v2721 = vsub.s32 0, %v2720
      %v2722 = vrot.slane %v2717, %v2721
      %v2724 = vadd.f32 %v2687, %v2722
      %v2725 = vadd.f32 %v2690, %v2722
      %v2726 = vadd.f32 %v2695, %v2722
      %v2727 = vadd.f32 %v2698, %v2722
      %v2728 = vadd.f32 %v2703, %v2722
      %v2729 = vadd.f32 %v2706, %v2722
      %v2730 = vadd.f32 %v2711, %v2722
      %v2731 = vadd.f32 %v2714, %v2722
      %v2732 = vmax.f32 %v2724, 0.0
      %v2733 = vmax.f32 %v2725, 0.0
      %v2734 = vmax.f32 %v2726, 0.0
      %v2735 = vmax.f32 %v2727, 0.0
      %v2736 = vmax.f32 %v2728, 0.0
      %v2737 = vmax.f32 %v2729, 0.0
      %v2738 = vmax.f32 %v2730, 0.0
      %v2739 = vmax.f32 %v2731, 0.0
      %v2740 = vadd.f32 %v2732, %v2734
      %v2741 = vadd.f32 %v2733, %v2735
      %v2742 = vadd.f32 %v2740, %v2736
      %v2743 = vadd.f32 %v2741, %v2737
      %v2744 = vadd.f32 %v2742, %v2738
      %v2745 = vadd.f32 %v2743, %v2739
      %v2746 = vmul.f32 %v2744, 0.25
      %v2747 = vmul.f32 %v2745, 0.25
      %v2748 = vpack.c.bf16 %v2747, %v2746
      %2749 = vmatprep.subr.bf16.mxu0 0
      %2750 = vmatpush1.bf16.msra.mxu0 0
      %2751 = vmatprep.subr.bf16.mxu0 0
      %2752 = vmatpush1.bf16.msra.mxu0 0
      %2753 = vmatprep.subr.bf16.mxu0 0
      %2754 = vmatpush1.bf16.msra.mxu0 0
      %2755 = vmatprep.subr.bf16.mxu0 0
      %2756 = vmatpush1.bf16.msra.mxu0 0
      %2757 = vmatprep.subr.bf16.mxu0 0
      %2758 = vmatpush1.bf16.msra.mxu0 0
      %2759 = vmatprep.subr.bf16.mxu0 0
      %2760 = vmatpush1.bf16.msra.mxu0 0
      %2761 = vmatprep.subr.bf16.mxu0 0
      %2762 = vmatpush1.bf16.msra.mxu0 0
      %2763 = vmatprep.subr.bf16.mxu0 0
      %2764 = vmatpush1.bf16.msra.mxu0 %v2748
      %2765 = vmatprep.subr.bf16.mxu0 0
      %2766 = vmatpush2.bf16.msra.mxu0 0
      %2767 = vmatprep.subr.bf16.mxu0 0
      %2768 = vmatpush2.bf16.msra.mxu0 0
      %2769 = vmatprep.subr.bf16.mxu0 0
      %2770 = vmatpush2.bf16.msra.mxu0 0
      %2771 = vmatprep.subr.bf16.mxu0 0
      %2772 = vmatpush2.bf16.msra.mxu0 0
      %2773 = vmatprep.subr.bf16.mxu0 0
      %2774 = vmatpush2.bf16.msra.mxu0 0
      %2775 = vmatprep.subr.bf16.mxu0 0
      %2776 = vmatpush2.bf16.msra.mxu0 0
      %2777 = vmatprep.subr.bf16.mxu0 0
      %2778 = vmatpush2.bf16.msra.mxu0 0
      %2779 = vmatprep.subr.bf16.mxu0 0
      %2780 = vmatpush2.bf16.msra.mxu0 0
      %2781 = vmatprep.mubr.bf16.mxu0 0
      %2782 = vmatmul.mubr.bf16.gmra.mxu0 %v1112
      %v2783 = vpop.f32.mrf.mxu0
      %v2784 = vadd.f32 0.0, %v2783
      %v2785 = vpop.f32.mrf.mxu0
      %v2786 = vpop.f32.mrf.mxu0
      %v2787 = vadd.f32 0.0, %v2786
      %v2788 = vpop.f32.mrf.mxu0
      %2789 = vdwg.mxu0
      %v2790 = vmax.f32 %v2784, 0.0
      %v2791 = vmax.f32 %v2787, 0.0
      %2792 = vmatprep.subr.bf16.mxu0 0
      %2793 = vmatpush1.bf16.msra.mxu0 0
      %2794 = vmatprep.subr.bf16.mxu0 0
      %2795 = vmatpush1.bf16.msra.mxu0 0
      %2796 = vmatprep.subr.bf16.mxu0 0
      %2797 = vmatpush1.bf16.msra.mxu0 0
      %2798 = vmatprep.subr.bf16.mxu0 0
      %2799 = vmatpush1.bf16.msra.mxu0 0
      %2800 = vmatprep.subr.bf16.mxu0 0
      %2801 = vmatpush1.bf16.msra.mxu0 0
      %2802 = vmatprep.subr.bf16.mxu0 0
      %2803 = vmatpush1.bf16.msra.mxu0 0
      %2804 = vmatprep.subr.bf16.mxu0 0
      %2805 = vmatpush1.bf16.msra.mxu0 0
      %2806 = vmatprep.subr.bf16.mxu0 0
      %2807 = vmatpush1.bf16.msra.mxu0 %v2748
      %2808 = vmatprep.subr.bf16.mxu0 0
      %2809 = vmatpush2.bf16.msra.mxu0 0
      %2810 = vmatprep.subr.bf16.mxu0 0
      %2811 = vmatpush2.bf16.msra.mxu0 0
      %2812 = vmatprep.subr.bf16.mxu0 0
      %2813 = vmatpush2.bf16.msra.mxu0 0
      %2814 = vmatprep.subr.bf16.mxu0 0
      %2815 = vmatpush2.bf16.msra.mxu0 0
      %2816 = vmatprep.subr.bf16.mxu0 0
      %2817 = vmatpush2.bf16.msra.mxu0 0
      %2818 = vmatprep.subr.bf16.mxu0 0
      %2819 = vmatpush2.bf16.msra.mxu0 0
      %2820 = vmatprep.subr.bf16.mxu0 0
      %2821 = vmatpush2.bf16.msra.mxu0 0
      %2822 = vmatprep.subr.bf16.mxu0 0
      %2823 = vmatpush2.bf16.msra.mxu0 0
      %2824 = vmatprep.mubr.bf16.mxu0 0
      %2825 = vmatmul.mubr.bf16.gmra.mxu0 %v1459
      %v2826 = vpop.f32.mrf.mxu0
      %v2827 = vadd.f32 0.0, %v2826
      %v2828 = vpop.f32.mrf.mxu0
      %v2829 = vpop.f32.mrf.mxu0
      %v2830 = vadd.f32 0.0, %v2829
      %v2831 = vpop.f32.mrf.mxu0
      %2832 = vdwg.mxu0
      %v2833 = vmax.f32 %v2827, 0.0
      %v2834 = vmax.f32 %v2830, 0.0
      %v2835 = vld [vmem:[%s11] sm:$0xff]
      %v2836 = vld [vmem:[%s11 + $0x8] sm:$0xff]
      %v2837 = vld [vmem:[%s11 + $0x10] sm:$0xff]
      %v2838 = vld [vmem:[%s11 + $0x18] sm:$0xff]
      %v2839 = vld [vmem:[%s11 + $0x20] sm:$0xff]
      %v2840 = vld [vmem:[%s11 + $0x28] sm:$0xff]
      %v2841 = vld [vmem:[%s11 + $0x30] sm:$0xff]
      %v2842 = vld [vmem:[%s11 + $0x38] sm:$0xff]
      %v2847 = vunpack.c.l.b16 %v2839
      %v2848 = vunpack.c.h.b16 %v2839
      %v2849 = vunpack.c.l.b16 %v2840
      %v2850 = vunpack.c.h.b16 %v2840
      %v2851 = vunpack.c.l.b16 %v2841
      %v2852 = vunpack.c.h.b16 %v2841
      %v2853 = vunpack.c.l.b16 %v2842
      %v2854 = vunpack.c.h.b16 %v2842
      %v2855 = vpack.c.b16 %v2849, %v2847
      %v2856 = vpack.c.b16 %v2850, %v2848
      %v2857 = vpack.c.b16 %v2853, %v2851
      %v2858 = vpack.c.b16 %v2854, %v2852
      %2863 = vmatprep.subr.bf16.mxu0 0
      %2864 = vmatpush1.bf16.msra.mxu0 0
      %2865 = vmatprep.subr.bf16.mxu0 0
      %2866 = vmatpush1.bf16.msra.mxu0 0
      %2867 = vmatprep.subr.bf16.mxu0 0
      %2868 = vmatpush1.bf16.msra.mxu0 0
      %2869 = vmatprep.subr.bf16.mxu0 0
      %2870 = vmatpush1.bf16.msra.mxu0 0
      %2871 = vmatprep.subr.bf16.mxu0 0
      %2872 = vmatpush1.bf16.msra.mxu0 0
      %2873 = vmatprep.subr.bf16.mxu0 0
      %2874 = vmatpush1.bf16.msra.mxu0 0
      %2875 = vmatprep.subr.bf16.mxu0 %v2858
      %2876 = vmatpush1.bf16.msra.mxu0 %v2857
      %2877 = vmatprep.subr.bf16.mxu0 %v2856
      %2878 = vmatpush1.bf16.msra.mxu0 %v2855
      %2879 = vmatprep.subr.bf16.mxu0 0
      %2880 = vmatpush2.bf16.msra.mxu0 0
      %2881 = vmatprep.subr.bf16.mxu0 0
      %2882 = vmatpush2.bf16.msra.mxu0 0
      %2883 = vmatprep.subr.bf16.mxu0 0
      %2884 = vmatpush2.bf16.msra.mxu0 0
      %2885 = vmatprep.subr.bf16.mxu0 0
      %2886 = vmatpush2.bf16.msra.mxu0 0
      %2887 = vmatprep.subr.bf16.mxu0 0
      %2888 = vmatpush2.bf16.msra.mxu0 0
      %2889 = vmatprep.subr.bf16.mxu0 0
      %2890 = vmatpush2.bf16.msra.mxu0 0
      %2891 = vmatprep.subr.bf16.mxu0 0
      %2892 = vmatpush2.bf16.msra.mxu0 0
      %2893 = vmatprep.subr.bf16.mxu0 0
      %2894 = vmatpush2.bf16.msra.mxu0 0
      %2895 = vmatprep.mubr.bf16.mxu0 0
      %2896 = vmatmul.mubr.bf16.gmra.mxu0 %v1864
      %v2897 = vpop.f32.mrf.mxu0
      %v2898 = vadd.f32 0.0, %v2897
      %v2899 = vpop.f32.mrf.mxu0
      %v2900 = vadd.f32 0.0, %v2899
      %v2901 = vpop.f32.mrf.mxu0
      %v2902 = vadd.f32 0.0, %v2901
      %v2903 = vpop.f32.mrf.mxu0
      %v2904 = vadd.f32 0.0, %v2903
      %2905 = vdwg.mxu0
      %v2910 = vunpack.c.l.b16 %v2835
      %v2911 = vunpack.c.h.b16 %v2835
      %v2912 = vunpack.c.l.b16 %v2836
      %v2913 = vunpack.c.h.b16 %v2836
      %v2914 = vunpack.c.l.b16 %v2837
      %v2915 = vunpack.c.h.b16 %v2837
      %v2916 = vunpack.c.l.b16 %v2838
      %v2917 = vunpack.c.h.b16 %v2838
      %v2918 = vpack.c.b16 %v2912, %v2910
      %v2919 = vpack.c.b16 %v2913, %v2911
      %v2920 = vpack.c.b16 %v2916, %v2914
      %v2921 = vpack.c.b16 %v2917, %v2915
      %2926 = vmatprep.subr.bf16.mxu0 0
      %2927 = vmatpush1.bf16.msra.mxu0 0
      %2928 = vmatprep.subr.bf16.mxu0 0
      %2929 = vmatpush1.bf16.msra.mxu0 0
      %2930 = vmatprep.subr.bf16.mxu0 0
      %2931 = vmatpush1.bf16.msra.mxu0 0
      %2932 = vmatprep.subr.bf16.mxu0 0
      %2933 = vmatpush1.bf16.msra.mxu0 0
      %2934 = vmatprep.subr.bf16.mxu0 0
      %2935 = vmatpush1.bf16.msra.mxu0 0
      %2936 = vmatprep.subr.bf16.mxu0 0
      %2937 = vmatpush1.bf16.msra.mxu0 0
      %2938 = vmatprep.subr.bf16.mxu0 %v2921
      %2939 = vmatpush1.bf16.msra.mxu0 %v2920
      %2940 = vmatprep.subr.bf16.mxu0 %v2919
      %2941 = vmatpush1.bf16.msra.mxu0 %v2918
      %2942 = vmatprep.subr.bf16.mxu0 0
      %2943 = vmatpush2.bf16.msra.mxu0 0
      %2944 = vmatprep.subr.bf16.mxu0 0
      %2945 = vmatpush2.bf16.msra.mxu0 0
      %2946 = vmatprep.subr.bf16.mxu0 0
      %2947 = vmatpush2.bf16.msra.mxu0 0
      %2948 = vmatprep.subr.bf16.mxu0 0
      %2949 = vmatpush2.bf16.msra.mxu0 0
      %2950 = vmatprep.subr.bf16.mxu0 0
      %2951 = vmatpush2.bf16.msra.mxu0 0
      %2952 = vmatprep.subr.bf16.mxu0 0
      %2953 = vmatpush2.bf16.msra.mxu0 0
      %2954 = vmatprep.subr.bf16.mxu0 0
      %2955 = vmatpush2.bf16.msra.mxu0 0
      %2956 = vmatprep.subr.bf16.mxu0 0
      %2957 = vmatpush2.bf16.msra.mxu0 0
      %2958 = vmatprep.mubr.bf16.mxu0 0
      %2959 = vmatmul.mubr.bf16.gmra.mxu0 %v1997
      %v2960 = vpop.f32.mrf.mxu0
      %v2961 = vadd.f32 %v2898, %v2960
      %v2962 = vpop.f32.mrf.mxu0
      %v2963 = vadd.f32 %v2900, %v2962
      %v2964 = vpop.f32.mrf.mxu0
      %v2965 = vadd.f32 %v2902, %v2964
      %v2966 = vpop.f32.mrf.mxu0
      %v2967 = vadd.f32 %v2904, %v2966
      %2968 = vdwg.mxu0
      %v2969 = vld [vmem:[%s12] sm:$0x3]
      %v2971 = vlaneseq
      %v2972 = vshrl.u32 %v2971, 7
      %v2973 = vsub.s32 0, %v2972
      %v2974 = vrot.slane %v2969, %v2973
      %v2975 = vlaneseq
      %v2976 = vshrl.u32 %v2975, 7
      %v2977 = vsub.s32 1, %v2976
      %v2978 = vrot.slane %v2969, %v2977
      %v2981 = vadd.f32 %v2961, %v2974
      %v2982 = vadd.f32 %v2963, %v2978
      %v2983 = vadd.f32 %v2965, %v2974
      %v2984 = vadd.f32 %v2967, %v2978
      %v2985 = vld [vmem:[%s13] sm:$0xff]
      %v2986 = vld [vmem:[%s13 + $0x8] sm:$0xff]
      %v2987 = vld [vmem:[%s13 + $0x10] sm:$0xff]
      %v2988 = vld [vmem:[%s13 + $0x18] sm:$0xff]
      %v2993 = vunpack.c.l.b16 %v2985
      %v2994 = vunpack.c.h.b16 %v2985
      %v2995 = vunpack.c.l.b16 %v2986
      %v2996 = vunpack.c.h.b16 %v2986
      %v2997 = vunpack.c.l.b16 %v2987
      %v2998 = vunpack.c.h.b16 %v2987
      %v2999 = vunpack.c.l.b16 %v2988
      %v3000 = vunpack.c.h.b16 %v2988
      %v3001 = vpack.c.b16 %v2995, %v2993
      %v3002 = vpack.c.b16 %v2996, %v2994
      %v3003 = vpack.c.b16 %v2999, %v2997
      %v3004 = vpack.c.b16 %v3000, %v2998
      %3009 = vmatprep.subr.bf16.mxu0 0
      %3010 = vmatpush1.bf16.msra.mxu0 0
      %3011 = vmatprep.subr.bf16.mxu0 0
      %3012 = vmatpush1.bf16.msra.mxu0 0
      %3013 = vmatprep.subr.bf16.mxu0 0
      %3014 = vmatpush1.bf16.msra.mxu0 0
      %3015 = vmatprep.subr.bf16.mxu0 0
      %3016 = vmatpush1.bf16.msra.mxu0 0
      %3017 = vmatprep.subr.bf16.mxu0 0
      %3018 = vmatpush1.bf16.msra.mxu0 0
      %3019 = vmatprep.subr.bf16.mxu0 0
      %3020 = vmatpush1.bf16.msra.mxu0 0
      %3021 = vmatprep.subr.bf16.mxu0 %v3004
      %3022 = vmatpush1.bf16.msra.mxu0 %v3003
      %3023 = vmatprep.subr.bf16.mxu0 %v3002
      %3024 = vmatpush1.bf16.msra.mxu0 %v3001
      %3025 = vmatprep.subr.bf16.mxu0 0
      %3026 = vmatpush2.bf16.msra.mxu0 0
      %3027 = vmatprep.subr.bf16.mxu0 0
      %3028 = vmatpush2.bf16.msra.mxu0 0
      %3029 = vmatprep.subr.bf16.mxu0 0
      %3030 = vmatpush2.bf16.msra.mxu0 0
      %3031 = vmatprep.subr.bf16.mxu0 0
      %3032 = vmatpush2.bf16.msra.mxu0 0
      %3033 = vmatprep.subr.bf16.mxu0 0
      %3034 = vmatpush2.bf16.msra.mxu0 0
      %3035 = vmatprep.subr.bf16.mxu0 0
      %3036 = vmatpush2.bf16.msra.mxu0 0
      %3037 = vmatprep.subr.bf16.mxu0 0
      %3038 = vmatpush2.bf16.msra.mxu0 0
      %3039 = vmatprep.subr.bf16.mxu0 0
      %3040 = vmatpush2.bf16.msra.mxu0 0
      %3041 = vmatprep.mubr.bf16.mxu0 0
      %3042 = vmatmul.mubr.bf16.gmra.mxu0 %v2650
      %v3043 = vpop.f32.mrf.mxu0
      %v3044 = vadd.f32 0.0, %v3043
      %v3045 = vpop.f32.mrf.mxu0
      %v3046 = vadd.f32 0.0, %v3045
      %v3047 = vpop.f32.mrf.mxu0
      %v3048 = vadd.f32 0.0, %v3047
      %v3049 = vpop.f32.mrf.mxu0
      %v3050 = vadd.f32 0.0, %v3049
      %3051 = vdwg.mxu0
      %v3052 = vadd.f32 %v2981, %v3044
      %v3053 = vadd.f32 %v2982, %v3046
      %v3054 = vadd.f32 %v2983, %v3048
      %v3055 = vadd.f32 %v2984, %v3050
      %v3056 = vld [vmem:[%s13 + $0x20] sm:$0xff]
      %v3057 = vld [vmem:[%s13 + $0x28] sm:$0xff]
      %v3058 = vld [vmem:[%s13 + $0x30] sm:$0xff]
      %v3059 = vld [vmem:[%s13 + $0x38] sm:$0xff]
      %v3064 = vunpack.c.l.b16 %v3056
      %v3065 = vunpack.c.h.b16 %v3056
      %v3066 = vunpack.c.l.b16 %v3057
      %v3067 = vunpack.c.h.b16 %v3057
      %v3068 = vunpack.c.l.b16 %v3058
      %v3069 = vunpack.c.h.b16 %v3058
      %v3070 = vunpack.c.l.b16 %v3059
      %v3071 = vunpack.c.h.b16 %v3059
      %v3072 = vpack.c.b16 %v3066, %v3064
      %v3073 = vpack.c.b16 %v3067, %v3065
      %v3074 = vpack.c.b16 %v3070, %v3068
      %v3075 = vpack.c.b16 %v3071, %v3069
      %3080 = vmatprep.subr.bf16.mxu0 0
      %3081 = vmatpush1.bf16.msra.mxu0 0
      %3082 = vmatprep.subr.bf16.mxu0 0
      %3083 = vmatpush1.bf16.msra.mxu0 0
      %3084 = vmatprep.subr.bf16.mxu0 0
      %3085 = vmatpush1.bf16.msra.mxu0 0
      %3086 = vmatprep.subr.bf16.mxu0 0
      %3087 = vmatpush1.bf16.msra.mxu0 0
      %3088 = vmatprep.subr.bf16.mxu0 0
      %3089 = vmatpush1.bf16.msra.mxu0 0
      %3090 = vmatprep.subr.bf16.mxu0 0
      %3091 = vmatpush1.bf16.msra.mxu0 0
      %3092 = vmatprep.subr.bf16.mxu0 %v3075
      %3093 = vmatpush1.bf16.msra.mxu0 %v3074
      %3094 = vmatprep.subr.bf16.mxu0 %v3073
      %3095 = vmatpush1.bf16.msra.mxu0 %v3072
      %3096 = vmatprep.subr.bf16.mxu0 0
      %3097 = vmatpush2.bf16.msra.mxu0 0
      %3098 = vmatprep.subr.bf16.mxu0 0
      %3099 = vmatpush2.bf16.msra.mxu0 0
      %3100 = vmatprep.subr.bf16.mxu0 0
      %3101 = vmatpush2.bf16.msra.mxu0 0
      %3102 = vmatprep.subr.bf16.mxu0 0
      %3103 = vmatpush2.bf16.msra.mxu0 0
      %3104 = vmatprep.subr.bf16.mxu0 0
      %3105 = vmatpush2.bf16.msra.mxu0 0
      %3106 = vmatprep.subr.bf16.mxu0 0
      %3107 = vmatpush2.bf16.msra.mxu0 0
      %3108 = vmatprep.subr.bf16.mxu0 0
      %3109 = vmatpush2.bf16.msra.mxu0 0
      %3110 = vmatprep.subr.bf16.mxu0 0
      %3111 = vmatpush2.bf16.msra.mxu0 0
      %3112 = vmatprep.mubr.bf16.mxu0 0
      %3113 = vmatmul.mubr.bf16.gmra.mxu0 %v2561
      %v3114 = vpop.f32.mrf.mxu0
      %v3115 = vadd.f32 0.0, %v3114
      %v3116 = vpop.f32.mrf.mxu0
      %v3117 = vadd.f32 0.0, %v3116
      %v3118 = vpop.f32.mrf.mxu0
      %v3119 = vadd.f32 0.0, %v3118
      %v3120 = vpop.f32.mrf.mxu0
      %v3121 = vadd.f32 0.0, %v3120
      %3122 = vdwg.mxu0
      %v3123 = vadd.f32 %v3052, %v3115
      %v3124 = vadd.f32 %v3053, %v3117
      %v3125 = vadd.f32 %v3054, %v3119
      %v3126 = vadd.f32 %v3055, %v3121
      %v3127 = vld [vmem:[%s14] sm:$0x3]
      %v3129 = vlaneseq
      %v3130 = vshrl.u32 %v3129, 7
      %v3131 = vsub.s32 0, %v3130
      %v3132 = vrot.slane %v3127, %v3131
      %v3133 = vlaneseq
      %v3134 = vshrl.u32 %v3133, 7
      %v3135 = vsub.s32 1, %v3134
      %v3136 = vrot.slane %v3127, %v3135
      %v3139 = vadd.f32 %v3123, %v3132
      %v3140 = vadd.f32 %v3124, %v3136
      %v3141 = vadd.f32 %v3125, %v3132
      %v3142 = vadd.f32 %v3126, %v3136
      %v3143 = vld [vmem:[%s15] sm:$0xff]
      %v3144 = vld [vmem:[%s15 + $0x8] sm:$0xff]
      %v3145 = vld [vmem:[%s15 + $0x10] sm:$0xff]
      %v3146 = vld [vmem:[%s15 + $0x18] sm:$0xff]
      %v3147 = vpack.c.bf16 %v2791, %v2790
      %v3152 = vunpack.c.l.b16 %v3143
      %v3153 = vunpack.c.h.b16 %v3143
      %v3154 = vunpack.c.l.b16 %v3144
      %v3155 = vunpack.c.h.b16 %v3144
      %v3156 = vunpack.c.l.b16 %v3145
      %v3157 = vunpack.c.h.b16 %v3145
      %v3158 = vunpack.c.l.b16 %v3146
      %v3159 = vunpack.c.h.b16 %v3146
      %v3160 = vpack.c.b16 %v3154, %v3152
      %v3161 = vpack.c.b16 %v3155, %v3153
      %v3162 = vpack.c.b16 %v3158, %v3156
      %v3163 = vpack.c.b16 %v3159, %v3157
      %v3169 = vsel %vm1841, %v3147, 0
      %3171 = vmatprep.subr.bf16.mxu0 0
      %3172 = vmatpush1.bf16.msra.mxu0 0
      %3173 = vmatprep.subr.bf16.mxu0 0
      %3174 = vmatpush1.bf16.msra.mxu0 0
      %3175 = vmatprep.subr.bf16.mxu0 0
      %3176 = vmatpush1.bf16.msra.mxu0 0
      %3177 = vmatprep.subr.bf16.mxu0 0
      %3178 = vmatpush1.bf16.msra.mxu0 0
      %3179 = vmatprep.subr.bf16.mxu0 0
      %3180 = vmatpush1.bf16.msra.mxu0 0
      %3181 = vmatprep.subr.bf16.mxu0 0
      %3182 = vmatpush1.bf16.msra.mxu0 0
      %3183 = vmatprep.subr.bf16.mxu0 %v3163
      %3184 = vmatpush1.bf16.msra.mxu0 %v3162
      %3185 = vmatprep.subr.bf16.mxu0 %v3161
      %3186 = vmatpush1.bf16.msra.mxu0 %v3160
      %3187 = vmatprep.subr.bf16.mxu0 0
      %3188 = vmatpush2.bf16.msra.mxu0 0
      %3189 = vmatprep.subr.bf16.mxu0 0
      %3190 = vmatpush2.bf16.msra.mxu0 0
      %3191 = vmatprep.subr.bf16.mxu0 0
      %3192 = vmatpush2.bf16.msra.mxu0 0
      %3193 = vmatprep.subr.bf16.mxu0 0
      %3194 = vmatpush2.bf16.msra.mxu0 0
      %3195 = vmatprep.subr.bf16.mxu0 0
      %3196 = vmatpush2.bf16.msra.mxu0 0
      %3197 = vmatprep.subr.bf16.mxu0 0
      %3198 = vmatpush2.bf16.msra.mxu0 0
      %3199 = vmatprep.subr.bf16.mxu0 0
      %3200 = vmatpush2.bf16.msra.mxu0 0
      %3201 = vmatprep.subr.bf16.mxu0 0
      %3202 = vmatpush2.bf16.msra.mxu0 0
      %3203 = vmatprep.mubr.bf16.mxu0 0
      %3204 = vmatmul.mubr.bf16.gmra.mxu0 %v3169
      %v3205 = vpop.f32.mrf.mxu0
      %v3206 = vadd.f32 0.0, %v3205
      %v3207 = vpop.f32.mrf.mxu0
      %v3208 = vadd.f32 0.0, %v3207
      %v3209 = vpop.f32.mrf.mxu0
      %v3210 = vadd.f32 0.0, %v3209
      %v3211 = vpop.f32.mrf.mxu0
      %v3212 = vadd.f32 0.0, %v3211
      %3213 = vdwg.mxu0
      %v3214 = vadd.f32 %v3139, %v3206
      %v3215 = vadd.f32 %v3140, %v3208
      %v3216 = vadd.f32 %v3141, %v3210
      %v3217 = vadd.f32 %v3142, %v3212
      %v3218 = vld [vmem:[%s15 + $0x20] sm:$0xff]
      %v3219 = vld [vmem:[%s15 + $0x28] sm:$0xff]
      %v3220 = vld [vmem:[%s15 + $0x30] sm:$0xff]
      %v3221 = vld [vmem:[%s15 + $0x38] sm:$0xff]
      %v3222 = vpack.c.bf16 %v2834, %v2833
      %v3227 = vunpack.c.l.b16 %v3218
      %v3228 = vunpack.c.h.b16 %v3218
      %v3229 = vunpack.c.l.b16 %v3219
      %v3230 = vunpack.c.h.b16 %v3219
      %v3231 = vunpack.c.l.b16 %v3220
      %v3232 = vunpack.c.h.b16 %v3220
      %v3233 = vunpack.c.l.b16 %v3221
      %v3234 = vunpack.c.h.b16 %v3221
      %v3235 = vpack.c.b16 %v3229, %v3227
      %v3236 = vpack.c.b16 %v3230, %v3228
      %v3237 = vpack.c.b16 %v3233, %v3231
      %v3238 = vpack.c.b16 %v3234, %v3232
      %v3244 = vsel %vm1841, %v3222, 0
      %3246 = vmatprep.subr.bf16.mxu0 0
      %3247 = vmatpush1.bf16.msra.mxu0 0
      %3248 = vmatprep.subr.bf16.mxu0 0
      %3249 = vmatpush1.bf16.msra.mxu0 0
      %3250 = vmatprep.subr.bf16.mxu0 0
      %3251 = vmatpush1.bf16.msra.mxu0 0
      %3252 = vmatprep.subr.bf16.mxu0 0
      %3253 = vmatpush1.bf16.msra.mxu0 0
      %3254 = vmatprep.subr.bf16.mxu0 0
      %3255 = vmatpush1.bf16.msra.mxu0 0
      %3256 = vmatprep.subr.bf16.mxu0 0
      %3257 = vmatpush1.bf16.msra.mxu0 0
      %3258 = vmatprep.subr.bf16.mxu0 %v3238
      %3259 = vmatpush1.bf16.msra.mxu0 %v3237
      %3260 = vmatprep.subr.bf16.mxu0 %v3236
      %3261 = vmatpush1.bf16.msra.mxu0 %v3235
      %3262 = vmatprep.subr.bf16.mxu0 0
      %3263 = vmatpush2.bf16.msra.mxu0 0
      %3264 = vmatprep.subr.bf16.mxu0 0
      %3265 = vmatpush2.bf16.msra.mxu0 0
      %3266 = vmatprep.subr.bf16.mxu0 0
      %3267 = vmatpush2.bf16.msra.mxu0 0
      %3268 = vmatprep.subr.bf16.mxu0 0
      %3269 = vmatpush2.bf16.msra.mxu0 0
      %3270 = vmatprep.subr.bf16.mxu0 0
      %3271 = vmatpush2.bf16.msra.mxu0 0
      %3272 = vmatprep.subr.bf16.mxu0 0
      %3273 = vmatpush2.bf16.msra.mxu0 0
      %3274 = vmatprep.subr.bf16.mxu0 0
      %3275 = vmatpush2.bf16.msra.mxu0 0
      %3276 = vmatprep.subr.bf16.mxu0 0
      %3277 = vmatpush2.bf16.msra.mxu0 0
      %3278 = vmatprep.mubr.bf16.mxu0 0
      %3279 = vmatmul.mubr.bf16.gmra.mxu0 %v3244
      %v3280 = vpop.f32.mrf.mxu0
      %v3281 = vadd.f32 0.0, %v3280
      %v3282 = vpop.f32.mrf.mxu0
      %v3283 = vadd.f32 0.0, %v3282
      %v3284 = vpop.f32.mrf.mxu0
      %v3285 = vadd.f32 0.0, %v3284
      %v3286 = vpop.f32.mrf.mxu0
      %v3287 = vadd.f32 0.0, %v3286
      %3288 = vdwg.mxu0
      %v3289 = vadd.f32 %v3214, %v3281
      %v3290 = vadd.f32 %v3215, %v3283
      %v3291 = vadd.f32 %v3216, %v3285
      %v3292 = vadd.f32 %v3217, %v3287
      %v3293 = vld [vmem:[%s16] sm:$0x3]
      %v3295 = vlaneseq
      %v3296 = vshrl.u32 %v3295, 7
      %v3297 = vsub.s32 0, %v3296
      %v3298 = vrot.slane %v3293, %v3297
      %v3299 = vlaneseq
      %v3300 = vshrl.u32 %v3299, 7
      %v3301 = vsub.s32 1, %v3300
      %v3302 = vrot.slane %v3293, %v3301
      %v3305 = vadd.f32 %v3289, %v3298
      %v3306 = vadd.f32 %v3290, %v3302
      %v3307 = vadd.f32 %v3291, %v3298
      %v3308 = vadd.f32 %v3292, %v3302
      %v3309 = vmax.f32 %v3305, 0.0
      %v3310 = vmax.f32 %v3306, 0.0
      %v3311 = vmax.f32 %v3307, 0.0
      %v3312 = vmax.f32 %v3308, 0.0
      %v3313 = vld [vmem:[%s17] sm:$0xff]
      %v3314 = vld [vmem:[%s17 + $0x8] sm:$0xff]
      %v3315 = vld [vmem:[%s17 + $0x10] sm:$0xff]
      %v3316 = vld [vmem:[%s17 + $0x18] sm:$0xff]
      %v3317 = vld [vmem:[%s17 + $0x20] sm:$0xff]
      %v3318 = vld [vmem:[%s17 + $0x28] sm:$0xff]
      %v3319 = vld [vmem:[%s17 + $0x30] sm:$0xff]
      %v3320 = vld [vmem:[%s17 + $0x38] sm:$0xff]
      %v3321 = vld [vmem:[%s17 + $0x40] sm:$0xff]
      %v3322 = vld [vmem:[%s17 + $0x48] sm:$0xff]
      %v3323 = vld [vmem:[%s17 + $0x50] sm:$0xff]
      %v3324 = vld [vmem:[%s17 + $0x58] sm:$0xff]
      %v3325 = vld [vmem:[%s17 + $0x60] sm:$0xff]
      %v3326 = vld [vmem:[%s17 + $0x68] sm:$0xff]
      %v3327 = vld [vmem:[%s17 + $0x70] sm:$0xff]
      %v3328 = vld [vmem:[%s17 + $0x78] sm:$0xff]
      %v3329 = vld [vmem:[%s17 + $0x80] sm:$0xff]
      %v3330 = vld [vmem:[%s17 + $0x88] sm:$0xff]
      %v3331 = vld [vmem:[%s17 + $0x90] sm:$0xff]
      %v3332 = vld [vmem:[%s17 + $0x98] sm:$0xff]
      %v3333 = vld [vmem:[%s17 + $0xa0] sm:$0xff]
      %v3334 = vld [vmem:[%s17 + $0xa8] sm:$0xff]
      %v3335 = vld [vmem:[%s17 + $0xb0] sm:$0xff]
      %v3336 = vld [vmem:[%s17 + $0xb8] sm:$0xff]
      %v3337 = vld [vmem:[%s17 + $0xc0] sm:$0xff]
      %v3338 = vld [vmem:[%s17 + $0xc8] sm:$0xff]
      %v3339 = vld [vmem:[%s17 + $0xd0] sm:$0xff]
      %v3340 = vld [vmem:[%s17 + $0xd8] sm:$0xff]
      %v3341 = vld [vmem:[%s17 + $0xe0] sm:$0xff]
      %v3342 = vld [vmem:[%s17 + $0xe8] sm:$0xff]
      %v3343 = vld [vmem:[%s17 + $0xf0] sm:$0xff]
      %v3344 = vld [vmem:[%s17 + $0xf8] sm:$0xff]
      %v3345 = vld [vmem:[%s17 + $0x100] sm:$0xff]
      %v3346 = vld [vmem:[%s17 + $0x108] sm:$0xff]
      %v3347 = vld [vmem:[%s17 + $0x110] sm:$0xff]
      %v3348 = vld [vmem:[%s17 + $0x118] sm:$0xff]
      %v3349 = vld [vmem:[%s17 + $0x120] sm:$0xff]
      %v3350 = vld [vmem:[%s17 + $0x128] sm:$0xff]
      %v3351 = vld [vmem:[%s17 + $0x130] sm:$0xff]
      %v3352 = vld [vmem:[%s17 + $0x138] sm:$0xff]
      %v3353 = vld [vmem:[%s17 + $0x140] sm:$0xff]
      %v3354 = vld [vmem:[%s17 + $0x148] sm:$0xff]
      %v3355 = vld [vmem:[%s17 + $0x150] sm:$0xff]
      %v3356 = vld [vmem:[%s17 + $0x158] sm:$0xff]
      %v3357 = vld [vmem:[%s17 + $0x160] sm:$0xff]
      %v3358 = vld [vmem:[%s17 + $0x168] sm:$0xff]
      %v3359 = vld [vmem:[%s17 + $0x170] sm:$0xff]
      %v3360 = vld [vmem:[%s17 + $0x178] sm:$0xff]
      %v3361 = vld [vmem:[%s17 + $0x180] sm:$0xff]
      %v3362 = vld [vmem:[%s17 + $0x188] sm:$0xff]
      %v3363 = vld [vmem:[%s17 + $0x190] sm:$0xff]
      %v3364 = vld [vmem:[%s17 + $0x198] sm:$0xff]
      %v3365 = vld [vmem:[%s17 + $0x1a0] sm:$0xff]
      %v3366 = vld [vmem:[%s17 + $0x1a8] sm:$0xff]
      %v3367 = vld [vmem:[%s17 + $0x1b0] sm:$0xff]
      %v3368 = vld [vmem:[%s17 + $0x1b8] sm:$0xff]
      %v3369 = vld [vmem:[%s17 + $0x1c0] sm:$0xff]
      %v3370 = vld [vmem:[%s17 + $0x1c8] sm:$0xff]
      %v3371 = vld [vmem:[%s17 + $0x1d0] sm:$0xff]
      %v3372 = vld [vmem:[%s17 + $0x1d8] sm:$0xff]
      %v3373 = vld [vmem:[%s17 + $0x1e0] sm:$0xff]
      %v3374 = vld [vmem:[%s17 + $0x1e8] sm:$0xff]
      %v3375 = vld [vmem:[%s17 + $0x1f0] sm:$0xff]
      %v3376 = vld [vmem:[%s17 + $0x1f8] sm:$0xff]
      %v3377 = vpack.c.bf16 %v3311, %v3309
      %v3378 = vpack.c.bf16 %v3312, %v3310
      %v3379 = vld [vmem:[%s18] sm:$0xf]
      %v3381 = vlaneseq
      %v3382 = vshrl.u32 %v3381, 7
      %v3383 = vsub.s32 0, %v3382
      %v3384 = vrot.slane %v3379, %v3383
      %v3385 = vlaneseq
      %v3386 = vshrl.u32 %v3385, 7
      %v3387 = vsub.s32 1, %v3386
      %v3388 = vrot.slane %v3379, %v3387
      %v3389 = vlaneseq
      %v3390 = vshrl.u32 %v3389, 7
      %v3391 = vsub.s32 2, %v3390
      %v3392 = vrot.slane %v3379, %v3391
      %v3393 = vlaneseq
      %v3394 = vshrl.u32 %v3393, 7
      %v3395 = vsub.s32 3, %v3394
      %v3396 = vrot.slane %v3379, %v3395
      %v3465 = vunpack.c.l.b16 %v3313
      %v3466 = vunpack.c.h.b16 %v3313
      %v3467 = vunpack.c.l.b16 %v3314
      %v3468 = vunpack.c.h.b16 %v3314
      %v3469 = vunpack.c.l.b16 %v3315
      %v3470 = vunpack.c.h.b16 %v3315
      %v3471 = vunpack.c.l.b16 %v3316
      %v3472 = vunpack.c.h.b16 %v3316
      %v3473 = vunpack.c.l.b16 %v3317
      %v3474 = vunpack.c.h.b16 %v3317
      %v3475 = vunpack.c.l.b16 %v3318
      %v3476 = vunpack.c.h.b16 %v3318
      %v3477 = vunpack.c.l.b16 %v3319
      %v3478 = vunpack.c.h.b16 %v3319
      %v3479 = vunpack.c.l.b16 %v3320
      %v3480 = vunpack.c.h.b16 %v3320
      %v3481 = vunpack.c.l.b16 %v3321
      %v3482 = vunpack.c.h.b16 %v3321
      %v3483 = vunpack.c.l.b16 %v3322
      %v3484 = vunpack.c.h.b16 %v3322
      %v3485 = vunpack.c.l.b16 %v3323
      %v3486 = vunpack.c.h.b16 %v3323
      %v3487 = vunpack.c.l.b16 %v3324
      %v3488 = vunpack.c.h.b16 %v3324
      %v3489 = vunpack.c.l.b16 %v3325
      %v3490 = vunpack.c.h.b16 %v3325
      %v3491 = vunpack.c.l.b16 %v3326
      %v3492 = vunpack.c.h.b16 %v3326
      %v3493 = vunpack.c.l.b16 %v3327
      %v3494 = vunpack.c.h.b16 %v3327
      %v3495 = vunpack.c.l.b16 %v3328
      %v3496 = vunpack.c.h.b16 %v3328
      %v3497 = vunpack.c.l.b16 %v3329
      %v3498 = vunpack.c.h.b16 %v3329
      %v3499 = vunpack.c.l.b16 %v3330
      %v3500 = vunpack.c.h.b16 %v3330
      %v3501 = vunpack.c.l.b16 %v3331
      %v3502 = vunpack.c.h.b16 %v3331
      %v3503 = vunpack.c.l.b16 %v3332
      %v3504 = vunpack.c.h.b16 %v3332
      %v3505 = vunpack.c.l.b16 %v3333
      %v3506 = vunpack.c.h.b16 %v3333
      %v3507 = vunpack.c.l.b16 %v3334
      %v3508 = vunpack.c.h.b16 %v3334
      %v3509 = vunpack.c.l.b16 %v3335
      %v3510 = vunpack.c.h.b16 %v3335
      %v3511 = vunpack.c.l.b16 %v3336
      %v3512 = vunpack.c.h.b16 %v3336
      %v3513 = vunpack.c.l.b16 %v3337
      %v3514 = vunpack.c.h.b16 %v3337
      %v3515 = vunpack.c.l.b16 %v3338
      %v3516 = vunpack.c.h.b16 %v3338
      %v3517 = vunpack.c.l.b16 %v3339
      %v3518 = vunpack.c.h.b16 %v3339
      %v3519 = vunpack.c.l.b16 %v3340
      %v3520 = vunpack.c.h.b16 %v3340
      %v3521 = vunpack.c.l.b16 %v3341
      %v3522 = vunpack.c.h.b16 %v3341
      %v3523 = vunpack.c.l.b16 %v3342
      %v3524 = vunpack.c.h.b16 %v3342
      %v3525 = vunpack.c.l.b16 %v3343
      %v3526 = vunpack.c.h.b16 %v3343
      %v3527 = vunpack.c.l.b16 %v3344
      %v3528 = vunpack.c.h.b16 %v3344
      %v3529 = vunpack.c.l.b16 %v3345
      %v3530 = vunpack.c.h.b16 %v3345
      %v3531 = vunpack.c.l.b16 %v3346
      %v3532 = vunpack.c.h.b16 %v3346
      %v3533 = vunpack.c.l.b16 %v3347
      %v3534 = vunpack.c.h.b16 %v3347
      %v3535 = vunpack.c.l.b16 %v3348
      %v3536 = vunpack.c.h.b16 %v3348
      %v3537 = vunpack.c.l.b16 %v3349
      %v3538 = vunpack.c.h.b16 %v3349
      %v3539 = vunpack.c.l.b16 %v3350
      %v3540 = vunpack.c.h.b16 %v3350
      %v3541 = vunpack.c.l.b16 %v3351
      %v3542 = vunpack.c.h.b16 %v3351
      %v3543 = vunpack.c.l.b16 %v3352
      %v3544 = vunpack.c.h.b16 %v3352
      %v3545 = vunpack.c.l.b16 %v3353
      %v3546 = vunpack.c.h.b16 %v3353
      %v3547 = vunpack.c.l.b16 %v3354
      %v3548 = vunpack.c.h.b16 %v3354
      %v3549 = vunpack.c.l.b16 %v3355
      %v3550 = vunpack.c.h.b16 %v3355
      %v3551 = vunpack.c.l.b16 %v3356
      %v3552 = vunpack.c.h.b16 %v3356
      %v3553 = vunpack.c.l.b16 %v3357
      %v3554 = vunpack.c.h.b16 %v3357
      %v3555 = vunpack.c.l.b16 %v3358
      %v3556 = vunpack.c.h.b16 %v3358
      %v3557 = vunpack.c.l.b16 %v3359
      %v3558 = vunpack.c.h.b16 %v3359
      %v3559 = vunpack.c.l.b16 %v3360
      %v3560 = vunpack.c.h.b16 %v3360
      %v3561 = vunpack.c.l.b16 %v3361
      %v3562 = vunpack.c.h.b16 %v3361
      %v3563 = vunpack.c.l.b16 %v3362
      %v3564 = vunpack.c.h.b16 %v3362
      %v3565 = vunpack.c.l.b16 %v3363
      %v3566 = vunpack.c.h.b16 %v3363
      %v3567 = vunpack.c.l.b16 %v3364
      %v3568 = vunpack.c.h.b16 %v3364
      %v3569 = vunpack.c.l.b16 %v3365
      %v3570 = vunpack.c.h.b16 %v3365
      %v3571 = vunpack.c.l.b16 %v3366
      %v3572 = vunpack.c.h.b16 %v3366
      %v3573 = vunpack.c.l.b16 %v3367
      %v3574 = vunpack.c.h.b16 %v3367
      %v3575 = vunpack.c.l.b16 %v3368
      %v3576 = vunpack.c.h.b16 %v3368
      %v3577 = vunpack.c.l.b16 %v3369
      %v3578 = vunpack.c.h.b16 %v3369
      %v3579 = vunpack.c.l.b16 %v3370
      %v3580 = vunpack.c.h.b16 %v3370
      %v3581 = vunpack.c.l.b16 %v3371
      %v3582 = vunpack.c.h.b16 %v3371
      %v3583 = vunpack.c.l.b16 %v3372
      %v3584 = vunpack.c.h.b16 %v3372
      %v3585 = vunpack.c.l.b16 %v3373
      %v3586 = vunpack.c.h.b16 %v3373
      %v3587 = vunpack.c.l.b16 %v3374
      %v3588 = vunpack.c.h.b16 %v3374
      %v3589 = vunpack.c.l.b16 %v3375
      %v3590 = vunpack.c.h.b16 %v3375
      %v3591 = vunpack.c.l.b16 %v3376
      %v3592 = vunpack.c.h.b16 %v3376
      %v3593 = vpack.c.b16 %v3469, %v3465
      %v3594 = vpack.c.b16 %v3470, %v3466
      %v3595 = vpack.c.b16 %v3471, %v3467
      %v3596 = vpack.c.b16 %v3472, %v3468
      %v3597 = vpack.c.b16 %v3477, %v3473
      %v3598 = vpack.c.b16 %v3478, %v3474
      %v3599 = vpack.c.b16 %v3479, %v3475
      %v3600 = vpack.c.b16 %v3480, %v3476
      %v3601 = vpack.c.b16 %v3485, %v3481
      %v3602 = vpack.c.b16 %v3486, %v3482
      %v3603 = vpack.c.b16 %v3487, %v3483
      %v3604 = vpack.c.b16 %v3488, %v3484
      %v3605 = vpack.c.b16 %v3493, %v3489
      %v3606 = vpack.c.b16 %v3494, %v3490
      %v3607 = vpack.c.b16 %v3495, %v3491
      %v3608 = vpack.c.b16 %v3496, %v3492
      %v3609 = vpack.c.b16 %v3501, %v3497
      %v3610 = vpack.c.b16 %v3502, %v3498
      %v3611 = vpack.c.b16 %v3503, %v3499
      %v3612 = vpack.c.b16 %v3504, %v3500
      %v3613 = vpack.c.b16 %v3509, %v3505
      %v3614 = vpack.c.b16 %v3510, %v3506
      %v3615 = vpack.c.b16 %v3511, %v3507
      %v3616 = vpack.c.b16 %v3512, %v3508
      %v3617 = vpack.c.b16 %v3517, %v3513
      %v3618 = vpack.c.b16 %v3518, %v3514
      %v3619 = vpack.c.b16 %v3519, %v3515
      %v3620 = vpack.c.b16 %v3520, %v3516
      %v3621 = vpack.c.b16 %v3525, %v3521
      %v3622 = vpack.c.b16 %v3526, %v3522
      %v3623 = vpack.c.b16 %v3527, %v3523
      %v3624 = vpack.c.b16 %v3528, %v3524
      %v3625 = vpack.c.b16 %v3533, %v3529
      %v3626 = vpack.c.b16 %v3534, %v3530
      %v3627 = vpack.c.b16 %v3535, %v3531
      %v3628 = vpack.c.b16 %v3536, %v3532
      %v3629 = vpack.c.b16 %v3541, %v3537
      %v3630 = vpack.c.b16 %v3542, %v3538
      %v3631 = vpack.c.b16 %v3543, %v3539
      %v3632 = vpack.c.b16 %v3544, %v3540
      %v3633 = vpack.c.b16 %v3549, %v3545
      %v3634 = vpack.c.b16 %v3550, %v3546
      %v3635 = vpack.c.b16 %v3551, %v3547
      %v3636 = vpack.c.b16 %v3552, %v3548
      %v3637 = vpack.c.b16 %v3557, %v3553
      %v3638 = vpack.c.b16 %v3558, %v3554
      %v3639 = vpack.c.b16 %v3559, %v3555
      %v3640 = vpack.c.b16 %v3560, %v3556
      %v3641 = vpack.c.b16 %v3565, %v3561
      %v3642 = vpack.c.b16 %v3566, %v3562
      %v3643 = vpack.c.b16 %v3567, %v3563
      %v3644 = vpack.c.b16 %v3568, %v3564
      %v3645 = vpack.c.b16 %v3573, %v3569
      %v3646 = vpack.c.b16 %v3574, %v3570
      %v3647 = vpack.c.b16 %v3575, %v3571
      %v3648 = vpack.c.b16 %v3576, %v3572
      %v3649 = vpack.c.b16 %v3581, %v3577
      %v3650 = vpack.c.b16 %v3582, %v3578
      %v3651 = vpack.c.b16 %v3583, %v3579
      %v3652 = vpack.c.b16 %v3584, %v3580
      %v3653 = vpack.c.b16 %v3589, %v3585
      %v3654 = vpack.c.b16 %v3590, %v3586
      %v3655 = vpack.c.b16 %v3591, %v3587
      %v3656 = vpack.c.b16 %v3592, %v3588
      %3721 = vmatprep.subr.bf16.mxu0 %v3622
      %3722 = vmatpush1.bf16.msra.mxu0 %v3621
      %3723 = vmatprep.subr.bf16.mxu0 %v3618
      %3724 = vmatpush1.bf16.msra.mxu0 %v3617
      %3725 = vmatprep.subr.bf16.mxu0 %v3614
      %3726 = vmatpush1.bf16.msra.mxu0 %v3613
      %3727 = vmatprep.subr.bf16.mxu0 %v3610
      %3728 = vmatpush1.bf16.msra.mxu0 %v3609
      %3729 = vmatprep.subr.bf16.mxu0 %v3606
      %3730 = vmatpush1.bf16.msra.mxu0 %v3605
      %3731 = vmatprep.subr.bf16.mxu0 %v3602
      %3732 = vmatpush1.bf16.msra.mxu0 %v3601
      %3733 = vmatprep.subr.bf16.mxu0 %v3598
      %3734 = vmatpush1.bf16.msra.mxu0 %v3597
      %3735 = vmatprep.subr.bf16.mxu0 %v3594
      %3736 = vmatpush1.bf16.msra.mxu0 %v3593
      %3737 = vmatprep.subr.bf16.mxu0 %v3654
      %3738 = vmatpush2.bf16.msra.mxu0 %v3653
      %3739 = vmatprep.subr.bf16.mxu0 %v3650
      %3740 = vmatpush2.bf16.msra.mxu0 %v3649
      %3741 = vmatprep.subr.bf16.mxu0 %v3646
      %3742 = vmatpush2.bf16.msra.mxu0 %v3645
      %3743 = vmatprep.subr.bf16.mxu0 %v3642
      %3744 = vmatpush2.bf16.msra.mxu0 %v3641
      %3745 = vmatprep.subr.bf16.mxu0 %v3638
      %3746 = vmatpush2.bf16.msra.mxu0 %v3637
      %3747 = vmatprep.subr.bf16.mxu0 %v3634
      %3748 = vmatpush2.bf16.msra.mxu0 %v3633
      %3749 = vmatprep.subr.bf16.mxu0 %v3630
      %3750 = vmatpush2.bf16.msra.mxu0 %v3629
      %3751 = vmatprep.subr.bf16.mxu0 %v3626
      %3752 = vmatpush2.bf16.msra.mxu0 %v3625
      %3753 = vmatprep.mubr.bf16.mxu0 %v3378
      %3754 = vmatmul.mubr.bf16.gmra.mxu0 %v3377
      %v3755 = vpop.f32.mrf.mxu0
      %v3756 = vadd.f32 %v3384, %v3755
      %v3757 = vpop.f32.mrf.mxu0
      %v3758 = vadd.f32 %v3388, %v3757
      %v3759 = vpop.f32.mrf.mxu0
      %v3760 = vadd.f32 %v3384, %v3759
      %v3761 = vpop.f32.mrf.mxu0
      %v3762 = vadd.f32 %v3388, %v3761
      %3763 = vdwg.mxu0
      %3764 = vmatprep.subr.bf16.mxu0 %v3624
      %3765 = vmatpush1.bf16.msra.mxu0 %v3623
      %3766 = vmatprep.subr.bf16.mxu0 %v3620
      %3767 = vmatpush1.bf16.msra.mxu0 %v3619
      %3768 = vmatprep.subr.bf16.mxu0 %v3616
      %3769 = vmatpush1.bf16.msra.mxu0 %v3615
      %3770 = vmatprep.subr.bf16.mxu0 %v3612
      %3771 = vmatpush1.bf16.msra.mxu0 %v3611
      %3772 = vmatprep.subr.bf16.mxu0 %v3608
      %3773 = vmatpush1.bf16.msra.mxu0 %v3607
      %3774 = vmatprep.subr.bf16.mxu0 %v3604
      %3775 = vmatpush1.bf16.msra.mxu0 %v3603
      %3776 = vmatprep.subr.bf16.mxu0 %v3600
      %3777 = vmatpush1.bf16.msra.mxu0 %v3599
      %3778 = vmatprep.subr.bf16.mxu0 %v3596
      %3779 = vmatpush1.bf16.msra.mxu0 %v3595
      %3780 = vmatprep.subr.bf16.mxu0 %v3656
      %3781 = vmatpush2.bf16.msra.mxu0 %v3655
      %3782 = vmatprep.subr.bf16.mxu0 %v3652
      %3783 = vmatpush2.bf16.msra.mxu0 %v3651
      %3784 = vmatprep.subr.bf16.mxu0 %v3648
      %3785 = vmatpush2.bf16.msra.mxu0 %v3647
      %3786 = vmatprep.subr.bf16.mxu0 %v3644
      %3787 = vmatpush2.bf16.msra.mxu0 %v3643
      %3788 = vmatprep.subr.bf16.mxu0 %v3640
      %3789 = vmatpush2.bf16.msra.mxu0 %v3639
      %3790 = vmatprep.subr.bf16.mxu0 %v3636
      %3791 = vmatpush2.bf16.msra.mxu0 %v3635
      %3792 = vmatprep.subr.bf16.mxu0 %v3632
      %3793 = vmatpush2.bf16.msra.mxu0 %v3631
      %3794 = vmatprep.subr.bf16.mxu0 %v3628
      %3795 = vmatpush2.bf16.msra.mxu0 %v3627
      %3796 = vmatprep.mubr.bf16.mxu0 %v3378
      %3797 = vmatmul.mubr.bf16.gmra.mxu0 %v3377
      %v3798 = vpop.f32.mrf.mxu0
      %v3799 = vadd.f32 %v3392, %v3798
      %v3800 = vpop.f32.mrf.mxu0
      %v3801 = vadd.f32 %v3396, %v3800
      %v3802 = vpop.f32.mrf.mxu0
      %v3803 = vadd.f32 %v3392, %v3802
      %v3804 = vpop.f32.mrf.mxu0
      %v3805 = vadd.f32 %v3396, %v3804
      %3806 = vdwg.mxu0
      %v3807 = vmax.f32 %v3756, 0.0
      %v3808 = vmax.f32 %v3758, 0.0
      %v3809 = vmax.f32 %v3799, 0.0
      %v3810 = vmax.f32 %v3801, 0.0
      %v3811 = vmax.f32 %v3760, 0.0
      %v3812 = vmax.f32 %v3762, 0.0
      %v3813 = vmax.f32 %v3803, 0.0
      %v3814 = vmax.f32 %v3805, 0.0
      %v3815 = vld [vmem:[%s19] sm:$0xf]
      %v3816 = vld [vmem:[%s19 + $0x4] sm:$0xf]
      %v3817 = vld [vmem:[%s19 + $0x8] sm:$0xf]
      %v3818 = vld [vmem:[%s19 + $0xc] sm:$0xf]
      %v3819 = vld [vmem:[%s19 + $0x10] sm:$0xf]
      %v3820 = vld [vmem:[%s19 + $0x14] sm:$0xf]
      %v3821 = vld [vmem:[%s19 + $0x18] sm:$0xf]
      %v3822 = vld [vmem:[%s19 + $0x1c] sm:$0xf]
      %v3823 = vld [vmem:[%s19 + $0x20] sm:$0xf]
      %v3824 = vld [vmem:[%s19 + $0x24] sm:$0xf]
      %v3825 = vld [vmem:[%s19 + $0x28] sm:$0xf]
      %v3826 = vld [vmem:[%s19 + $0x2c] sm:$0xf]
      %v3827 = vld [vmem:[%s19 + $0x30] sm:$0xf]
      %v3828 = vld [vmem:[%s19 + $0x34] sm:$0xf]
      %v3829 = vld [vmem:[%s19 + $0x38] sm:$0xf]
      %v3830 = vld [vmem:[%s19 + $0x3c] sm:$0xf]
      %v3831 = vld [vmem:[%s19 + $0x40] sm:$0xf]
      %v3832 = vld [vmem:[%s19 + $0x44] sm:$0xf]
      %v3833 = vld [vmem:[%s19 + $0x48] sm:$0xf]
      %v3834 = vld [vmem:[%s19 + $0x4c] sm:$0xf]
      %v3835 = vld [vmem:[%s19 + $0x50] sm:$0xf]
      %v3836 = vld [vmem:[%s19 + $0x54] sm:$0xf]
      %v3837 = vld [vmem:[%s19 + $0x58] sm:$0xf]
      %v3838 = vld [vmem:[%s19 + $0x5c] sm:$0xf]
      %v3839 = vld [vmem:[%s19 + $0x60] sm:$0xf]
      %v3840 = vld [vmem:[%s19 + $0x64] sm:$0xf]
      %v3841 = vld [vmem:[%s19 + $0x68] sm:$0xf]
      %v3842 = vld [vmem:[%s19 + $0x6c] sm:$0xf]
      %v3843 = vld [vmem:[%s19 + $0x70] sm:$0xf]
      %v3844 = vld [vmem:[%s19 + $0x74] sm:$0xf]
      %v3845 = vld [vmem:[%s19 + $0x78] sm:$0xf]
      %v3846 = vld [vmem:[%s19 + $0x7c] sm:$0xf]
      %v3847 = vld [vmem:[%s19 + $0x80] sm:$0xf]
      %v3848 = vld [vmem:[%s19 + $0x84] sm:$0xf]
      %v3849 = vld [vmem:[%s19 + $0x88] sm:$0xf]
      %v3850 = vld [vmem:[%s19 + $0x8c] sm:$0xf]
      %v3851 = vld [vmem:[%s19 + $0x90] sm:$0xf]
      %v3852 = vld [vmem:[%s19 + $0x94] sm:$0xf]
      %v3853 = vld [vmem:[%s19 + $0x98] sm:$0xf]
      %v3854 = vld [vmem:[%s19 + $0x9c] sm:$0xf]
      %v3855 = vld [vmem:[%s19 + $0xa0] sm:$0xf]
      %v3856 = vld [vmem:[%s19 + $0xa4] sm:$0xf]
      %v3857 = vld [vmem:[%s19 + $0xa8] sm:$0xf]
      %v3858 = vld [vmem:[%s19 + $0xac] sm:$0xf]
      %v3859 = vld [vmem:[%s19 + $0xb0] sm:$0xf]
      %v3860 = vld [vmem:[%s19 + $0xb4] sm:$0xf]
      %v3861 = vld [vmem:[%s19 + $0xb8] sm:$0xf]
      %v3862 = vld [vmem:[%s19 + $0xbc] sm:$0xf]
      %v3863 = vld [vmem:[%s19 + $0xc0] sm:$0xf]
      %v3864 = vld [vmem:[%s19 + $0xc4] sm:$0xf]
      %v3865 = vld [vmem:[%s19 + $0xc8] sm:$0xf]
      %v3866 = vld [vmem:[%s19 + $0xcc] sm:$0xf]
      %v3867 = vld [vmem:[%s19 + $0xd0] sm:$0xf]
      %v3868 = vld [vmem:[%s19 + $0xd4] sm:$0xf]
      %v3869 = vld [vmem:[%s19 + $0xd8] sm:$0xf]
      %v3870 = vld [vmem:[%s19 + $0xdc] sm:$0xf]
      %v3871 = vld [vmem:[%s19 + $0xe0] sm:$0xf]
      %v3872 = vld [vmem:[%s19 + $0xe4] sm:$0xf]
      %v3873 = vld [vmem:[%s19 + $0xe8] sm:$0xf]
      %v3874 = vld [vmem:[%s19 + $0xec] sm:$0xf]
      %v3875 = vld [vmem:[%s19 + $0xf0] sm:$0xf]
      %v3876 = vld [vmem:[%s19 + $0xf4] sm:$0xf]
      %v3877 = vld [vmem:[%s19 + $0xf8] sm:$0xf]
      %v3878 = vld [vmem:[%s19 + $0xfc] sm:$0xf]
      %v3879 = vpack.c.bf16 %v3811, %v3807
      %v3880 = vpack.c.bf16 %v3812, %v3808
      %v3881 = vpack.c.bf16 %v3813, %v3809
      %v3882 = vpack.c.bf16 %v3814, %v3810
      %v3883 = vld [vmem:[%s20] sm:$0x1]
      %v3885 = vlaneseq
      %v3886 = vshrl.u32 %v3885, 7
      %v3887 = vsub.s32 0, %v3886
      %v3888 = vrot.slane %v3883, %v3887
      %v3954 = vunpack.c.l.b16 %v3815
      %v3955 = vunpack.c.l.b16 %v3816
      %v3956 = vunpack.c.l.b16 %v3817
      %v3957 = vunpack.c.l.b16 %v3818
      %v3958 = vunpack.c.l.b16 %v3819
      %v3959 = vunpack.c.l.b16 %v3820
      %v3960 = vunpack.c.l.b16 %v3821
      %v3961 = vunpack.c.l.b16 %v3822
      %v3962 = vunpack.c.l.b16 %v3823
      %v3963 = vunpack.c.l.b16 %v3824
      %v3964 = vunpack.c.l.b16 %v3825
      %v3965 = vunpack.c.l.b16 %v3826
      %v3966 = vunpack.c.l.b16 %v3827
      %v3967 = vunpack.c.l.b16 %v3828
      %v3968 = vunpack.c.l.b16 %v3829
      %v3969 = vunpack.c.l.b16 %v3830
      %v3970 = vunpack.c.l.b16 %v3831
      %v3971 = vunpack.c.l.b16 %v3832
      %v3972 = vunpack.c.l.b16 %v3833
      %v3973 = vunpack.c.l.b16 %v3834
      %v3974 = vunpack.c.l.b16 %v3835
      %v3975 = vunpack.c.l.b16 %v3836
      %v3976 = vunpack.c.l.b16 %v3837
      %v3977 = vunpack.c.l.b16 %v3838
      %v3978 = vunpack.c.l.b16 %v3839
      %v3979 = vunpack.c.l.b16 %v3840
      %v3980 = vunpack.c.l.b16 %v3841
      %v3981 = vunpack.c.l.b16 %v3842
      %v3982 = vunpack.c.l.b16 %v3843
      %v3983 = vunpack.c.l.b16 %v3844
      %v3984 = vunpack.c.l.b16 %v3845
      %v3985 = vunpack.c.l.b16 %v3846
      %v3986 = vunpack.c.l.b16 %v3847
      %v3987 = vunpack.c.l.b16 %v3848
      %v3988 = vunpack.c.l.b16 %v3849
      %v3989 = vunpack.c.l.b16 %v3850
      %v3990 = vunpack.c.l.b16 %v3851
      %v3991 = vunpack.c.l.b16 %v3852
      %v3992 = vunpack.c.l.b16 %v3853
      %v3993 = vunpack.c.l.b16 %v3854
      %v3994 = vunpack.c.l.b16 %v3855
      %v3995 = vunpack.c.l.b16 %v3856
      %v3996 = vunpack.c.l.b16 %v3857
      %v3997 = vunpack.c.l.b16 %v3858
      %v3998 = vunpack.c.l.b16 %v3859
      %v3999 = vunpack.c.l.b16 %v3860
      %v4000 = vunpack.c.l.b16 %v3861
      %v4001 = vunpack.c.l.b16 %v3862
      %v4002 = vunpack.c.l.b16 %v3863
      %v4003 = vunpack.c.l.b16 %v3864
      %v4004 = vunpack.c.l.b16 %v3865
      %v4005 = vunpack.c.l.b16 %v3866
      %v4006 = vunpack.c.l.b16 %v3867
      %v4007 = vunpack.c.l.b16 %v3868
      %v4008 = vunpack.c.l.b16 %v3869
      %v4009 = vunpack.c.l.b16 %v3870
      %v4010 = vunpack.c.l.b16 %v3871
      %v4011 = vunpack.c.l.b16 %v3872
      %v4012 = vunpack.c.l.b16 %v3873
      %v4013 = vunpack.c.l.b16 %v3874
      %v4014 = vunpack.c.l.b16 %v3875
      %v4015 = vunpack.c.l.b16 %v3876
      %v4016 = vunpack.c.l.b16 %v3877
      %v4017 = vunpack.c.l.b16 %v3878
      %v4018 = vpack.c.b16 %v3955, %v3954
      %v4019 = vpack.c.b16 %v3957, %v3956
      %v4020 = vpack.c.b16 %v3959, %v3958
      %v4021 = vpack.c.b16 %v3961, %v3960
      %v4022 = vpack.c.b16 %v3963, %v3962
      %v4023 = vpack.c.b16 %v3965, %v3964
      %v4024 = vpack.c.b16 %v3967, %v3966
      %v4025 = vpack.c.b16 %v3969, %v3968
      %v4026 = vpack.c.b16 %v3971, %v3970
      %v4027 = vpack.c.b16 %v3973, %v3972
      %v4028 = vpack.c.b16 %v3975, %v3974
      %v4029 = vpack.c.b16 %v3977, %v3976
      %v4030 = vpack.c.b16 %v3979, %v3978
      %v4031 = vpack.c.b16 %v3981, %v3980
      %v4032 = vpack.c.b16 %v3983, %v3982
      %v4033 = vpack.c.b16 %v3985, %v3984
      %v4034 = vpack.c.b16 %v3987, %v3986
      %v4035 = vpack.c.b16 %v3989, %v3988
      %v4036 = vpack.c.b16 %v3991, %v3990
      %v4037 = vpack.c.b16 %v3993, %v3992
      %v4038 = vpack.c.b16 %v3995, %v3994
      %v4039 = vpack.c.b16 %v3997, %v3996
      %v4040 = vpack.c.b16 %v3999, %v3998
      %v4041 = vpack.c.b16 %v4001, %v4000
      %v4042 = vpack.c.b16 %v4003, %v4002
      %v4043 = vpack.c.b16 %v4005, %v4004
      %v4044 = vpack.c.b16 %v4007, %v4006
      %v4045 = vpack.c.b16 %v4009, %v4008
      %v4046 = vpack.c.b16 %v4011, %v4010
      %v4047 = vpack.c.b16 %v4013, %v4012
      %v4048 = vpack.c.b16 %v4015, %v4014
      %v4049 = vpack.c.b16 %v4017, %v4016
      %4082 = vmatprep.subr.bf16.mxu0 0
      %4083 = vmatpush1.bf16.msra.mxu0 %v4025
      %4084 = vmatprep.subr.bf16.mxu0 0
      %4085 = vmatpush1.bf16.msra.mxu0 %v4024
      %4086 = vmatprep.subr.bf16.mxu0 0
      %4087 = vmatpush1.bf16.msra.mxu0 %v4023
      %4088 = vmatprep.subr.bf16.mxu0 0
      %4089 = vmatpush1.bf16.msra.mxu0 %v4022
      %4090 = vmatprep.subr.bf16.mxu0 0
      %4091 = vmatpush1.bf16.msra.mxu0 %v4021
      %4092 = vmatprep.subr.bf16.mxu0 0
      %4093 = vmatpush1.bf16.msra.mxu0 %v4020
      %4094 = vmatprep.subr.bf16.mxu0 0
      %4095 = vmatpush1.bf16.msra.mxu0 %v4019
      %4096 = vmatprep.subr.bf16.mxu0 0
      %4097 = vmatpush1.bf16.msra.mxu0 %v4018
      %4098 = vmatprep.subr.bf16.mxu0 0
      %4099 = vmatpush2.bf16.msra.mxu0 %v4033
      %4100 = vmatprep.subr.bf16.mxu0 0
      %4101 = vmatpush2.bf16.msra.mxu0 %v4032
      %4102 = vmatprep.subr.bf16.mxu0 0
      %4103 = vmatpush2.bf16.msra.mxu0 %v4031
      %4104 = vmatprep.subr.bf16.mxu0 0
      %4105 = vmatpush2.bf16.msra.mxu0 %v4030
      %4106 = vmatprep.subr.bf16.mxu0 0
      %4107 = vmatpush2.bf16.msra.mxu0 %v4029
      %4108 = vmatprep.subr.bf16.mxu0 0
      %4109 = vmatpush2.bf16.msra.mxu0 %v4028
      %4110 = vmatprep.subr.bf16.mxu0 0
      %4111 = vmatpush2.bf16.msra.mxu0 %v4027
      %4112 = vmatprep.subr.bf16.mxu0 0
      %4113 = vmatpush2.bf16.msra.mxu0 %v4026
      %4114 = vmatprep.mubr.bf16.mxu0 %v3880
      %4115 = vmatmul.mubr.bf16.gmra.mxu0 %v3879
      %v4116 = vpop.f32.mrf.mxu0
      %v4117 = vadd.f32 %v3888, %v4116
      %v4118 = vpop.f32.mrf.mxu0
      %v4119 = vpop.f32.mrf.mxu0
      %v4120 = vadd.f32 %v3888, %v4119
      %v4121 = vpop.f32.mrf.mxu0
      %4122 = vdwg.mxu0
      %4123 = vmatprep.subr.bf16.mxu0 0
      %4124 = vmatpush1.bf16.msra.mxu0 %v4041
      %4125 = vmatprep.subr.bf16.mxu0 0
      %4126 = vmatpush1.bf16.msra.mxu0 %v4040
      %4127 = vmatprep.subr.bf16.mxu0 0
      %4128 = vmatpush1.bf16.msra.mxu0 %v4039
      %4129 = vmatprep.subr.bf16.mxu0 0
      %4130 = vmatpush1.bf16.msra.mxu0 %v4038
      %4131 = vmatprep.subr.bf16.mxu0 0
      %4132 = vmatpush1.bf16.msra.mxu0 %v4037
      %4133 = vmatprep.subr.bf16.mxu0 0
      %4134 = vmatpush1.bf16.msra.mxu0 %v4036
      %4135 = vmatprep.subr.bf16.mxu0 0
      %4136 = vmatpush1.bf16.msra.mxu0 %v4035
      %4137 = vmatprep.subr.bf16.mxu0 0
      %4138 = vmatpush1.bf16.msra.mxu0 %v4034
      %4139 = vmatprep.subr.bf16.mxu0 0
      %4140 = vmatpush2.bf16.msra.mxu0 %v4049
      %4141 = vmatprep.subr.bf16.mxu0 0
      %4142 = vmatpush2.bf16.msra.mxu0 %v4048
      %4143 = vmatprep.subr.bf16.mxu0 0
      %4144 = vmatpush2.bf16.msra.mxu0 %v4047
      %4145 = vmatprep.subr.bf16.mxu0 0
      %4146 = vmatpush2.bf16.msra.mxu0 %v4046
      %4147 = vmatprep.subr.bf16.mxu0 0
      %4148 = vmatpush2.bf16.msra.mxu0 %v4045
      %4149 = vmatprep.subr.bf16.mxu0 0
      %4150 = vmatpush2.bf16.msra.mxu0 %v4044
      %4151 = vmatprep.subr.bf16.mxu0 0
      %4152 = vmatpush2.bf16.msra.mxu0 %v4043
      %4153 = vmatprep.subr.bf16.mxu0 0
      %4154 = vmatpush2.bf16.msra.mxu0 %v4042
      %4155 = vmatprep.mubr.bf16.mxu0 %v3882
      %4156 = vmatmul.mubr.bf16.gmra.mxu0 %v3881
      %v4157 = vpop.f32.mrf.mxu0
      %v4158 = vadd.f32 %v4117, %v4157
      %v4159 = vpop.f32.mrf.mxu0
      %v4160 = vpop.f32.mrf.mxu0
      %v4161 = vadd.f32 %v4120, %v4160
      %v4162 = vpop.f32.mrf.mxu0
      %4163 = vdwg.mxu0
      %vm4164 = vcmask 97280
      %4165 = vst.msk [vmem:[%s656] sm:$0xff] %vm4164, %v4158
      %4166 = vst.msk [vmem:[%s656 + $0x8] sm:$0xff] %vm4164, %v4161
      %p4167 = scmp.lt.s32.totalorder %s32, 1
      %s4168 = scalar_select %p4167, %s32, 1
      %s4169 = smul.addr %s4168, 2
      %s4170 = smul.addr %s4169, 8
      %s4171 = scalar_lea.vmem %s21, %s4170
      // Predicated region
      $region105: #{cldgcn_forward.1} parent=103 // pred_check
        %p4172 = pneg %p496
      $region106: #{cldgcn_forward.1} parent=103 // pred_check_branch
        %4174 = sbr.rel (%p4172) target = $region108
      $region107: #{cldgcn_forward.1} parent=103 // pred_region
        _
      $region108: #{cldgcn_forward.1} parent=103 // pred_fallthru
        _
    $region104: #{cldgcn_forward.1} parent=5 // pred_fallthru
      _
    %p4175 = scmp.le.s32.totalorder 2, %s27
    // Predicated region
    $region109: #{cldgcn_forward.1} parent=5 // pred_check
      %p4176 = pneg %p4175
    $region110: #{cldgcn_forward.1} parent=5 // pred_check_branch
      %4178 = sbr.rel (%p4176) target = $region112
    $region111: #{cldgcn_forward.1} parent=5 // pred_region
      %s4179 = ssub.s32 %s27, 2
      // Predicated region
      $region113: #{cldgcn_forward.1} parent=111 // pred_check
        %p4180 = pneg %p502
      $region114: #{cldgcn_forward.1} parent=111 // pred_check_branch
        %4182 = sbr.rel (%p4180) target = $region116
      $region115: #{cldgcn_forward.1} parent=111 // pred_region
        %p4183 = scmp.lt.s32.totalorder %s33, 1
        %s4184 = scalar_select %p4183, %s33, 1
        %s4185 = smul.addr %s4184, 2
        %s4186 = smul.addr %s4185, 8
        %s4187 = scalar_lea.vmem %s21, %s4186
      $region116: #{cldgcn_forward.1} parent=111 // pred_fallthru
        _
    $region112: #{cldgcn_forward.1} parent=5 // pred_fallthru
      _
  $region6: #{cldgcn_forward.1} parent=0 // loop_footer
    %s31 = sadd.s32 1, %s27
  $region7: #{cldgcn_forward.1} parent=0 // loop_footer_branch
    %26 = sbr.rel target = $region3
  $region8: #{cldgcn_forward.1} parent=0 // loop_exit
    _

</llo_original>
